<compile_context>
chip_gen: v5e
topology: v5e:2x2
jax: 0.10.0
libtpu: 0.0.40
codegen_flags: <defaults>
</compile_context>

<pallas_src>
import functools

import jax
import jax.numpy as jnp
from jax import lax
from jax.experimental import pallas as pl
from jax.experimental.pallas import tpu as pltpu


ARCH = (4, 4, 4, 4)
GROWTH = 32
NUM_CHANNELS = 64
NUM_CLASSES = 10
EPS = 1e-5
CMAX = 256                 # padded channel width of the dense-block buffer
MIN_ROWS_FOR_PALLAS = 32   # below this a pallas_call is pure launch overhead


def _round_up(x, m):
    return ((x + m - 1) // m) * m


def _pick_tm(mp):
    """Largest row tile (multiple of 16) that still gives >= 2 grid steps."""
    for cand in (128, 64, 32, 16):
        if mp % cand == 0 and mp // cand >= 2:
            return cand
    return mp


# ----------------------------------------------------------------------------
# Pallas kernel: fused  [relu](a * scale + shift) @ B  with f32 accumulation.
# BN-apply + ReLU ride the spare VALU slots of the MXU-bound matmul.
# ----------------------------------------------------------------------------
def _bn_relu_matmul_kernel(a_ref, b_ref, ss_ref, o_ref, acc_ref, *, apply_relu):
    @pl.when(pl.program_id(2) == 0)
    def _():
        acc_ref[...] = jnp.zeros_like(acc_ref)

    ss = ss_ref[...]                                   # (2, tk) f32
    a = a_ref[...].astype(jnp.float32) * ss[0:1, :] + ss[1:2, :]
    if apply_relu:
        a = jnp.maximum(a, 0.0)
    acc_ref[...] += jnp.dot(a.astype(jnp.bfloat16), b_ref[...],
                            preferred_element_type=jnp.float32)

    @pl.when(pl.program_id(2) == pl.num_programs(2) - 1)
    def _():
        o_ref[...] = acc_ref[...].astype(o_ref.dtype)


def fused_bn_relu_matmul(a, b_padded, ss, *, n_valid, apply_relu,
                         out_dtype=jnp.float32):
    """[relu](a * ss[0] + ss[1]) @ b_padded, returned as (M, n_valid).

    a:        (M, Kp)  bf16 activation (already channel/K padded).
    b_padded: (Kp, Np) bf16 weight matrix, Np a multiple of 128.
    ss:       (2, Kp)  f32; row 0 = per-K scale, row 1 = per-K shift.
    """
    M, Kp = a.shape
    Kp2, Np = b_padded.shape
    assert Kp == Kp2 and Kp % 128 == 0 and Np % 128 == 0

    if M < MIN_ROWS_FOR_PALLAS:
        # Degenerate row counts (2x2 / 1x1 spatial stages): let XLA fuse this
        # with the surrounding glue; a pallas_call would be pure overhead.
        x = a.astype(jnp.float32) * ss[0][None, :] + ss[1][None, :]
        if apply_relu:
            x = jnp.maximum(x, 0.0)
        y = jnp.dot(x.astype(jnp.bfloat16), b_padded,
                    preferred_element_type=jnp.float32)
        return y[:, :n_valid].astype(out_dtype)

    Mp = _round_up(M, 16)
    a_p = a if Mp == M else jnp.pad(a, ((0, Mp - M), (0, 0)))
    tm = _pick_tm(Mp)
    tn = 128
    tk = 256 if Kp % 256 == 0 else 128

    kernel = functools.partial(_bn_relu_matmul_kernel, apply_relu=apply_relu)
    out = pl.pallas_call(
        kernel,
        out_shape=jax.ShapeDtypeStruct((Mp, Np), out_dtype),
        grid_spec=pltpu.PrefetchScalarGridSpec(
            num_scalar_prefetch=0,
            grid=(Mp // tm, Np // tn, Kp // tk),
            in_specs=[pl.BlockSpec((tm, tk), lambda i, j, k: (i, k)),
                      pl.BlockSpec((tk, tn), lambda i, j, k: (k, j)),
                      pl.BlockSpec((2, tk), lambda i, j, k: (0, k))],
            out_specs=pl.BlockSpec((tm, tn), lambda i, j, k: (i, j)),
            scratch_shapes=[pltpu.VMEM((tm, tn), jnp.float32)]),
        compiler_params=pltpu.CompilerParams(
            dimension_semantics=("parallel", "parallel", "arbitrary")),
    )(a_p, b_padded, ss)
    return out[:M, :n_valid]


# ----------------------------------------------------------------------------
# BatchNorm helpers (training-mode batch stats, biased variance, eps=1e-5).
# ----------------------------------------------------------------------------
def _bn_scale_shift(sums, ssqs, count, gamma, beta):
    mean = sums / count
    var = jnp.maximum(ssqs / count - mean * mean, 0.0)
    scale = gamma * lax.rsqrt(var + EPS)
    shift = beta - mean * scale
    return scale, shift


# ----------------------------------------------------------------------------
# Layout glue (XLA): im2col for the stem, kn2row shift-add, pooling.
# ----------------------------------------------------------------------------
def _im2col(x_nhwc, kh, kw, stride, pad):
    n, h, w, c = x_nhwc.shape
    xp = jnp.pad(x_nhwc, ((0, 0), (pad, pad), (pad, pad), (0, 0)))
    ho = (h + 2 * pad - kh) // stride + 1
    wo = (w + 2 * pad - kw) // stride + 1
    patches = []
    for i in range(kh):
        for j in range(kw):
            patches.append(xp[:, i:i + stride * ho:stride,
                               j:j + stride * wo:stride, :])
    cols = jnp.concatenate(patches, axis=-1)           # (n, ho, wo, kh*kw*c)
    return cols.reshape(n * ho * wo, kh * kw * c), (n, ho, wo)


def _kn2row_shift_add(y_taps, n, h, w, bias):
    """Combine the 9 tap outputs of a kn2row 3x3/same conv and add the bias.

    y_taps: (n*h*w, 9*Co) f32, column layout (tap i*3+j, out-channel)."""
    co = bias.shape[0]
    y = y_taps.reshape(n, h, w, 3, 3, co)
    y = jnp.pad(y, ((0, 0), (1, 1), (1, 1), (0, 0), (0, 0), (0, 0)))
    out = jnp.zeros((n, h, w, co), jnp.float32) + bias
    for i in range(3):
        for j in range(3):
            out = out + y[:, i:i + h, j:j + w, i, j, :]
    return out                                          # (n, h, w, co) f32


def maxpool_3x3_s2_p1(x):
    init = jnp.array(-jnp.inf, dtype=x.dtype)
    return lax.reduce_window(x, init, lax.max, (1, 3, 3, 1), (1, 2, 2, 1),
                             ((0, 0), (1, 1), (1, 1), (0, 0)))


def avgpool_2x2(x):
    n, h, w, c = x.shape
    return x.reshape(n, h // 2, 2, w // 2, 2, c).astype(jnp.float32).mean(
        axis=(2, 4))


# ----------------------------------------------------------------------------
# Parameters: deterministic init (matches DenseNet __init__ shapes) and a
# one-time prepare step that reshapes / pads / casts static weights.
# ----------------------------------------------------------------------------
def init_params(key, in_channels=3):
    params = {}
    key_box = [key]

    def nxt():
        key_box[0], sub = jax.random.split(key_box[0])
        return sub

    def conv_init(kh, kw, cin, cout):
        w = 0.05 * jax.random.normal(nxt(), (kh, kw, cin, cout), jnp.float32)
        b = 0.01 * jax.random.normal(nxt(), (cout,), jnp.float32)
        return w, b

    def bn_init(c):
        g = 1.0 + 0.05 * jax.random.normal(nxt(), (c,), jnp.float32)
        b = 0.05 * jax.random.normal(nxt(), (c,), jnp.float32)
        return g, b

    params['stem_conv'] = conv_init(7, 7, in_channels, NUM_CHANNELS)
    params['stem_bn'] = bn_init(NUM_CHANNELS)

    c = NUM_CHANNELS
    for i, ncv in enumerate(ARCH):
        for j in range(ncv):
            cin = c + j * GROWTH
            params[f'blk{i}_c{j}_bn'] = bn_init(cin)
            params[f'blk{i}_c{j}_conv'] = conv_init(3, 3, cin, GROWTH)
        c = c + ncv * GROWTH
        if i != len(ARCH) - 1:
            params[f'trans{i}_bn'] = bn_init(c)
            params[f'trans{i}_conv'] = conv_init(1, 1, c, c // 2)
            c = c // 2

    params['head_bn'] = bn_init(c)
    wl = 0.05 * jax.random.normal(nxt(), (c, NUM_CLASSES), jnp.float32)
    bl = 0.01 * jax.random.normal(nxt(), (NUM_CLASSES,), jnp.float32)
    params['head_fc'] = (wl, bl)
    return params


def prepare_params(params):
    """One-time weight prep: kn2row / im2col layouts, zero-padding, bf16 cast."""
    prep = {}

    def pad2(a, rows, cols, dtype):
        return jnp.pad(a, ((0, rows - a.shape[0]),
                           (0, cols - a.shape[1]))).astype(dtype)

    def pad_bn(g, b):
        return (jnp.pad(g.astype(jnp.float32), (0, CMAX - g.shape[0])),
                jnp.pad(b.astype(jnp.float32), (0, CMAX - b.shape[0])))

    # stem conv (im2col layout; no BN prologue -> identity scale/shift)
    w, b = params['stem_conv']                              # (7,7,cin,64)
    k = w.shape[0] * w.shape[1] * w.shape[2]
    kp = _round_up(k, 128)
    prep['stem_conv_w'] = pad2(w.reshape(k, w.shape[3]), kp,
                               _round_up(w.shape[3], 128), jnp.bfloat16)
    prep['stem_conv_b'] = b.astype(jnp.float32)
    prep['stem_id_ss'] = jnp.stack([jnp.ones((kp,), jnp.float32),
                                    jnp.zeros((kp,), jnp.float32)])
    prep['stem_bn'] = (params['stem_bn'][0].astype(jnp.float32),
                       params['stem_bn'][1].astype(jnp.float32))

    c = NUM_CHANNELS
    for i, ncv in enumerate(ARCH):
        for j in range(ncv):
            prep[f'blk{i}_c{j}_bn'] = pad_bn(*params[f'blk{i}_c{j}_bn'])
            w, b = params[f'blk{i}_c{j}_conv']              # (3,3,cin,GROWTH)
            cin = w.shape[2]
            assert cin <= CMAX
            wk = jnp.transpose(w, (2, 0, 1, 3)).reshape(cin, 9 * GROWTH)
            prep[f'blk{i}_c{j}_conv_w'] = pad2(
                wk, CMAX, _round_up(9 * GROWTH, 128), jnp.bfloat16)
            prep[f'blk{i}_c{j}_conv_b'] = b.astype(jnp.float32)
        c = c + ncv * GROWTH
        if i != len(ARCH) - 1:
            prep[f'trans{i}_bn'] = pad_bn(*params[f'trans{i}_bn'])
            w, b = params[f'trans{i}_conv']                 # (1,1,c,c//2)
            assert c <= CMAX
            prep[f'trans{i}_conv_w'] = pad2(w.reshape(c, c // 2), CMAX,
                                            _round_up(c // 2, 128),
                                            jnp.bfloat16)
            prep[f'trans{i}_conv_b'] = b.astype(jnp.float32)
            c = c // 2
    prep['head_bn'] = pad_bn(*params['head_bn'])
    wl, bl = params['head_fc']
    prep['head_fc'] = (wl.astype(jnp.float32), bl.astype(jnp.float32))
    return prep


# ----------------------------------------------------------------------------
# Full forward pass (jit-compiled so all layout glue fuses in XLA).
# ----------------------------------------------------------------------------
def densenet_forward(x_nchw, prep):
    n = x_nchw.shape[0]
    x = jnp.transpose(x_nchw, (0, 2, 3, 1)).astype(jnp.bfloat16)    # NHWC

    # stem: conv7x7/s2/p3 (im2col, no prologue) -> BN -> ReLU -> maxpool3x3/s2
    cols, (_, ho, wo) = _im2col(x, 7, 7, 2, 3)
    kp = prep['stem_conv_w'].shape[0]
    cols = jnp.pad(cols, ((0, 0), (0, kp - cols.shape[1])))
    y = fused_bn_relu_matmul(cols, prep['stem_conv_w'], prep['stem_id_ss'],
                             n_valid=NUM_CHANNELS, apply_relu=False)
    y = y + prep['stem_conv_b']                                      # (R,64) f32
    r = y.shape[0]
    g, be = prep['stem_bn']
    scale, shift = _bn_scale_shift(jnp.sum(y, 0), jnp.sum(y * y, 0), r, g, be)
    y = jnp.maximum(y * scale + shift, 0.0)
    x = maxpool_3x3_s2_p1(y.reshape(n, ho, wo, NUM_CHANNELS).astype(jnp.bfloat16))

    head_buf = head_sums = head_ssqs = None
    head_r = head_c = 0
    head_hw = (1, 1)

    for bi, ncv in enumerate(ARCH):
        _, h, w, c0 = x.shape
        r = n * h * w
        xr = x.reshape(r, c0)
        x2 = xr.astype(jnp.float32)
        # Preallocated, already-K-padded concat buffer + cached f32 stats.
        buf = jnp.zeros((r, CMAX), jnp.bfloat16).at[:, :c0].set(xr)
        sums = jnp.zeros((CMAX,), jnp.float32).at[:c0].set(jnp.sum(x2, 0))
        ssqs = jnp.zeros((CMAX,), jnp.float32).at[:c0].set(jnp.sum(x2 * x2, 0))
        c_cur = c0

        for j in range(ncv):
            g, be = prep[f'blk{bi}_c{j}_bn']
            scale, shift = _bn_scale_shift(sums, ssqs, r, g, be)
            y_taps = fused_bn_relu_matmul(
                buf, prep[f'blk{bi}_c{j}_conv_w'], jnp.stack([scale, shift]),
                n_valid=9 * GROWTH, apply_relu=True)                 # (r, 288)
            ynew = _kn2row_shift_add(y_taps, n, h, w,
                                     prep[f'blk{bi}_c{j}_conv_b'])
            y2 = ynew.reshape(r, GROWTH)                             # f32
            sums = sums.at[c_cur:c_cur + GROWTH].set(jnp.sum(y2, 0))
            ssqs = ssqs.at[c_cur:c_cur + GROWTH].set(jnp.sum(y2 * y2, 0))
            buf = buf.at[:, c_cur:c_cur + GROWTH].set(y2.astype(jnp.bfloat16))
            c_cur += GROWTH

        if bi != len(ARCH) - 1:
            # transition: BN -> ReLU -> conv1x1 (fused) -> avgpool2x2
            g, be = prep[f'trans{bi}_bn']
            scale, shift = _bn_scale_shift(sums, ssqs, r, g, be)
            c_half = c_cur // 2
            t = fused_bn_relu_matmul(
                buf, prep[f'trans{bi}_conv_w'], jnp.stack([scale, shift]),
                n_valid=c_half, apply_relu=True)
            t = (t + prep[f'trans{bi}_conv_b']).reshape(n, h, w, c_half)
            x = avgpool_2x2(t).astype(jnp.bfloat16)
        else:
            head_buf, head_sums, head_ssqs = buf, sums, ssqs
            head_r, head_c, head_hw = r, c_cur, (h, w)

    # head: BN -> ReLU -> global avg pool -> flatten -> linear (tiny; plain XLA)
    g, be = prep['head_bn']
    scale, shift = _bn_scale_shift(head_sums, head_ssqs, head_r, g, be)
    hfeat = jnp.maximum(head_buf.astype(jnp.float32) * scale + shift, 0.0)
    hfeat = hfeat[:, :head_c].reshape(n, head_hw[0], head_hw[1], head_c)
    hfeat = hfeat.mean(axis=(1, 2))                                  # (n, C)
    wl, bl = prep['head_fc']
    return hfeat @ wl + bl


if __name__ == "__main__":
    key = jax.random.PRNGKey(0)
    k_x, k_p = jax.random.split(key)
    # 32x32 keeps every pooling stage of this architecture non-degenerate.
    x = jax.random.normal(k_x, (2, 3, 32, 32), dtype=jnp.float32)    # NCHW
    params = init_params(k_p, in_channels=3)
    prep = prepare_params(params)

    fwd = jax.jit(densenet_forward)
    logits = jax.block_until_ready(fwd(x, prep))
    assert logits.shape == (2, NUM_CLASSES), logits.shape
    assert bool(jnp.all(jnp.isfinite(logits)))
    print("KERNEL_OK")
</pallas_src>

<mosaic_0001>
module attributes {stable_mosaic.version = 11 : i64} {
  func.func @_bn_relu_matmul_kernel(%arg0: i32, %arg1: i32, %arg2: i32, %arg3: memref<128x256xbf16, #tpu.memory_space<vmem>>, %arg4: memref<256x128xbf16, #tpu.memory_space<vmem>>, %arg5: memref<2x256xf32, #tpu.memory_space<vmem>>, %arg6: memref<128x128xf32, #tpu.memory_space<vmem>>, %arg7: memref<128x128xf32, #tpu.memory_space<vmem>>) attributes {dimension_semantics = [#tpu.dimension_semantics<parallel>, #tpu.dimension_semantics<parallel>, #tpu.dimension_semantics<arbitrary>], iteration_bounds = array<i64: 4, 1, 1>, scalar_prefetch = 0 : i64, scratch_operands = 1 : i64, tpu.core_type = #tpu.core_type<tc>, window_params = [{transform_indices = @transform_0, window_bounds = array<i64: 128, 256>}, {transform_indices = @transform_1, window_bounds = array<i64: 256, 128>}, {transform_indices = @transform_2, window_bounds = array<i64: 2, 256>}, {transform_indices = @transform_3, window_bounds = array<i64: 128, 128>}]} {
    %c0_i32 = arith.constant 0 : i32
    %0 = arith.cmpi eq, %arg2, %c0_i32 : i32
    %1 = arith.extui %0 : i1 to i32
    %c0_i32_0 = arith.constant 0 : i32
    %2 = arith.cmpi ne, %1, %c0_i32_0 : i32
    scf.if %2 {
      %cst_12 = arith.constant 0.000000e+00 : f32
      %21 = vector.broadcast %cst_12 : f32 to vector<128x128xf32>
      %c0_13 = arith.constant 0 : index
      %c0_14 = arith.constant 0 : index
      %22 = vector.load %arg7[%c0_13, %c0_14] : memref<128x128xf32, #tpu.memory_space<vmem>>, vector<128x128xf32>
      tpu.vector_store %arg7[%c0_13, %c0_14], %21 {strides = array<i32>} : memref<128x128xf32, #tpu.memory_space<vmem>>, vector<128x128xf32>,
    } else {
    }
    %c0 = arith.constant 0 : index
    %c0_1 = arith.constant 0 : index
    %3 = vector.load %arg5[%c0, %c0_1] : memref<2x256xf32, #tpu.memory_space<vmem>>, vector<2x256xf32>
    %c0_2 = arith.constant 0 : index
    %c0_3 = arith.constant 0 : index
    %4 = vector.load %arg3[%c0_2, %c0_3] : memref<128x256xbf16, #tpu.memory_space<vmem>>, vector<128x256xbf16>
    %5 = arith.extf %4 : vector<128x256xbf16> to vector<128x256xf32>
    %6 = vector.extract_strided_slice %3 {offsets = [0, 0], sizes = [1, 256], strides = [1, 1]} : vector<2x256xf32> to vector<1x256xf32>
    %7 = vector.broadcast %6 : vector<1x256xf32> to vector<128x256xf32>
    %8 = arith.mulf %5, %7 : vector<128x256xf32>
    %9 = vector.extract_strided_slice %3 {offsets = [1, 0], sizes = [1, 256], strides = [1, 1]} : vector<2x256xf32> to vector<1x256xf32>
    %10 = vector.broadcast %9 : vector<1x256xf32> to vector<128x256xf32>
    %11 = arith.addf %8, %10 : vector<128x256xf32>
    %c0_4 = arith.constant 0 : index
    %c0_5 = arith.constant 0 : index
    %12 = vector.load %arg7[%c0_4, %c0_5] : memref<128x128xf32, #tpu.memory_space<vmem>>, vector<128x128xf32>
    %13 = arith.truncf %11 : vector<128x256xf32> to vector<128x256xbf16>
    %c0_6 = arith.constant 0 : index
    %c0_7 = arith.constant 0 : index
    %14 = vector.load %arg4[%c0_6, %c0_7] : memref<256x128xbf16, #tpu.memory_space<vmem>>, vector<256x128xbf16>
    %cst = arith.constant dense<0.000000e+00> : vector<128x128xf32>
    %15 = tpu.matmul %13, %14, %cst {dimension_numbers = #tpu.dot_dimension_numbers<[1], [0], [0], [1], [0, 0, 1, 1], [], []>} : vector<128x256xbf16>, vector<256x128xbf16>, vector<128x128xf32> -> vector<128x128xf32>
    %16 = arith.addf %12, %15 : vector<128x128xf32>
    %c0_8 = arith.constant 0 : index
    %c0_9 = arith.constant 0 : index
    %17 = vector.load %arg7[%c0_8, %c0_9] : memref<128x128xf32, #tpu.memory_space<vmem>>, vector<128x128xf32>
    tpu.vector_store %arg7[%c0_8, %c0_9], %16 {strides = array<i32>} : memref<128x128xf32, #tpu.memory_space<vmem>>, vector<128x128xf32>,
    %c0_i32_10 = arith.constant 0 : i32
    %18 = arith.cmpi eq, %arg2, %c0_i32_10 : i32
    %19 = arith.extui %18 : i1 to i32
    %c0_i32_11 = arith.constant 0 : i32
    %20 = arith.cmpi ne, %19, %c0_i32_11 : i32
    scf.if %20 {
      %c0_12 = arith.constant 0 : index
      %c0_13 = arith.constant 0 : index
      %21 = vector.load %arg7[%c0_12, %c0_13] : memref<128x128xf32, #tpu.memory_space<vmem>>, vector<128x128xf32>
      %c0_14 = arith.constant 0 : index
      %c0_15 = arith.constant 0 : index
      %22 = vector.load %arg6[%c0_14, %c0_15] : memref<128x128xf32, #tpu.memory_space<vmem>>, vector<128x128xf32>
      tpu.vector_store %arg6[%c0_14, %c0_15], %21 {strides = array<i32>} : memref<128x128xf32, #tpu.memory_space<vmem>>, vector<128x128xf32>,
    } else {
    }
    return
  }
  func.func @transform_0(%arg0: i32, %arg1: i32, %arg2: i32) -> (i32, i32) {
    %c0_i32 = arith.constant 0 : i32
    return %arg0, %arg2 : i32, i32
  }
  func.func @transform_1(%arg0: i32, %arg1: i32, %arg2: i32) -> (i32, i32) {
    %c0_i32 = arith.constant 0 : i32
    return %arg2, %arg1 : i32, i32
  }
  func.func @transform_2(%arg0: i32, %arg1: i32, %arg2: i32) -> (i32, i32) {
    %c0_i32 = arith.constant 0 : i32
    %c0_i32_0 = arith.constant 0 : i32
    return %c0_i32, %arg2 : i32, i32
  }
  func.func @transform_3(%arg0: i32, %arg1: i32, %arg2: i32) -> (i32, i32) {
    %c0_i32 = arith.constant 0 : i32
    return %arg0, %arg1 : i32, i32
  }
}

module attributes {stable_mosaic.version = 11 : i64} {
  func.func @_bn_relu_matmul_kernel(%arg0: i32, %arg1: i32, %arg2: i32, %arg3: memref<64x256xbf16, #tpu.memory_space<vmem>>, %arg4: memref<256x128xbf16, #tpu.memory_space<vmem>>, %arg5: memref<2x256xf32, #tpu.memory_space<vmem>>, %arg6: memref<64x128xf32, #tpu.memory_space<vmem>>, %arg7: memref<64x128xf32, #tpu.memory_space<vmem>>) attributes {dimension_semantics = [#tpu.dimension_semantics<parallel>, #tpu.dimension_semantics<parallel>, #tpu.dimension_semantics<arbitrary>], iteration_bounds = array<i64: 2, 3, 1>, scalar_prefetch = 0 : i64, scratch_operands = 1 : i64, tpu.core_type = #tpu.core_type<tc>, window_params = [{transform_indices = @transform_0, window_bounds = array<i64: 64, 256>}, {transform_indices = @transform_1, window_bounds = array<i64: 256, 128>}, {transform_indices = @transform_2, window_bounds = array<i64: 2, 256>}, {transform_indices = @transform_3, window_bounds = array<i64: 64, 128>}]} {
    %c0_i32 = arith.constant 0 : i32
    %0 = arith.cmpi eq, %arg2, %c0_i32 : i32
    %1 = arith.extui %0 : i1 to i32
    %c0_i32_0 = arith.constant 0 : i32
    %2 = arith.cmpi ne, %1, %c0_i32_0 : i32
    scf.if %2 {
      %cst_13 = arith.constant 0.000000e+00 : f32
      %23 = vector.broadcast %cst_13 : f32 to vector<64x128xf32>
      %c0_14 = arith.constant 0 : index
      %c0_15 = arith.constant 0 : index
      %24 = vector.load %arg7[%c0_14, %c0_15] : memref<64x128xf32, #tpu.memory_space<vmem>>, vector<64x128xf32>
      tpu.vector_store %arg7[%c0_14, %c0_15], %23 {strides = array<i32>} : memref<64x128xf32, #tpu.memory_space<vmem>>, vector<64x128xf32>,
    } else {
    }
    %c0 = arith.constant 0 : index
    %c0_1 = arith.constant 0 : index
    %3 = vector.load %arg5[%c0, %c0_1] : memref<2x256xf32, #tpu.memory_space<vmem>>, vector<2x256xf32>
    %c0_2 = arith.constant 0 : index
    %c0_3 = arith.constant 0 : index
    %4 = vector.load %arg3[%c0_2, %c0_3] : memref<64x256xbf16, #tpu.memory_space<vmem>>, vector<64x256xbf16>
    %5 = arith.extf %4 : vector<64x256xbf16> to vector<64x256xf32>
    %6 = vector.extract_strided_slice %3 {offsets = [0, 0], sizes = [1, 256], strides = [1, 1]} : vector<2x256xf32> to vector<1x256xf32>
    %7 = vector.broadcast %6 : vector<1x256xf32> to vector<64x256xf32>
    %8 = arith.mulf %5, %7 : vector<64x256xf32>
    %9 = vector.extract_strided_slice %3 {offsets = [1, 0], sizes = [1, 256], strides = [1, 1]} : vector<2x256xf32> to vector<1x256xf32>
    %10 = vector.broadcast %9 : vector<1x256xf32> to vector<64x256xf32>
    %11 = arith.addf %8, %10 : vector<64x256xf32>
    %cst = arith.constant 0.000000e+00 : f32
    %12 = vector.broadcast %cst : f32 to vector<64x256xf32>
    %13 = arith.maximumf %11, %12 : vector<64x256xf32>
    %c0_4 = arith.constant 0 : index
    %c0_5 = arith.constant 0 : index
    %14 = vector.load %arg7[%c0_4, %c0_5] : memref<64x128xf32, #tpu.memory_space<vmem>>, vector<64x128xf32>
    %15 = arith.truncf %13 : vector<64x256xf32> to vector<64x256xbf16>
    %c0_6 = arith.constant 0 : index
    %c0_7 = arith.constant 0 : index
    %16 = vector.load %arg4[%c0_6, %c0_7] : memref<256x128xbf16, #tpu.memory_space<vmem>>, vector<256x128xbf16>
    %cst_8 = arith.constant dense<0.000000e+00> : vector<64x128xf32>
    %17 = tpu.matmul %15, %16, %cst_8 {dimension_numbers = #tpu.dot_dimension_numbers<[1], [0], [0], [1], [0, 0, 1, 1], [], []>} : vector<64x256xbf16>, vector<256x128xbf16>, vector<64x128xf32> -> vector<64x128xf32>
    %18 = arith.addf %14, %17 : vector<64x128xf32>
    %c0_9 = arith.constant 0 : index
    %c0_10 = arith.constant 0 : index
    %19 = vector.load %arg7[%c0_9, %c0_10] : memref<64x128xf32, #tpu.memory_space<vmem>>, vector<64x128xf32>
    tpu.vector_store %arg7[%c0_9, %c0_10], %18 {strides = array<i32>} : memref<64x128xf32, #tpu.memory_space<vmem>>, vector<64x128xf32>,
    %c0_i32_11 = arith.constant 0 : i32
    %20 = arith.cmpi eq, %arg2, %c0_i32_11 : i32
    %21 = arith.extui %20 : i1 to i32
    %c0_i32_12 = arith.constant 0 : i32
    %22 = arith.cmpi ne, %21, %c0_i32_12 : i32
    scf.if %22 {
      %c0_13 = arith.constant 0 : index
      %c0_14 = arith.constant 0 : index
      %23 = vector.load %arg7[%c0_13, %c0_14] : memref<64x128xf32, #tpu.memory_space<vmem>>, vector<64x128xf32>
      %c0_15 = arith.constant 0 : index
      %c0_16 = arith.constant 0 : index
      %24 = vector.load %arg6[%c0_15, %c0_16] : memref<64x128xf32, #tpu.memory_space<vmem>>, vector<64x128xf32>
      tpu.vector_store %arg6[%c0_15, %c0_16], %23 {strides = array<i32>} : memref<64x128xf32, #tpu.memory_space<vmem>>, vector<64x128xf32>,
    } else {
    }
    return
  }
  func.func @transform_0(%arg0: i32, %arg1: i32, %arg2: i32) -> (i32, i32) {
    %c0_i32 = arith.constant 0 : i32
    return %arg0, %arg2 : i32, i32
  }
  func.func @transform_1(%arg0: i32, %arg1: i32, %arg2: i32) -> (i32, i32) {
    %c0_i32 = arith.constant 0 : i32
    return %arg2, %arg1 : i32, i32
  }
  func.func @transform_2(%arg0: i32, %arg1: i32, %arg2: i32) -> (i32, i32) {
    %c0_i32 = arith.constant 0 : i32
    %c0_i32_0 = arith.constant 0 : i32
    return %c0_i32, %arg2 : i32, i32
  }
  func.func @transform_3(%arg0: i32, %arg1: i32, %arg2: i32) -> (i32, i32) {
    %c0_i32 = arith.constant 0 : i32
    return %arg0, %arg1 : i32, i32
  }
}

module attributes {stable_mosaic.version = 11 : i64} {
  func.func @_bn_relu_matmul_kernel(%arg0: i32, %arg1: i32, %arg2: i32, %arg3: memref<64x256xbf16, #tpu.memory_space<vmem>>, %arg4: memref<256x128xbf16, #tpu.memory_space<vmem>>, %arg5: memref<2x256xf32, #tpu.memory_space<vmem>>, %arg6: memref<64x128xf32, #tpu.memory_space<vmem>>, %arg7: memref<64x128xf32, #tpu.memory_space<vmem>>) attributes {dimension_semantics = [#tpu.dimension_semantics<parallel>, #tpu.dimension_semantics<parallel>, #tpu.dimension_semantics<arbitrary>], iteration_bounds = array<i64: 2, 1, 1>, scalar_prefetch = 0 : i64, scratch_operands = 1 : i64, tpu.core_type = #tpu.core_type<tc>, window_params = [{transform_indices = @transform_0, window_bounds = array<i64: 64, 256>}, {transform_indices = @transform_1, window_bounds = array<i64: 256, 128>}, {transform_indices = @transform_2, window_bounds = array<i64: 2, 256>}, {transform_indices = @transform_3, window_bounds = array<i64: 64, 128>}]} {
    %c0_i32 = arith.constant 0 : i32
    %0 = arith.cmpi eq, %arg2, %c0_i32 : i32
    %1 = arith.extui %0 : i1 to i32
    %c0_i32_0 = arith.constant 0 : i32
    %2 = arith.cmpi ne, %1, %c0_i32_0 : i32
    scf.if %2 {
      %cst_13 = arith.constant 0.000000e+00 : f32
      %23 = vector.broadcast %cst_13 : f32 to vector<64x128xf32>
      %c0_14 = arith.constant 0 : index
      %c0_15 = arith.constant 0 : index
      %24 = vector.load %arg7[%c0_14, %c0_15] : memref<64x128xf32, #tpu.memory_space<vmem>>, vector<64x128xf32>
      tpu.vector_store %arg7[%c0_14, %c0_15], %23 {strides = array<i32>} : memref<64x128xf32, #tpu.memory_space<vmem>>, vector<64x128xf32>,
    } else {
    }
    %c0 = arith.constant 0 : index
    %c0_1 = arith.constant 0 : index
    %3 = vector.load %arg5[%c0, %c0_1] : memref<2x256xf32, #tpu.memory_space<vmem>>, vector<2x256xf32>
    %c0_2 = arith.constant 0 : index
    %c0_3 = arith.constant 0 : index
    %4 = vector.load %arg3[%c0_2, %c0_3] : memref<64x256xbf16, #tpu.memory_space<vmem>>, vector<64x256xbf16>
    %5 = arith.extf %4 : vector<64x256xbf16> to vector<64x256xf32>
    %6 = vector.extract_strided_slice %3 {offsets = [0, 0], sizes = [1, 256], strides = [1, 1]} : vector<2x256xf32> to vector<1x256xf32>
    %7 = vector.broadcast %6 : vector<1x256xf32> to vector<64x256xf32>
    %8 = arith.mulf %5, %7 : vector<64x256xf32>
    %9 = vector.extract_strided_slice %3 {offsets = [1, 0], sizes = [1, 256], strides = [1, 1]} : vector<2x256xf32> to vector<1x256xf32>
    %10 = vector.broadcast %9 : vector<1x256xf32> to vector<64x256xf32>
    %11 = arith.addf %8, %10 : vector<64x256xf32>
    %cst = arith.constant 0.000000e+00 : f32
    %12 = vector.broadcast %cst : f32 to vector<64x256xf32>
    %13 = arith.maximumf %11, %12 : vector<64x256xf32>
    %c0_4 = arith.constant 0 : index
    %c0_5 = arith.constant 0 : index
    %14 = vector.load %arg7[%c0_4, %c0_5] : memref<64x128xf32, #tpu.memory_space<vmem>>, vector<64x128xf32>
    %15 = arith.truncf %13 : vector<64x256xf32> to vector<64x256xbf16>
    %c0_6 = arith.constant 0 : index
    %c0_7 = arith.constant 0 : index
    %16 = vector.load %arg4[%c0_6, %c0_7] : memref<256x128xbf16, #tpu.memory_space<vmem>>, vector<256x128xbf16>
    %cst_8 = arith.constant dense<0.000000e+00> : vector<64x128xf32>
    %17 = tpu.matmul %15, %16, %cst_8 {dimension_numbers = #tpu.dot_dimension_numbers<[1], [0], [0], [1], [0, 0, 1, 1], [], []>} : vector<64x256xbf16>, vector<256x128xbf16>, vector<64x128xf32> -> vector<64x128xf32>
    %18 = arith.addf %14, %17 : vector<64x128xf32>
    %c0_9 = arith.constant 0 : index
    %c0_10 = arith.constant 0 : index
    %19 = vector.load %arg7[%c0_9, %c0_10] : memref<64x128xf32, #tpu.memory_space<vmem>>, vector<64x128xf32>
    tpu.vector_store %arg7[%c0_9, %c0_10], %18 {strides = array<i32>} : memref<64x128xf32, #tpu.memory_space<vmem>>, vector<64x128xf32>,
    %c0_i32_11 = arith.constant 0 : i32
    %20 = arith.cmpi eq, %arg2, %c0_i32_11 : i32
    %21 = arith.extui %20 : i1 to i32
    %c0_i32_12 = arith.constant 0 : i32
    %22 = arith.cmpi ne, %21, %c0_i32_12 : i32
    scf.if %22 {
      %c0_13 = arith.constant 0 : index
      %c0_14 = arith.constant 0 : index
      %23 = vector.load %arg7[%c0_13, %c0_14] : memref<64x128xf32, #tpu.memory_space<vmem>>, vector<64x128xf32>
      %c0_15 = arith.constant 0 : index
      %c0_16 = arith.constant 0 : index
      %24 = vector.load %arg6[%c0_15, %c0_16] : memref<64x128xf32, #tpu.memory_space<vmem>>, vector<64x128xf32>
      tpu.vector_store %arg6[%c0_15, %c0_16], %23 {strides = array<i32>} : memref<64x128xf32, #tpu.memory_space<vmem>>, vector<64x128xf32>,
    } else {
    }
    return
  }
  func.func @transform_0(%arg0: i32, %arg1: i32, %arg2: i32) -> (i32, i32) {
    %c0_i32 = arith.constant 0 : i32
    return %arg0, %arg2 : i32, i32
  }
  func.func @transform_1(%arg0: i32, %arg1: i32, %arg2: i32) -> (i32, i32) {
    %c0_i32 = arith.constant 0 : i32
    return %arg2, %arg1 : i32, i32
  }
  func.func @transform_2(%arg0: i32, %arg1: i32, %arg2: i32) -> (i32, i32) {
    %c0_i32 = arith.constant 0 : i32
    %c0_i32_0 = arith.constant 0 : i32
    return %c0_i32, %arg2 : i32, i32
  }
  func.func @transform_3(%arg0: i32, %arg1: i32, %arg2: i32) -> (i32, i32) {
    %c0_i32 = arith.constant 0 : i32
    return %arg0, %arg1 : i32, i32
  }
}

module attributes {stable_mosaic.version = 11 : i64} {
  func.func @_bn_relu_matmul_kernel(%arg0: i32, %arg1: i32, %arg2: i32, %arg3: memref<16x256xbf16, #tpu.memory_space<vmem>>, %arg4: memref<256x128xbf16, #tpu.memory_space<vmem>>, %arg5: memref<2x256xf32, #tpu.memory_space<vmem>>, %arg6: memref<16x128xf32, #tpu.memory_space<vmem>>, %arg7: memref<16x128xf32, #tpu.memory_space<vmem>>) attributes {dimension_semantics = [#tpu.dimension_semantics<parallel>, #tpu.dimension_semantics<parallel>, #tpu.dimension_semantics<arbitrary>], iteration_bounds = array<i64: 2, 3, 1>, scalar_prefetch = 0 : i64, scratch_operands = 1 : i64, tpu.core_type = #tpu.core_type<tc>, window_params = [{transform_indices = @transform_0, window_bounds = array<i64: 16, 256>}, {transform_indices = @transform_1, window_bounds = array<i64: 256, 128>}, {transform_indices = @transform_2, window_bounds = array<i64: 2, 256>}, {transform_indices = @transform_3, window_bounds = array<i64: 16, 128>}]} {
    %c0_i32 = arith.constant 0 : i32
    %0 = arith.cmpi eq, %arg2, %c0_i32 : i32
    %1 = arith.extui %0 : i1 to i32
    %c0_i32_0 = arith.constant 0 : i32
    %2 = arith.cmpi ne, %1, %c0_i32_0 : i32
    scf.if %2 {
      %cst_13 = arith.constant 0.000000e+00 : f32
      %23 = vector.broadcast %cst_13 : f32 to vector<16x128xf32>
      %c0_14 = arith.constant 0 : index
      %c0_15 = arith.constant 0 : index
      %24 = vector.load %arg7[%c0_14, %c0_15] : memref<16x128xf32, #tpu.memory_space<vmem>>, vector<16x128xf32>
      tpu.vector_store %arg7[%c0_14, %c0_15], %23 {strides = array<i32>} : memref<16x128xf32, #tpu.memory_space<vmem>>, vector<16x128xf32>,
    } else {
    }
    %c0 = arith.constant 0 : index
    %c0_1 = arith.constant 0 : index
    %3 = vector.load %arg5[%c0, %c0_1] : memref<2x256xf32, #tpu.memory_space<vmem>>, vector<2x256xf32>
    %c0_2 = arith.constant 0 : index
    %c0_3 = arith.constant 0 : index
    %4 = vector.load %arg3[%c0_2, %c0_3] : memref<16x256xbf16, #tpu.memory_space<vmem>>, vector<16x256xbf16>
    %5 = arith.extf %4 : vector<16x256xbf16> to vector<16x256xf32>
    %6 = vector.extract_strided_slice %3 {offsets = [0, 0], sizes = [1, 256], strides = [1, 1]} : vector<2x256xf32> to vector<1x256xf32>
    %7 = vector.broadcast %6 : vector<1x256xf32> to vector<16x256xf32>
    %8 = arith.mulf %5, %7 : vector<16x256xf32>
    %9 = vector.extract_strided_slice %3 {offsets = [1, 0], sizes = [1, 256], strides = [1, 1]} : vector<2x256xf32> to vector<1x256xf32>
    %10 = vector.broadcast %9 : vector<1x256xf32> to vector<16x256xf32>
    %11 = arith.addf %8, %10 : vector<16x256xf32>
    %cst = arith.constant 0.000000e+00 : f32
    %12 = vector.broadcast %cst : f32 to vector<16x256xf32>
    %13 = arith.maximumf %11, %12 : vector<16x256xf32>
    %c0_4 = arith.constant 0 : index
    %c0_5 = arith.constant 0 : index
    %14 = vector.load %arg7[%c0_4, %c0_5] : memref<16x128xf32, #tpu.memory_space<vmem>>, vector<16x128xf32>
    %15 = arith.truncf %13 : vector<16x256xf32> to vector<16x256xbf16>
    %c0_6 = arith.constant 0 : index
    %c0_7 = arith.constant 0 : index
    %16 = vector.load %arg4[%c0_6, %c0_7] : memref<256x128xbf16, #tpu.memory_space<vmem>>, vector<256x128xbf16>
    %cst_8 = arith.constant dense<0.000000e+00> : vector<16x128xf32>
    %17 = tpu.matmul %15, %16, %cst_8 {dimension_numbers = #tpu.dot_dimension_numbers<[1], [0], [0], [1], [0, 0, 1, 1], [], []>} : vector<16x256xbf16>, vector<256x128xbf16>, vector<16x128xf32> -> vector<16x128xf32>
    %18 = arith.addf %14, %17 : vector<16x128xf32>
    %c0_9 = arith.constant 0 : index
    %c0_10 = arith.constant 0 : index
    %19 = vector.load %arg7[%c0_9, %c0_10] : memref<16x128xf32, #tpu.memory_space<vmem>>, vector<16x128xf32>
    tpu.vector_store %arg7[%c0_9, %c0_10], %18 {strides = array<i32>} : memref<16x128xf32, #tpu.memory_space<vmem>>, vector<16x128xf32>,
    %c0_i32_11 = arith.constant 0 : i32
    %20 = arith.cmpi eq, %arg2, %c0_i32_11 : i32
    %21 = arith.extui %20 : i1 to i32
    %c0_i32_12 = arith.constant 0 : i32
    %22 = arith.cmpi ne, %21, %c0_i32_12 : i32
    scf.if %22 {
      %c0_13 = arith.constant 0 : index
      %c0_14 = arith.constant 0 : index
      %23 = vector.load %arg7[%c0_13, %c0_14] : memref<16x128xf32, #tpu.memory_space<vmem>>, vector<16x128xf32>
      %c0_15 = arith.constant 0 : index
      %c0_16 = arith.constant 0 : index
      %24 = vector.load %arg6[%c0_15, %c0_16] : memref<16x128xf32, #tpu.memory_space<vmem>>, vector<16x128xf32>
      tpu.vector_store %arg6[%c0_15, %c0_16], %23 {strides = array<i32>} : memref<16x128xf32, #tpu.memory_space<vmem>>, vector<16x128xf32>,
    } else {
    }
    return
  }
  func.func @transform_0(%arg0: i32, %arg1: i32, %arg2: i32) -> (i32, i32) {
    %c0_i32 = arith.constant 0 : i32
    return %arg0, %arg2 : i32, i32
  }
  func.func @transform_1(%arg0: i32, %arg1: i32, %arg2: i32) -> (i32, i32) {
    %c0_i32 = arith.constant 0 : i32
    return %arg2, %arg1 : i32, i32
  }
  func.func @transform_2(%arg0: i32, %arg1: i32, %arg2: i32) -> (i32, i32) {
    %c0_i32 = arith.constant 0 : i32
    %c0_i32_0 = arith.constant 0 : i32
    return %c0_i32, %arg2 : i32, i32
  }
  func.func @transform_3(%arg0: i32, %arg1: i32, %arg2: i32) -> (i32, i32) {
    %c0_i32 = arith.constant 0 : i32
    return %arg0, %arg1 : i32, i32
  }
}

module attributes {stable_mosaic.version = 11 : i64} {
  func.func @_bn_relu_matmul_kernel(%arg0: i32, %arg1: i32, %arg2: i32, %arg3: memref<16x256xbf16, #tpu.memory_space<vmem>>, %arg4: memref<256x128xbf16, #tpu.memory_space<vmem>>, %arg5: memref<2x256xf32, #tpu.memory_space<vmem>>, %arg6: memref<16x128xf32, #tpu.memory_space<vmem>>, %arg7: memref<16x128xf32, #tpu.memory_space<vmem>>) attributes {dimension_semantics = [#tpu.dimension_semantics<parallel>, #tpu.dimension_semantics<parallel>, #tpu.dimension_semantics<arbitrary>], iteration_bounds = array<i64: 2, 1, 1>, scalar_prefetch = 0 : i64, scratch_operands = 1 : i64, tpu.core_type = #tpu.core_type<tc>, window_params = [{transform_indices = @transform_0, window_bounds = array<i64: 16, 256>}, {transform_indices = @transform_1, window_bounds = array<i64: 256, 128>}, {transform_indices = @transform_2, window_bounds = array<i64: 2, 256>}, {transform_indices = @transform_3, window_bounds = array<i64: 16, 128>}]} {
    %c0_i32 = arith.constant 0 : i32
    %0 = arith.cmpi eq, %arg2, %c0_i32 : i32
    %1 = arith.extui %0 : i1 to i32
    %c0_i32_0 = arith.constant 0 : i32
    %2 = arith.cmpi ne, %1, %c0_i32_0 : i32
    scf.if %2 {
      %cst_13 = arith.constant 0.000000e+00 : f32
      %23 = vector.broadcast %cst_13 : f32 to vector<16x128xf32>
      %c0_14 = arith.constant 0 : index
      %c0_15 = arith.constant 0 : index
      %24 = vector.load %arg7[%c0_14, %c0_15] : memref<16x128xf32, #tpu.memory_space<vmem>>, vector<16x128xf32>
      tpu.vector_store %arg7[%c0_14, %c0_15], %23 {strides = array<i32>} : memref<16x128xf32, #tpu.memory_space<vmem>>, vector<16x128xf32>,
    } else {
    }
    %c0 = arith.constant 0 : index
    %c0_1 = arith.constant 0 : index
    %3 = vector.load %arg5[%c0, %c0_1] : memref<2x256xf32, #tpu.memory_space<vmem>>, vector<2x256xf32>
    %c0_2 = arith.constant 0 : index
    %c0_3 = arith.constant 0 : index
    %4 = vector.load %arg3[%c0_2, %c0_3] : memref<16x256xbf16, #tpu.memory_space<vmem>>, vector<16x256xbf16>
    %5 = arith.extf %4 : vector<16x256xbf16> to vector<16x256xf32>
    %6 = vector.extract_strided_slice %3 {offsets = [0, 0], sizes = [1, 256], strides = [1, 1]} : vector<2x256xf32> to vector<1x256xf32>
    %7 = vector.broadcast %6 : vector<1x256xf32> to vector<16x256xf32>
    %8 = arith.mulf %5, %7 : vector<16x256xf32>
    %9 = vector.extract_strided_slice %3 {offsets = [1, 0], sizes = [1, 256], strides = [1, 1]} : vector<2x256xf32> to vector<1x256xf32>
    %10 = vector.broadcast %9 : vector<1x256xf32> to vector<16x256xf32>
    %11 = arith.addf %8, %10 : vector<16x256xf32>
    %cst = arith.constant 0.000000e+00 : f32
    %12 = vector.broadcast %cst : f32 to vector<16x256xf32>
    %13 = arith.maximumf %11, %12 : vector<16x256xf32>
    %c0_4 = arith.constant 0 : index
    %c0_5 = arith.constant 0 : index
    %14 = vector.load %arg7[%c0_4, %c0_5] : memref<16x128xf32, #tpu.memory_space<vmem>>, vector<16x128xf32>
    %15 = arith.truncf %13 : vector<16x256xf32> to vector<16x256xbf16>
    %c0_6 = arith.constant 0 : index
    %c0_7 = arith.constant 0 : index
    %16 = vector.load %arg4[%c0_6, %c0_7] : memref<256x128xbf16, #tpu.memory_space<vmem>>, vector<256x128xbf16>
    %cst_8 = arith.constant dense<0.000000e+00> : vector<16x128xf32>
    %17 = tpu.matmul %15, %16, %cst_8 {dimension_numbers = #tpu.dot_dimension_numbers<[1], [0], [0], [1], [0, 0, 1, 1], [], []>} : vector<16x256xbf16>, vector<256x128xbf16>, vector<16x128xf32> -> vector<16x128xf32>
    %18 = arith.addf %14, %17 : vector<16x128xf32>
    %c0_9 = arith.constant 0 : index
    %c0_10 = arith.constant 0 : index
    %19 = vector.load %arg7[%c0_9, %c0_10] : memref<16x128xf32, #tpu.memory_space<vmem>>, vector<16x128xf32>
    tpu.vector_store %arg7[%c0_9, %c0_10], %18 {strides = array<i32>} : memref<16x128xf32, #tpu.memory_space<vmem>>, vector<16x128xf32>,
    %c0_i32_11 = arith.constant 0 : i32
    %20 = arith.cmpi eq, %arg2, %c0_i32_11 : i32
    %21 = arith.extui %20 : i1 to i32
    %c0_i32_12 = arith.constant 0 : i32
    %22 = arith.cmpi ne, %21, %c0_i32_12 : i32
    scf.if %22 {
      %c0_13 = arith.constant 0 : index
      %c0_14 = arith.constant 0 : index
      %23 = vector.load %arg7[%c0_13, %c0_14] : memref<16x128xf32, #tpu.memory_space<vmem>>, vector<16x128xf32>
      %c0_15 = arith.constant 0 : index
      %c0_16 = arith.constant 0 : index
      %24 = vector.load %arg6[%c0_15, %c0_16] : memref<16x128xf32, #tpu.memory_space<vmem>>, vector<16x128xf32>
      tpu.vector_store %arg6[%c0_15, %c0_16], %23 {strides = array<i32>} : memref<16x128xf32, #tpu.memory_space<vmem>>, vector<16x128xf32>,
    } else {
    }
    return
  }
  func.func @transform_0(%arg0: i32, %arg1: i32, %arg2: i32) -> (i32, i32) {
    %c0_i32 = arith.constant 0 : i32
    return %arg0, %arg2 : i32, i32
  }
  func.func @transform_1(%arg0: i32, %arg1: i32, %arg2: i32) -> (i32, i32) {
    %c0_i32 = arith.constant 0 : i32
    return %arg2, %arg1 : i32, i32
  }
  func.func @transform_2(%arg0: i32, %arg1: i32, %arg2: i32) -> (i32, i32) {
    %c0_i32 = arith.constant 0 : i32
    %c0_i32_0 = arith.constant 0 : i32
    return %c0_i32, %arg2 : i32, i32
  }
  func.func @transform_3(%arg0: i32, %arg1: i32, %arg2: i32) -> (i32, i32) {
    %c0_i32 = arith.constant 0 : i32
    return %arg0, %arg1 : i32, i32
  }
}

</mosaic_0001>

<llo_original>
// kernel: densenet_forward.12
$region0: #{densenet_forward.12}
  #allocation0 [shape = 'u32[]', space=smem, size = 0x4, offset = 0x4, fixed_abs, tag = 'smem constant byte address 0x4 - core index']
  #allocation1 [shape = 'u32[72,128]{1,0:T(1,128)}', space=vmem, size = 0x9000, scoped, tag = 'internal scratch']
  #allocation2 [shape = 'f32[64,128]{1,0:T(8,128)}', space=vmem, size = 0x8000, scoped, tag = 'scratch operand']
  %s0 = inlined_call_operand.vmem [shape: bf16[128,256], index: 0, kind: input, shape index: {}]
  %s1 = inlined_call_operand.vmem [shape: bf16[256,384], index: 1, kind: input, shape index: {}]
  %s2 = inlined_call_operand.vmem [shape: f32[2,256], index: 2, kind: input, shape index: {}]
  %s3 = inlined_call_operand.vmem [shape: f32[128,384], index: 3, kind: output, shape index: {}]
  %s4 = sld [smem:[#allocation0]]
  $region128: #{densenet_forward.12} parent=0
    _
  %s6 = ssub.s32 1, %s4
  %s7 = scalar_select 0, %s6, %s4
  $region1: #{densenet_forward.12} parent=0
    #allocation3 [shape = 'u8[131072]{0}', space=vmem, size = 0x20000, scoped, tag = 'input window, operand 1']
    #allocation4 [shape = 'u8[65536]{0}', space=vmem, size = 0x10000, scoped, tag = 'output window, operand 0']
    loop: start=0, step=1, limit=8
    $region2: #{densenet_forward.12} parent=1 // loop_pre_header
      _
    $region3: #{densenet_forward.12} parent=1 // loop_header
      %s9 = sphi 0, %s13
      %p10 = scmp.ge.s32.totalorder %s9, 8
      %s16 = sphi 0, %s35
      %s17 = sphi 0, %s31
      %s18 = sphi 0, %s27
      %s19 = sphi 0, %s16
      %s20 = sphi 0, %s17
      %s21 = sphi 0, %s18
      %s22 = sphi 0, %s19
      %s23 = sphi 0, %s20
      %s24 = sphi 0, %s21
      %s40 = sphi 0, %s42
      %s43 = sphi 0, %s40
      %s44 = sphi 0, %s43
      %s60 = sphi 0, %s44
      %s68 = sphi 0, %s70
      %s71 = sphi 0, %s68
      %s72 = sphi 0, %s71
      %s88 = sphi 0, %s72
      %s94 = sphi 0, %s96
      %s97 = sphi 0, %s94
      %s98 = sphi 0, %s97
      %s114 = sphi 0, %s98
      %s122 = sphi 0, %s124
      %s125 = sphi 0, %s122
      %s126 = sphi 0, %s125
      %s142 = sphi 0, %s126
    $region4: #{densenet_forward.12} parent=1 // loop_header_branch
      %12 = sbr.rel (%p10) target = $region8
    $region5: #{densenet_forward.12} parent=1 // loop_body
      %s14 = ssub.s32 %s9, 1
      %s15 = ssub.s32 %s9, 2
      %s25 = sadd.s32 1, %s18
      %p26 = scmp.ge.s32.totalorder %s25, 1
      %s27 = scalar_select %p26, 0, %s25
      %s28 = sadd.s32 1, %s17
      %s29 = scalar_select %p26, %s28, %s17
      %p30 = scmp.ge.s32.totalorder %s29, 3
      %s31 = scalar_select %p30, 0, %s29
      %s32 = sadd.s32 1, %s16
      %s33 = scalar_select %p30, %s32, %s16
      %p34 = scmp.ge.s32.totalorder %s33, 2
      %s35 = scalar_select %p34, 0, %s33
      %s36 = ssub.s32 %s16, %s35
      %s37 = ssub.s32 %s18, %s27
      %s38 = sor.u32 %s36, %s37
      %p39 = scmp.eq.s32.totalorder %s38, 0
      %s41 = sadd.s32 %s40, 1
      %s42 = scalar_select %p39, %s40, %s41
      %p45 = pneg %p39
      %p46 = scmp.eq.s32.totalorder %s9, 5
      %p47 = por %p45, %p46
      %p48 = scmp.ne.s32.totalorder %s40, %s43
      %p49 = scmp.eq.s32.totalorder %s9, 0
      %p50 = por %p48, %p49
      %p51 = scmp.ne.s32.totalorder %s40, %s43
      %p52 = scmp.eq.s32.totalorder %s14, 5
      %p53 = por %p51, %p52
      %p54 = scmp.ne.s32.totalorder %s43, %s44
      %p55 = scmp.eq.s32.totalorder %s14, 0
      %p56 = por %p54, %p55
      %p57 = scmp.ne.s32.totalorder %s43, %s44
      %p58 = scmp.eq.s32.totalorder %s15, 5
      %p59 = por %p57, %p58
      %p61 = scmp.ne.s32.totalorder %s44, %s60
      %p62 = scmp.eq.s32.totalorder %s15, 0
      %p63 = por %p61, %p62
      %s64 = ssub.s32 %s18, %s27
      %s65 = ssub.s32 %s17, %s31
      %s66 = sor.u32 %s64, %s65
      %p67 = scmp.eq.s32.totalorder %s66, 0
      %s69 = sadd.s32 %s68, 1
      %s70 = scalar_select %p67, %s68, %s69
      %p73 = pneg %p67
      %p74 = scmp.eq.s32.totalorder %s9, 5
      %p75 = por %p73, %p74
      %p76 = scmp.ne.s32.totalorder %s68, %s71
      %p77 = scmp.eq.s32.totalorder %s9, 0
      %p78 = por %p76, %p77
      %p79 = scmp.ne.s32.totalorder %s68, %s71
      %p80 = scmp.eq.s32.totalorder %s14, 5
      %p81 = por %p79, %p80
      %p82 = scmp.ne.s32.totalorder %s71, %s72
      %p83 = scmp.eq.s32.totalorder %s14, 0
      %p84 = por %p82, %p83
      %p85 = scmp.ne.s32.totalorder %s71, %s72
      %p86 = scmp.eq.s32.totalorder %s15, 5
      %p87 = por %p85, %p86
      %p89 = scmp.ne.s32.totalorder %s72, %s88
      %p90 = scmp.eq.s32.totalorder %s15, 0
      %p91 = por %p89, %p90
      %s92 = ssub.s32 %s18, %s27
      %p93 = scmp.eq.s32.totalorder %s92, 0
      %s95 = sadd.s32 %s94, 1
      %s96 = scalar_select %p93, %s94, %s95
      %p99 = pneg %p93
      %p100 = scmp.eq.s32.totalorder %s9, 5
      %p101 = por %p99, %p100
      %p102 = scmp.ne.s32.totalorder %s94, %s97
      %p103 = scmp.eq.s32.totalorder %s9, 0
      %p104 = por %p102, %p103
      %p105 = scmp.ne.s32.totalorder %s94, %s97
      %p106 = scmp.eq.s32.totalorder %s14, 5
      %p107 = por %p105, %p106
      %p108 = scmp.ne.s32.totalorder %s97, %s98
      %p109 = scmp.eq.s32.totalorder %s14, 0
      %p110 = por %p108, %p109
      %p111 = scmp.ne.s32.totalorder %s97, %s98
      %p112 = scmp.eq.s32.totalorder %s15, 5
      %p113 = por %p111, %p112
      %p115 = scmp.ne.s32.totalorder %s98, %s114
      %p116 = scmp.eq.s32.totalorder %s15, 0
      %p117 = por %p115, %p116
      %s118 = ssub.s32 %s16, %s35
      %s119 = ssub.s32 %s17, %s31
      %s120 = sor.u32 %s118, %s119
      %p121 = scmp.eq.s32.totalorder %s120, 0
      %s123 = sadd.s32 %s122, 1
      %s124 = scalar_select %p121, %s122, %s123
      %p127 = pneg %p121
      %p128 = scmp.eq.s32.totalorder %s9, 5
      %p129 = por %p127, %p128
      %p130 = scmp.ne.s32.totalorder %s122, %s125
      %p131 = scmp.eq.s32.totalorder %s9, 0
      %p132 = por %p130, %p131
      %p133 = scmp.ne.s32.totalorder %s122, %s125
      %p134 = scmp.eq.s32.totalorder %s14, 5
      %p135 = por %p133, %p134
      %p136 = scmp.ne.s32.totalorder %s125, %s126
      %p137 = scmp.eq.s32.totalorder %s14, 0
      %p138 = por %p136, %p137
      %p139 = scmp.ne.s32.totalorder %s125, %s126
      %p140 = scmp.eq.s32.totalorder %s15, 5
      %p141 = por %p139, %p140
      %p143 = scmp.ne.s32.totalorder %s126, %s142
      %p144 = scmp.eq.s32.totalorder %s15, 0
      %p145 = por %p143, %p144
      %p146 = scmp.le.s32.totalorder 1, %s9
      %p147 = scmp.lt.s32.totalorder %s9, 7
      %p148 = pnand %p146, %p147
      %p149 = pneg %p148
      // Predicated region
      $region9: #{densenet_forward.12} parent=5 // pred_check
        _
      $region10: #{densenet_forward.12} parent=5 // pred_check_branch
        %151 = sbr.rel (%p148) target = $region12
      $region11: #{densenet_forward.12} parent=5 // pred_region
        %s152 = ssub.s32 %s9, 1
        // Predicated region
        $region13: #{densenet_forward.12} parent=11 // pred_check
          %p153 = pneg %p110
        $region14: #{densenet_forward.12} parent=11 // pred_check_branch
          %155 = sbr.rel (%p153) target = $region16
        $region15: #{densenet_forward.12} parent=11 // pred_region
          %s156 = smul.u32 2, %s21
          %p157 = scmp.lt.s32.totalorder %s156, 1
          %s158 = scalar_select %p157, %s156, 1
          %s159 = smul.addr %s158, 2
          %s160 = scalar_lea.vmem %s2, %s159
          %s161 = smul.u32 2, %s21
        $region16: #{densenet_forward.12} parent=11 // pred_fallthru
          _
      $region12: #{densenet_forward.12} parent=5 // pred_fallthru
        _
      %p162 = scmp.lt.s32.totalorder %s9, 6
      // Predicated region
      $region17: #{densenet_forward.12} parent=5 // pred_check
        %p163 = pneg %p162
      $region18: #{densenet_forward.12} parent=5 // pred_check_branch
        %165 = sbr.rel (%p163) target = $region20
      $region19: #{densenet_forward.12} parent=5 // pred_region
        // Predicated region
        $region21: #{densenet_forward.12} parent=19 // pred_check
          %p166 = pneg %p50
        $region22: #{densenet_forward.12} parent=19 // pred_check_branch
          %168 = sbr.rel (%p166) target = $region24
        $region23: #{densenet_forward.12} parent=19 // pred_region
          %s169 = smul.u32 8, %s16
          %s170 = smul.u32 2, %s18
          %p171 = scmp.lt.s32.totalorder %s169, 15
          %s172 = scalar_select %p171, %s169, 15
          %p173 = scmp.lt.s32.totalorder %s170, 1
          %s174 = scalar_select %p173, %s170, 1
          %s175 = smul.addr %s172, 2
          %s176 = sadd.s32 %s174, %s175
          %s177 = smul.addr %s176, 4
          %s178 = scalar_lea.vmem %s0, %s177
          %s179 = smul.u32 8, %s16
          %s180 = smul.u32 2, %s18
        $region24: #{densenet_forward.12} parent=19 // pred_fallthru
          _
        // Predicated region
        $region25: #{densenet_forward.12} parent=19 // pred_check
          %p181 = pneg %p78
        $region26: #{densenet_forward.12} parent=19 // pred_check_branch
          %183 = sbr.rel (%p181) target = $region28
        $region27: #{densenet_forward.12} parent=19 // pred_region
          %s184 = sand.u32 %s68, 1
          %s185 = sand.u32 %s68, 1
          %s186 = smul.addr %s185, 128
          %s187 = scalar_lea.vmem [#allocation3], %s186
          %s188 = smul.u32 32, %s18
          %s189 = smul.addr %s188, 3
          %s190 = sadd.s32 %s17, %s189
          %s191 = smul.addr %s190, 4
          %s192 = scalar_lea.vmem %s1, %s191
          // Predicated region
          $region29: #{densenet_forward.12} parent=27 // pred_check
            _
          $region30: #{densenet_forward.12} parent=27 // pred_check_branch
            %194 = sbr.rel (0) target = $region32
          $region31: #{densenet_forward.12} parent=27 // pred_region
            // Predicated region
            $region33: #{densenet_forward.12} parent=31 // pred_check
              _
            $region34: #{densenet_forward.12} parent=31 // pred_check_branch
              %196 = sbr.rel target = $region36
            $region35: #{densenet_forward.12} parent=31 // pred_region
              // Predicated region
              $region48: #{densenet_forward.12} parent=35 // pred_check
                _
              $region49: #{densenet_forward.12} parent=35 // pred_check_branch
                %274 = sbr.rel (0) target = $region51
              $region50: #{densenet_forward.12} parent=35 // pred_region
                loop: start=0, step=1, limit=1
                $region52: #{densenet_forward.12} parent=50 // loop_pre_header
                  _
                $region53: #{densenet_forward.12} parent=50 // loop_header
                  %s276 = sphi 0, %s280
                  %p277 = scmp.ge.s32.totalorder %s276, 1
                  %s281 = sphi %s192, %s192
                  %s282 = sphi %s187, %s187
                $region54: #{densenet_forward.12} parent=50 // loop_header_branch
                  %279 = sbr.rel (%p277) target = $region58
                $region55: #{densenet_forward.12} parent=50 // loop_body
                  _
                $region56: #{densenet_forward.12} parent=50 // loop_footer
                  %s280 = sadd.s32 1, %s276
                $region57: #{densenet_forward.12} parent=50 // loop_footer_branch
                  %275 = sbr.rel target = $region53
                $region58: #{densenet_forward.12} parent=50 // loop_exit
                  _
                %s284 = ssub.s32 16, 1
                loop: start=0, step=1, limit=1
                $region59: #{densenet_forward.12} parent=50 // loop_pre_header
                  _
                $region60: #{densenet_forward.12} parent=50 // loop_header
                  %s286 = sphi 0, %s290
                  %p287 = scmp.ge.s32.totalorder %s286, 1
                  %s291 = sphi %s192, %s192
                  %s292 = sphi %s187, %s187
                $region61: #{densenet_forward.12} parent=50 // loop_header_branch
                  %289 = sbr.rel (%p287) target = $region65
                $region62: #{densenet_forward.12} parent=50 // loop_body
                  %v293 = vld [vmem:[%s291] sm:%s284]
                  %294 = vst [vmem:[%s292] sm:%s284] %v293
                  %v295 = vld [vmem:[%s291 + $0xc] sm:%s284]
                  %296 = vst [vmem:[%s292 + $0x4] sm:%s284] %v295
                  %v297 = vld [vmem:[%s291 + $0x18] sm:%s284]
                  %298 = vst [vmem:[%s292 + $0x8] sm:%s284] %v297
                  %v299 = vld [vmem:[%s291 + $0x24] sm:%s284]
                  %300 = vst [vmem:[%s292 + $0xc] sm:%s284] %v299
                  %v301 = vld [vmem:[%s291 + $0x30] sm:%s284]
                  %302 = vst [vmem:[%s292 + $0x10] sm:%s284] %v301
                  %v303 = vld [vmem:[%s291 + $0x3c] sm:%s284]
                  %304 = vst [vmem:[%s292 + $0x14] sm:%s284] %v303
                  %v305 = vld [vmem:[%s291 + $0x48] sm:%s284]
                  %306 = vst [vmem:[%s292 + $0x18] sm:%s284] %v305
                  %v307 = vld [vmem:[%s291 + $0x54] sm:%s284]
                  %308 = vst [vmem:[%s292 + $0x1c] sm:%s284] %v307
                  %v309 = vld [vmem:[%s291 + $0x60] sm:%s284]
                  %310 = vst [vmem:[%s292 + $0x20] sm:%s284] %v309
                  %v311 = vld [vmem:[%s291 + $0x6c] sm:%s284]
                  %312 = vst [vmem:[%s292 + $0x24] sm:%s284] %v311
                  %v313 = vld [vmem:[%s291 + $0x78] sm:%s284]
                  %314 = vst [vmem:[%s292 + $0x28] sm:%s284] %v313
                  %v315 = vld [vmem:[%s291 + $0x84] sm:%s284]
                  %316 = vst [vmem:[%s292 + $0x2c] sm:%s284] %v315
                  %v317 = vld [vmem:[%s291 + $0x90] sm:%s284]
                  %318 = vst [vmem:[%s292 + $0x30] sm:%s284] %v317
                  %v319 = vld [vmem:[%s291 + $0x9c] sm:%s284]
                  %320 = vst [vmem:[%s292 + $0x34] sm:%s284] %v319
                  %v321 = vld [vmem:[%s291 + $0xa8] sm:%s284]
                  %322 = vst [vmem:[%s292 + $0x38] sm:%s284] %v321
                  %v323 = vld [vmem:[%s291 + $0xb4] sm:%s284]
                  %324 = vst [vmem:[%s292 + $0x3c] sm:%s284] %v323
                  %v325 = vld [vmem:[%s291 + $0xc0] sm:%s284]
                  %326 = vst [vmem:[%s292 + $0x40] sm:%s284] %v325
                  %v327 = vld [vmem:[%s291 + $0xcc] sm:%s284]
                  %328 = vst [vmem:[%s292 + $0x44] sm:%s284] %v327
                  %v329 = vld [vmem:[%s291 + $0xd8] sm:%s284]
                  %330 = vst [vmem:[%s292 + $0x48] sm:%s284] %v329
                  %v331 = vld [vmem:[%s291 + $0xe4] sm:%s284]
                  %332 = vst [vmem:[%s292 + $0x4c] sm:%s284] %v331
                  %v333 = vld [vmem:[%s291 + $0xf0] sm:%s284]
                  %334 = vst [vmem:[%s292 + $0x50] sm:%s284] %v333
                  %v335 = vld [vmem:[%s291 + $0xfc] sm:%s284]
                  %336 = vst [vmem:[%s292 + $0x54] sm:%s284] %v335
                  %v337 = vld [vmem:[%s291 + $0x108] sm:%s284]
                  %338 = vst [vmem:[%s292 + $0x58] sm:%s284] %v337
                  %v339 = vld [vmem:[%s291 + $0x114] sm:%s284]
                  %340 = vst [vmem:[%s292 + $0x5c] sm:%s284] %v339
                  %v341 = vld [vmem:[%s291 + $0x120] sm:%s284]
                  %342 = vst [vmem:[%s292 + $0x60] sm:%s284] %v341
                  %v343 = vld [vmem:[%s291 + $0x12c] sm:%s284]
                  %344 = vst [vmem:[%s292 + $0x64] sm:%s284] %v343
                  %v345 = vld [vmem:[%s291 + $0x138] sm:%s284]
                  %346 = vst [vmem:[%s292 + $0x68] sm:%s284] %v345
                  %v347 = vld [vmem:[%s291 + $0x144] sm:%s284]
                  %348 = vst [vmem:[%s292 + $0x6c] sm:%s284] %v347
                  %v349 = vld [vmem:[%s291 + $0x150] sm:%s284]
                  %350 = vst [vmem:[%s292 + $0x70] sm:%s284] %v349
                  %v351 = vld [vmem:[%s291 + $0x15c] sm:%s284]
                  %352 = vst [vmem:[%s292 + $0x74] sm:%s284] %v351
                  %v353 = vld [vmem:[%s291 + $0x168] sm:%s284]
                  %354 = vst [vmem:[%s292 + $0x78] sm:%s284] %v353
                  %v355 = vld [vmem:[%s291 + $0x174] sm:%s284]
                  %356 = vst [vmem:[%s292 + $0x7c] sm:%s284] %v355
                $region63: #{densenet_forward.12} parent=50 // loop_footer
                  %s290 = sadd.s32 1, %s286
                $region64: #{densenet_forward.12} parent=50 // loop_footer_branch
                  %285 = sbr.rel target = $region60
                $region65: #{densenet_forward.12} parent=50 // loop_exit
                  _
              $region51: #{densenet_forward.12} parent=35 // pred_fallthru
                _
            $region36: #{densenet_forward.12} parent=31 // pred_fallthru
              _
            // Predicated region
            $region37: #{densenet_forward.12} parent=31 // pred_check
              _
            $region38: #{densenet_forward.12} parent=31 // pred_check_branch
              %198 = sbr.rel (0) target = $region40
            $region39: #{densenet_forward.12} parent=31 // pred_region
              %s200 = ssub.s32 16, 1
              loop: start=0, step=1, limit=1
              $region41: #{densenet_forward.12} parent=39 // loop_pre_header
                _
              $region42: #{densenet_forward.12} parent=39 // loop_header
                %s202 = sphi 0, %s206
                %p203 = scmp.ge.s32.totalorder %s202, 1
                %s207 = sphi %s192, %s192
                %s208 = sphi %s187, %s187
              $region43: #{densenet_forward.12} parent=39 // loop_header_branch
                %205 = sbr.rel (%p203) target = $region47
              $region44: #{densenet_forward.12} parent=39 // loop_body
                %v209 = vld [vmem:[%s207] sm:%s200]
                %210 = vst [vmem:[%s208] sm:%s200] %v209
                %v211 = vld [vmem:[%s207 + $0xc] sm:%s200]
                %212 = vst [vmem:[%s208 + $0x4] sm:%s200] %v211
                %v213 = vld [vmem:[%s207 + $0x18] sm:%s200]
                %214 = vst [vmem:[%s208 + $0x8] sm:%s200] %v213
                %v215 = vld [vmem:[%s207 + $0x24] sm:%s200]
                %216 = vst [vmem:[%s208 + $0xc] sm:%s200] %v215
                %v217 = vld [vmem:[%s207 + $0x30] sm:%s200]
                %218 = vst [vmem:[%s208 + $0x10] sm:%s200] %v217
                %v219 = vld [vmem:[%s207 + $0x3c] sm:%s200]
                %220 = vst [vmem:[%s208 + $0x14] sm:%s200] %v219
                %v221 = vld [vmem:[%s207 + $0x48] sm:%s200]
                %222 = vst [vmem:[%s208 + $0x18] sm:%s200] %v221
                %v223 = vld [vmem:[%s207 + $0x54] sm:%s200]
                %224 = vst [vmem:[%s208 + $0x1c] sm:%s200] %v223
                %v225 = vld [vmem:[%s207 + $0x60] sm:%s200]
                %226 = vst [vmem:[%s208 + $0x20] sm:%s200] %v225
                %v227 = vld [vmem:[%s207 + $0x6c] sm:%s200]
                %228 = vst [vmem:[%s208 + $0x24] sm:%s200] %v227
                %v229 = vld [vmem:[%s207 + $0x78] sm:%s200]
                %230 = vst [vmem:[%s208 + $0x28] sm:%s200] %v229
                %v231 = vld [vmem:[%s207 + $0x84] sm:%s200]
                %232 = vst [vmem:[%s208 + $0x2c] sm:%s200] %v231
                %v233 = vld [vmem:[%s207 + $0x90] sm:%s200]
                %234 = vst [vmem:[%s208 + $0x30] sm:%s200] %v233
                %v235 = vld [vmem:[%s207 + $0x9c] sm:%s200]
                %236 = vst [vmem:[%s208 + $0x34] sm:%s200] %v235
                %v237 = vld [vmem:[%s207 + $0xa8] sm:%s200]
                %238 = vst [vmem:[%s208 + $0x38] sm:%s200] %v237
                %v239 = vld [vmem:[%s207 + $0xb4] sm:%s200]
                %240 = vst [vmem:[%s208 + $0x3c] sm:%s200] %v239
                %v241 = vld [vmem:[%s207 + $0xc0] sm:%s200]
                %242 = vst [vmem:[%s208 + $0x40] sm:%s200] %v241
                %v243 = vld [vmem:[%s207 + $0xcc] sm:%s200]
                %244 = vst [vmem:[%s208 + $0x44] sm:%s200] %v243
                %v245 = vld [vmem:[%s207 + $0xd8] sm:%s200]
                %246 = vst [vmem:[%s208 + $0x48] sm:%s200] %v245
                %v247 = vld [vmem:[%s207 + $0xe4] sm:%s200]
                %248 = vst [vmem:[%s208 + $0x4c] sm:%s200] %v247
                %v249 = vld [vmem:[%s207 + $0xf0] sm:%s200]
                %250 = vst [vmem:[%s208 + $0x50] sm:%s200] %v249
                %v251 = vld [vmem:[%s207 + $0xfc] sm:%s200]
                %252 = vst [vmem:[%s208 + $0x54] sm:%s200] %v251
                %v253 = vld [vmem:[%s207 + $0x108] sm:%s200]
                %254 = vst [vmem:[%s208 + $0x58] sm:%s200] %v253
                %v255 = vld [vmem:[%s207 + $0x114] sm:%s200]
                %256 = vst [vmem:[%s208 + $0x5c] sm:%s200] %v255
                %v257 = vld [vmem:[%s207 + $0x120] sm:%s200]
                %258 = vst [vmem:[%s208 + $0x60] sm:%s200] %v257
                %v259 = vld [vmem:[%s207 + $0x12c] sm:%s200]
                %260 = vst [vmem:[%s208 + $0x64] sm:%s200] %v259
                %v261 = vld [vmem:[%s207 + $0x138] sm:%s200]
                %262 = vst [vmem:[%s208 + $0x68] sm:%s200] %v261
                %v263 = vld [vmem:[%s207 + $0x144] sm:%s200]
                %264 = vst [vmem:[%s208 + $0x6c] sm:%s200] %v263
                %v265 = vld [vmem:[%s207 + $0x150] sm:%s200]
                %266 = vst [vmem:[%s208 + $0x70] sm:%s200] %v265
                %v267 = vld [vmem:[%s207 + $0x15c] sm:%s200]
                %268 = vst [vmem:[%s208 + $0x74] sm:%s200] %v267
                %v269 = vld [vmem:[%s207 + $0x168] sm:%s200]
                %270 = vst [vmem:[%s208 + $0x78] sm:%s200] %v269
                %v271 = vld [vmem:[%s207 + $0x174] sm:%s200]
                %272 = vst [vmem:[%s208 + $0x7c] sm:%s200] %v271
              $region45: #{densenet_forward.12} parent=39 // loop_footer
                %s206 = sadd.s32 1, %s202
              $region46: #{densenet_forward.12} parent=39 // loop_footer_branch
                %201 = sbr.rel target = $region42
              $region47: #{densenet_forward.12} parent=39 // loop_exit
                _
            $region40: #{densenet_forward.12} parent=31 // pred_fallthru
              _
          $region32: #{densenet_forward.12} parent=27 // pred_fallthru
            _
          %357 = vnop
        $region28: #{densenet_forward.12} parent=19 // pred_fallthru
          _
      $region20: #{densenet_forward.12} parent=5 // pred_fallthru
        _
      %p358 = scmp.le.s32.totalorder 1, %s9
      %p359 = scmp.lt.s32.totalorder %s9, 7
      %p360 = pnand %p358, %p359
      %p361 = pneg %p360
      // Predicated region
      $region66: #{densenet_forward.12} parent=5 // pred_check
        _
      $region67: #{densenet_forward.12} parent=5 // pred_check_branch
        %363 = sbr.rel (%p360) target = $region69
      $region68: #{densenet_forward.12} parent=5 // pred_region
        %s364 = ssub.s32 %s9, 1
        %s365 = sand.u32 %s71, 1
        %s366 = sand.u32 %s71, 1
        %s367 = smul.addr %s366, 128
        %s368 = scalar_lea.vmem [#allocation3], %s367
        // Predicated region
        $region70: #{densenet_forward.12} parent=68 // pred_check
          %p369 = pneg %p84
        $region71: #{densenet_forward.12} parent=68 // pred_check_branch
          %371 = sbr.rel (%p369) target = $region73
        $region72: #{densenet_forward.12} parent=68 // pred_region
          _
        $region73: #{densenet_forward.12} parent=68 // pred_fallthru
          _
        %s372 = smul.u32 8, %s19
        %s373 = smul.u32 2, %s21
        %p374 = scmp.lt.s32.totalorder %s372, 15
        %s375 = scalar_select %p374, %s372, 15
        %p376 = scmp.lt.s32.totalorder %s373, 1
        %s377 = scalar_select %p376, %s373, 1
        %s378 = smul.addr %s375, 2
        %s379 = sadd.s32 %s377, %s378
        %s380 = smul.addr %s379, 4
        %s381 = scalar_lea.vmem %s0, %s380
        %p382 = pneg %p56
        %p383 = pneg %p53
        %s384 = sand.u32 %s71, 1
        %s385 = sand.u32 %s71, 1
        %s386 = smul.addr %s385, 128
        %s387 = scalar_lea.vmem [#allocation3], %s386
        %p388 = pneg %p84
        %p389 = pneg %p81
        %s390 = smul.u32 2, %s21
        %p391 = scmp.lt.s32.totalorder %s390, 1
        %s392 = scalar_select %p391, %s390, 1
        %s393 = smul.addr %s392, 2
        %s394 = scalar_lea.vmem %s2, %s393
        %p395 = pneg %p110
        %p396 = pneg %p107
        %p397 = pneg %p138
        %p398 = pneg %p135
        %s399 = sand.u32 %s125, 1
        %s400 = sand.u32 %s125, 1
        %s401 = smul.addr %s400, 64
        %s402 = scalar_lea.vmem [#allocation4], %s401
        %s403 = smul.u32 8, %s19
        %s404 = smul.u32 2, %s21
        %p405 = scmp.lt.s32.totalorder %s403, 15
        %s406 = scalar_select %p405, %s403, 15
        %p407 = scmp.lt.s32.totalorder %s404, 1
        %s408 = scalar_select %p407, %s404, 1
        %s409 = smul.addr %s406, 2
        %s410 = sadd.s32 %s408, %s409
        %s411 = smul.addr %s410, 4
        %s412 = scalar_lea.vmem %s0, %s411
        %s413 = smul.u32 8, %s19
        %s414 = smul.u32 2, %s21
        %s415 = smul.u32 32, %s21
        %s416 = smul.u32 2, %s21
        %p417 = scmp.lt.s32.totalorder %s416, 1
        %s418 = scalar_select %p417, %s416, 1
        %s419 = smul.addr %s418, 2
        %s420 = scalar_lea.vmem %s2, %s419
        %s421 = smul.u32 2, %s21
        %s422 = smul.u32 8, %s19
        %p423 = scmp.eq.s32.totalorder %s21, 0
        // Predicated region
        $region74: #{densenet_forward.12} parent=68 // pred_check
          %p424 = pneg %p423
        $region75: #{densenet_forward.12} parent=68 // pred_check_branch
          %426 = sbr.rel (%p424) target = $region77
        $region76: #{densenet_forward.12} parent=68 // pred_region
          %427 = vst [vmem:[#allocation2] sm:$0xff] 0.0
          %428 = vst [vmem:[#allocation2 + $0x8] sm:$0xff] 0.0
          %429 = vst [vmem:[#allocation2 + $0x10] sm:$0xff] 0.0
          %430 = vst [vmem:[#allocation2 + $0x18] sm:$0xff] 0.0
          %431 = vst [vmem:[#allocation2 + $0x20] sm:$0xff] 0.0
          %432 = vst [vmem:[#allocation2 + $0x28] sm:$0xff] 0.0
          %433 = vst [vmem:[#allocation2 + $0x30] sm:$0xff] 0.0
          %434 = vst [vmem:[#allocation2 + $0x38] sm:$0xff] 0.0
        $region77: #{densenet_forward.12} parent=68 // pred_fallthru
          _
        %v435 = vld [vmem:[%s420] sm:$0xf]
        %v436 = vld [vmem:[%s412] sm:$0xff]
        %v437 = vld [vmem:[%s412 + $0x8] sm:$0xff]
        %v438 = vld [vmem:[%s412 + $0x10] sm:$0xff]
        %v439 = vld [vmem:[%s412 + $0x18] sm:$0xff]
        %v440 = vld [vmem:[%s412 + $0x20] sm:$0xff]
        %v441 = vld [vmem:[%s412 + $0x28] sm:$0xff]
        %v442 = vld [vmem:[%s412 + $0x30] sm:$0xff]
        %v443 = vld [vmem:[%s412 + $0x38] sm:$0xff]
        %v444 = vunpack.c.l.bf16 %v436
        %v445 = vunpack.c.h.bf16 %v436
        %v446 = vunpack.c.l.bf16 %v437
        %v447 = vunpack.c.h.bf16 %v437
        %v448 = vunpack.c.l.bf16 %v438
        %v449 = vunpack.c.h.bf16 %v438
        %v450 = vunpack.c.l.bf16 %v439
        %v451 = vunpack.c.h.bf16 %v439
        %v452 = vunpack.c.l.bf16 %v440
        %v453 = vunpack.c.h.bf16 %v440
        %v454 = vunpack.c.l.bf16 %v441
        %v455 = vunpack.c.h.bf16 %v441
        %v456 = vunpack.c.l.bf16 %v442
        %v457 = vunpack.c.h.bf16 %v442
        %v458 = vunpack.c.l.bf16 %v443
        %v459 = vunpack.c.h.bf16 %v443
        %v461 = vperm.slane %v435, 0
        %v462 = vperm.slane %v435, 2
        %v465 = vperm.slane %v461, 0
        %v466 = vperm.slane %v462, 0
        %v467 = vmul.f32 %v444, %v465
        %v468 = vmul.f32 %v445, %v466
        %v469 = vmul.f32 %v446, %v465
        %v470 = vmul.f32 %v447, %v466
        %v471 = vmul.f32 %v448, %v465
        %v472 = vmul.f32 %v449, %v466
        %v473 = vmul.f32 %v450, %v465
        %v474 = vmul.f32 %v451, %v466
        %v475 = vmul.f32 %v452, %v465
        %v476 = vmul.f32 %v453, %v466
        %v477 = vmul.f32 %v454, %v465
        %v478 = vmul.f32 %v455, %v466
        %v479 = vmul.f32 %v456, %v465
        %v480 = vmul.f32 %v457, %v466
        %v481 = vmul.f32 %v458, %v465
        %v482 = vmul.f32 %v459, %v466
        %v483 = vperm.slane %v435, 1
        %v484 = vperm.slane %v435, 3
        %v487 = vperm.slane %v483, 1
        %v488 = vperm.slane %v484, 1
        %v489 = vadd.f32 %v467, %v487
        %v490 = vadd.f32 %v468, %v488
        %v491 = vadd.f32 %v469, %v487
        %v492 = vadd.f32 %v470, %v488
        %v493 = vadd.f32 %v471, %v487
        %v494 = vadd.f32 %v472, %v488
        %v495 = vadd.f32 %v473, %v487
        %v496 = vadd.f32 %v474, %v488
        %v497 = vadd.f32 %v475, %v487
        %v498 = vadd.f32 %v476, %v488
        %v499 = vadd.f32 %v477, %v487
        %v500 = vadd.f32 %v478, %v488
        %v501 = vadd.f32 %v479, %v487
        %v502 = vadd.f32 %v480, %v488
        %v503 = vadd.f32 %v481, %v487
        %v504 = vadd.f32 %v482, %v488
        %v505 = vmax.f32 %v489, 0.0
        %v506 = vmax.f32 %v490, 0.0
        %v507 = vmax.f32 %v491, 0.0
        %v508 = vmax.f32 %v492, 0.0
        %v509 = vmax.f32 %v493, 0.0
        %v510 = vmax.f32 %v494, 0.0
        %v511 = vmax.f32 %v495, 0.0
        %v512 = vmax.f32 %v496, 0.0
        %v513 = vmax.f32 %v497, 0.0
        %v514 = vmax.f32 %v498, 0.0
        %v515 = vmax.f32 %v499, 0.0
        %v516 = vmax.f32 %v500, 0.0
        %v517 = vmax.f32 %v501, 0.0
        %v518 = vmax.f32 %v502, 0.0
        %v519 = vmax.f32 %v503, 0.0
        %v520 = vmax.f32 %v504, 0.0
        %v521 = vld [vmem:[#allocation2] sm:$0xff]
        %v522 = vld [vmem:[#allocation2 + $0x8] sm:$0xff]
        %v523 = vld [vmem:[#allocation2 + $0x10] sm:$0xff]
        %v524 = vld [vmem:[#allocation2 + $0x18] sm:$0xff]
        %v525 = vld [vmem:[#allocation2 + $0x20] sm:$0xff]
        %v526 = vld [vmem:[#allocation2 + $0x28] sm:$0xff]
        %v527 = vld [vmem:[#allocation2 + $0x30] sm:$0xff]
        %v528 = vld [vmem:[#allocation2 + $0x38] sm:$0xff]
        %v529 = vpack.c.bf16 %v507, %v505
        %v530 = vpack.c.bf16 %v508, %v506
        %v531 = vpack.c.bf16 %v511, %v509
        %v532 = vpack.c.bf16 %v512, %v510
        %v533 = vpack.c.bf16 %v515, %v513
        %v534 = vpack.c.bf16 %v516, %v514
        %v535 = vpack.c.bf16 %v519, %v517
        %v536 = vpack.c.bf16 %v520, %v518
        %v537 = vld [vmem:[%s368] sm:$0xf]
        %v538 = vld [vmem:[%s368 + $0x4] sm:$0xf]
        %v539 = vld [vmem:[%s368 + $0x8] sm:$0xf]
        %v540 = vld [vmem:[%s368 + $0xc] sm:$0xf]
        %v541 = vld [vmem:[%s368 + $0x10] sm:$0xf]
        %v542 = vld [vmem:[%s368 + $0x14] sm:$0xf]
        %v543 = vld [vmem:[%s368 + $0x18] sm:$0xf]
        %v544 = vld [vmem:[%s368 + $0x1c] sm:$0xf]
        %v545 = vld [vmem:[%s368 + $0x20] sm:$0xf]
        %v546 = vld [vmem:[%s368 + $0x24] sm:$0xf]
        %v547 = vld [vmem:[%s368 + $0x28] sm:$0xf]
        %v548 = vld [vmem:[%s368 + $0x2c] sm:$0xf]
        %v549 = vld [vmem:[%s368 + $0x30] sm:$0xf]
        %v550 = vld [vmem:[%s368 + $0x34] sm:$0xf]
        %v551 = vld [vmem:[%s368 + $0x38] sm:$0xf]
        %v552 = vld [vmem:[%s368 + $0x3c] sm:$0xf]
        %v553 = vld [vmem:[%s368 + $0x40] sm:$0xf]
        %v554 = vld [vmem:[%s368 + $0x44] sm:$0xf]
        %v555 = vld [vmem:[%s368 + $0x48] sm:$0xf]
        %v556 = vld [vmem:[%s368 + $0x4c] sm:$0xf]
        %v557 = vld [vmem:[%s368 + $0x50] sm:$0xf]
        %v558 = vld [vmem:[%s368 + $0x54] sm:$0xf]
        %v559 = vld [vmem:[%s368 + $0x58] sm:$0xf]
        %v560 = vld [vmem:[%s368 + $0x5c] sm:$0xf]
        %v561 = vld [vmem:[%s368 + $0x60] sm:$0xf]
        %v562 = vld [vmem:[%s368 + $0x64] sm:$0xf]
        %v563 = vld [vmem:[%s368 + $0x68] sm:$0xf]
        %v564 = vld [vmem:[%s368 + $0x6c] sm:$0xf]
        %v565 = vld [vmem:[%s368 + $0x70] sm:$0xf]
        %v566 = vld [vmem:[%s368 + $0x74] sm:$0xf]
        %v567 = vld [vmem:[%s368 + $0x78] sm:$0xf]
        %v568 = vld [vmem:[%s368 + $0x7c] sm:$0xf]
        %v601 = vunpack.c.l.b16 %v537
        %v602 = vunpack.c.l.b16 %v538
        %v603 = vunpack.c.l.b16 %v539
        %v604 = vunpack.c.l.b16 %v540
        %v605 = vunpack.c.l.b16 %v541
        %v606 = vunpack.c.l.b16 %v542
        %v607 = vunpack.c.l.b16 %v543
        %v608 = vunpack.c.l.b16 %v544
        %v609 = vunpack.c.l.b16 %v545
        %v610 = vunpack.c.l.b16 %v546
        %v611 = vunpack.c.l.b16 %v547
        %v612 = vunpack.c.l.b16 %v548
        %v613 = vunpack.c.l.b16 %v549
        %v614 = vunpack.c.l.b16 %v550
        %v615 = vunpack.c.l.b16 %v551
        %v616 = vunpack.c.l.b16 %v552
        %v617 = vunpack.c.l.b16 %v553
        %v618 = vunpack.c.l.b16 %v554
        %v619 = vunpack.c.l.b16 %v555
        %v620 = vunpack.c.l.b16 %v556
        %v621 = vunpack.c.l.b16 %v557
        %v622 = vunpack.c.l.b16 %v558
        %v623 = vunpack.c.l.b16 %v559
        %v624 = vunpack.c.l.b16 %v560
        %v625 = vunpack.c.l.b16 %v561
        %v626 = vunpack.c.l.b16 %v562
        %v627 = vunpack.c.l.b16 %v563
        %v628 = vunpack.c.l.b16 %v564
        %v629 = vunpack.c.l.b16 %v565
        %v630 = vunpack.c.l.b16 %v566
        %v631 = vunpack.c.l.b16 %v567
        %v632 = vunpack.c.l.b16 %v568
        %v633 = vpack.c.b16 %v602, %v601
        %v634 = vpack.c.b16 %v604, %v603
        %v635 = vpack.c.b16 %v606, %v605
        %v636 = vpack.c.b16 %v608, %v607
        %v637 = vpack.c.b16 %v610, %v609
        %v638 = vpack.c.b16 %v612, %v611
        %v639 = vpack.c.b16 %v614, %v613
        %v640 = vpack.c.b16 %v616, %v615
        %v641 = vpack.c.b16 %v618, %v617
        %v642 = vpack.c.b16 %v620, %v619
        %v643 = vpack.c.b16 %v622, %v621
        %v644 = vpack.c.b16 %v624, %v623
        %v645 = vpack.c.b16 %v626, %v625
        %v646 = vpack.c.b16 %v628, %v627
        %v647 = vpack.c.b16 %v630, %v629
        %v648 = vpack.c.b16 %v632, %v631
        %665 = vmatpush.bf16.msra.mxu0 %v640
        %666 = vmatpush.bf16.msra.mxu0 %v639
        %667 = vmatpush.bf16.msra.mxu0 %v638
        %668 = vmatpush.bf16.msra.mxu0 %v637
        %669 = vmatpush.bf16.msra.mxu0 %v636
        %670 = vmatpush.bf16.msra.mxu0 %v635
        %671 = vmatpush.bf16.msra.mxu0 %v634
        %672 = vmatpush.bf16.msra.mxu0 %v633
        %673 = vmatmul.bf16.gmra.mxu0 %v529
        %v674 = vpop.f32.mrf.mxu0
        %v675 = vadd.f32 0.0, %v674
        %v676 = vpop.f32.mrf.mxu0
        %v677 = vadd.f32 0.0, %v676
        %678 = vmatmul.bf16.gmra.mxu0 %v531
        %v679 = vpop.f32.mrf.mxu0
        %v680 = vadd.f32 0.0, %v679
        %v681 = vpop.f32.mrf.mxu0
        %v682 = vadd.f32 0.0, %v681
        %683 = vmatmul.bf16.gmra.mxu0 %v533
        %v684 = vpop.f32.mrf.mxu0
        %v685 = vadd.f32 0.0, %v684
        %v686 = vpop.f32.mrf.mxu0
        %v687 = vadd.f32 0.0, %v686
        %688 = vmatmul.bf16.gmra.mxu0 %v535
        %v689 = vpop.f32.mrf.mxu0
        %v690 = vadd.f32 0.0, %v689
        %v691 = vpop.f32.mrf.mxu0
        %v692 = vadd.f32 0.0, %v691
        %693 = vdwg.mxu0
        %694 = vmatpush.bf16.msra.mxu0 %v648
        %695 = vmatpush.bf16.msra.mxu0 %v647
        %696 = vmatpush.bf16.msra.mxu0 %v646
        %697 = vmatpush.bf16.msra.mxu0 %v645
        %698 = vmatpush.bf16.msra.mxu0 %v644
        %699 = vmatpush.bf16.msra.mxu0 %v643
        %700 = vmatpush.bf16.msra.mxu0 %v642
        %701 = vmatpush.bf16.msra.mxu0 %v641
        %702 = vmatmul.bf16.gmra.mxu0 %v530
        %v703 = vpop.f32.mrf.mxu0
        %v704 = vadd.f32 %v675, %v703
        %v705 = vpop.f32.mrf.mxu0
        %v706 = vadd.f32 %v677, %v705
        %707 = vmatmul.bf16.gmra.mxu0 %v532
        %v708 = vpop.f32.mrf.mxu0
        %v709 = vadd.f32 %v680, %v708
        %v710 = vpop.f32.mrf.mxu0
        %v711 = vadd.f32 %v682, %v710
        %712 = vmatmul.bf16.gmra.mxu0 %v534
        %v713 = vpop.f32.mrf.mxu0
        %v714 = vadd.f32 %v685, %v713
        %v715 = vpop.f32.mrf.mxu0
        %v716 = vadd.f32 %v687, %v715
        %717 = vmatmul.bf16.gmra.mxu0 %v536
        %v718 = vpop.f32.mrf.mxu0
        %v719 = vadd.f32 %v690, %v718
        %v720 = vpop.f32.mrf.mxu0
        %v721 = vadd.f32 %v692, %v720
        %722 = vdwg.mxu0
        %v723 = vadd.f32 %v521, %v704
        %v724 = vadd.f32 %v522, %v706
        %v725 = vadd.f32 %v523, %v709
        %v726 = vadd.f32 %v524, %v711
        %v727 = vadd.f32 %v525, %v714
        %v728 = vadd.f32 %v526, %v716
        %v729 = vadd.f32 %v527, %v719
        %v730 = vadd.f32 %v528, %v721
        %731 = vst [vmem:[#allocation2] sm:$0xff] %v723
        %732 = vst [vmem:[#allocation2 + $0x8] sm:$0xff] %v724
        %733 = vst [vmem:[#allocation2 + $0x10] sm:$0xff] %v725
        %734 = vst [vmem:[#allocation2 + $0x18] sm:$0xff] %v726
        %735 = vst [vmem:[#allocation2 + $0x20] sm:$0xff] %v727
        %736 = vst [vmem:[#allocation2 + $0x28] sm:$0xff] %v728
        %737 = vst [vmem:[#allocation2 + $0x30] sm:$0xff] %v729
        %738 = vst [vmem:[#allocation2 + $0x38] sm:$0xff] %v730
        // Predicated region
        $region78: #{densenet_forward.12} parent=68 // pred_check
          %p739 = pneg %p423
        $region79: #{densenet_forward.12} parent=68 // pred_check_branch
          %741 = sbr.rel (%p739) target = $region81
        $region80: #{densenet_forward.12} parent=68 // pred_region
          %v742 = vld [vmem:[#allocation2] sm:$0xff]
          %v743 = vld [vmem:[#allocation2 + $0x8] sm:$0xff]
          %v744 = vld [vmem:[#allocation2 + $0x10] sm:$0xff]
          %v745 = vld [vmem:[#allocation2 + $0x18] sm:$0xff]
          %v746 = vld [vmem:[#allocation2 + $0x20] sm:$0xff]
          %v747 = vld [vmem:[#allocation2 + $0x28] sm:$0xff]
          %v748 = vld [vmem:[#allocation2 + $0x30] sm:$0xff]
          %v749 = vld [vmem:[#allocation2 + $0x38] sm:$0xff]
          %750 = vst [vmem:[%s402] sm:$0xff] %v742
          %751 = vst [vmem:[%s402 + $0x8] sm:$0xff] %v743
          %752 = vst [vmem:[%s402 + $0x10] sm:$0xff] %v744
          %753 = vst [vmem:[%s402 + $0x18] sm:$0xff] %v745
          %754 = vst [vmem:[%s402 + $0x20] sm:$0xff] %v746
          %755 = vst [vmem:[%s402 + $0x28] sm:$0xff] %v747
          %756 = vst [vmem:[%s402 + $0x30] sm:$0xff] %v748
          %757 = vst [vmem:[%s402 + $0x38] sm:$0xff] %v749
        $region81: #{densenet_forward.12} parent=68 // pred_fallthru
          _
        %s758 = sand.u32 %s125, 1
        %s759 = sand.u32 %s125, 1
        %s760 = smul.addr %s759, 64
        %s761 = scalar_lea.vmem [#allocation4], %s760
        // Predicated region
        $region82: #{densenet_forward.12} parent=68 // pred_check
          %p762 = pneg %p135
        $region83: #{densenet_forward.12} parent=68 // pred_check_branch
          %764 = sbr.rel (%p762) target = $region85
        $region84: #{densenet_forward.12} parent=68 // pred_region
          %s765 = smul.u32 8, %s19
          %s766 = smul.addr %s765, 3
          %s767 = sadd.s32 %s20, %s766
          %s768 = smul.addr %s767, 8
          %s769 = scalar_lea.vmem %s3, %s768
          // Predicated region
          $region86: #{densenet_forward.12} parent=84 // pred_check
            _
          $region87: #{densenet_forward.12} parent=84 // pred_check_branch
            %771 = sbr.rel (0) target = $region89
          $region88: #{densenet_forward.12} parent=84 // pred_region
            // Predicated region
            $region90: #{densenet_forward.12} parent=88 // pred_check
              _
            $region91: #{densenet_forward.12} parent=88 // pred_check_branch
              %773 = sbr.rel (0) target = $region93
            $region92: #{densenet_forward.12} parent=88 // pred_region
              // Predicated region
              $region105: #{densenet_forward.12} parent=92 // pred_check
                _
              $region106: #{densenet_forward.12} parent=92 // pred_check_branch
                %803 = sbr.rel (0) target = $region108
              $region107: #{densenet_forward.12} parent=92 // pred_region
                loop: start=0, step=1, limit=1
                $region109: #{densenet_forward.12} parent=107 // loop_pre_header
                  _
                $region110: #{densenet_forward.12} parent=107 // loop_header
                  %s805 = sphi 0, %s809
                  %p806 = scmp.ge.s32.totalorder %s805, 1
                  %s810 = sphi %s761, %s761
                  %s811 = sphi %s769, %s769
                $region111: #{densenet_forward.12} parent=107 // loop_header_branch
                  %808 = sbr.rel (%p806) target = $region115
                $region112: #{densenet_forward.12} parent=107 // loop_body
                  %v812 = vld [vmem:[%s810] sm:$0xff]
                  %813 = vst [vmem:[%s811] sm:$0xff] %v812
                  %v814 = vld [vmem:[%s810 + $0x8] sm:$0xff]
                  %815 = vst [vmem:[%s811 + $0x18] sm:$0xff] %v814
                  %v816 = vld [vmem:[%s810 + $0x10] sm:$0xff]
                  %817 = vst [vmem:[%s811 + $0x30] sm:$0xff] %v816
                  %v818 = vld [vmem:[%s810 + $0x18] sm:$0xff]
                  %819 = vst [vmem:[%s811 + $0x48] sm:$0xff] %v818
                  %v820 = vld [vmem:[%s810 + $0x20] sm:$0xff]
                  %821 = vst [vmem:[%s811 + $0x60] sm:$0xff] %v820
                  %v822 = vld [vmem:[%s810 + $0x28] sm:$0xff]
                  %823 = vst [vmem:[%s811 + $0x78] sm:$0xff] %v822
                  %v824 = vld [vmem:[%s810 + $0x30] sm:$0xff]
                  %825 = vst [vmem:[%s811 + $0x90] sm:$0xff] %v824
                  %v826 = vld [vmem:[%s810 + $0x38] sm:$0xff]
                  %827 = vst [vmem:[%s811 + $0xa8] sm:$0xff] %v826
                $region113: #{densenet_forward.12} parent=107 // loop_footer
                  %s809 = sadd.s32 1, %s805
                $region114: #{densenet_forward.12} parent=107 // loop_footer_branch
                  %804 = sbr.rel target = $region110
                $region115: #{densenet_forward.12} parent=107 // loop_exit
                  _
              $region108: #{densenet_forward.12} parent=92 // pred_fallthru
                _
              // Predicated region
              $region116: #{densenet_forward.12} parent=92 // pred_check
                _
              $region117: #{densenet_forward.12} parent=92 // pred_check_branch
                %829 = sbr.rel target = $region119
              $region118: #{densenet_forward.12} parent=92 // pred_region
                _
              $region119: #{densenet_forward.12} parent=92 // pred_fallthru
                _
            $region93: #{densenet_forward.12} parent=88 // pred_fallthru
              _
            // Predicated region
            $region94: #{densenet_forward.12} parent=88 // pred_check
              _
            $region95: #{densenet_forward.12} parent=88 // pred_check_branch
              %775 = sbr.rel target = $region97
            $region96: #{densenet_forward.12} parent=88 // pred_region
              %s777 = ssub.s32 256, 1
              loop: start=0, step=1, limit=1
              $region98: #{densenet_forward.12} parent=96 // loop_pre_header
                _
              $region99: #{densenet_forward.12} parent=96 // loop_header
                %s779 = sphi 0, %s783
                %p780 = scmp.ge.s32.totalorder %s779, 1
                %s784 = sphi %s761, %s761
                %s785 = sphi %s769, %s769
              $region100: #{densenet_forward.12} parent=96 // loop_header_branch
                %782 = sbr.rel (%p780) target = $region104
              $region101: #{densenet_forward.12} parent=96 // loop_body
                %v786 = vld [vmem:[%s784] sm:%s777]
                %787 = vst [vmem:[%s785] sm:%s777] %v786
                %v788 = vld [vmem:[%s784 + $0x8] sm:%s777]
                %789 = vst [vmem:[%s785 + $0x18] sm:%s777] %v788
                %v790 = vld [vmem:[%s784 + $0x10] sm:%s777]
                %791 = vst [vmem:[%s785 + $0x30] sm:%s777] %v790
                %v792 = vld [vmem:[%s784 + $0x18] sm:%s777]
                %793 = vst [vmem:[%s785 + $0x48] sm:%s777] %v792
                %v794 = vld [vmem:[%s784 + $0x20] sm:%s777]
                %795 = vst [vmem:[%s785 + $0x60] sm:%s777] %v794
                %v796 = vld [vmem:[%s784 + $0x28] sm:%s777]
                %797 = vst [vmem:[%s785 + $0x78] sm:%s777] %v796
                %v798 = vld [vmem:[%s784 + $0x30] sm:%s777]
                %799 = vst [vmem:[%s785 + $0x90] sm:%s777] %v798
                %v800 = vld [vmem:[%s784 + $0x38] sm:%s777]
                %801 = vst [vmem:[%s785 + $0xa8] sm:%s777] %v800
              $region102: #{densenet_forward.12} parent=96 // loop_footer
                %s783 = sadd.s32 1, %s779
              $region103: #{densenet_forward.12} parent=96 // loop_footer_branch
                %778 = sbr.rel target = $region99
              $region104: #{densenet_forward.12} parent=96 // loop_exit
                _
            $region97: #{densenet_forward.12} parent=88 // pred_fallthru
              _
          $region89: #{densenet_forward.12} parent=84 // pred_fallthru
            _
          %830 = vnop
        $region85: #{densenet_forward.12} parent=68 // pred_fallthru
          _
      $region69: #{densenet_forward.12} parent=5 // pred_fallthru
        _
      %p831 = scmp.le.s32.totalorder 2, %s9
      // Predicated region
      $region120: #{densenet_forward.12} parent=5 // pred_check
        %p832 = pneg %p831
      $region121: #{densenet_forward.12} parent=5 // pred_check_branch
        %834 = sbr.rel (%p832) target = $region123
      $region122: #{densenet_forward.12} parent=5 // pred_region
        %s835 = ssub.s32 %s9, 2
        // Predicated region
        $region124: #{densenet_forward.12} parent=122 // pred_check
          %p836 = pneg %p141
        $region125: #{densenet_forward.12} parent=122 // pred_check_branch
          %838 = sbr.rel (%p836) target = $region127
        $region126: #{densenet_forward.12} parent=122 // pred_region
          %s839 = sand.u32 %s126, 1
          %s840 = sand.u32 %s126, 1
          %s841 = smul.addr %s840, 64
          %s842 = scalar_lea.vmem [#allocation4], %s841
        $region127: #{densenet_forward.12} parent=122 // pred_fallthru
          _
      $region123: #{densenet_forward.12} parent=5 // pred_fallthru
        _
    $region6: #{densenet_forward.12} parent=1 // loop_footer
      %s13 = sadd.s32 1, %s9
    $region7: #{densenet_forward.12} parent=1 // loop_footer_branch
      %8 = sbr.rel target = $region3
    $region8: #{densenet_forward.12} parent=1 // loop_exit
      _

// kernel: densenet_forward.11
$region0: #{densenet_forward.11}
  #allocation0 [shape = 'u32[]', space=smem, size = 0x4, offset = 0x4, fixed_abs, tag = 'smem constant byte address 0x4 - core index']
  #allocation1 [shape = 'u32[72,128]{1,0:T(1,128)}', space=vmem, size = 0x9000, scoped, tag = 'internal scratch']
  #allocation2 [shape = 'f32[128,128]{1,0:T(8,128)}', space=vmem, size = 0x10000, scoped, tag = 'scratch operand']
  %s0 = inlined_call_operand.vmem [shape: bf16[512,256], index: 0, kind: input, shape index: {}]
  %s1 = inlined_call_operand.vmem [shape: bf16[256,128], index: 1, kind: input, shape index: {}]
  %s2 = inlined_call_operand.vmem [shape: f32[2,256], index: 2, kind: input, shape index: {}]
  %s3 = inlined_call_operand.vmem [shape: f32[512,128], index: 3, kind: output, shape index: {}]
  %s4 = sld [smem:[#allocation0]]
  $region53: #{densenet_forward.11} parent=0
    _
  %s6 = ssub.s32 1, %s4
  %s7 = scalar_select 0, %s6, %s4
  loop: start=0, step=1, limit=6
  $region2: #{densenet_forward.11} parent=0 // loop_pre_header
    _
  $region3: #{densenet_forward.11} parent=0 // loop_header
    %s9 = sphi 0, %s13
    %p10 = scmp.ge.s32.totalorder %s9, 6
    %s16 = sphi 0, %s35
    %s17 = sphi 0, %s31
    %s18 = sphi 0, %s27
    %s19 = sphi 0, %s16
    %s20 = sphi 0, %s17
    %s21 = sphi 0, %s18
    %s22 = sphi 0, %s19
    %s23 = sphi 0, %s20
    %s24 = sphi 0, %s21
    %s40 = sphi 0, %s42
    %s43 = sphi 0, %s40
    %s44 = sphi 0, %s43
    %s60 = sphi 0, %s44
    %s68 = sphi 0, %s70
    %s71 = sphi 0, %s68
    %s72 = sphi 0, %s71
    %s88 = sphi 0, %s72
    %s94 = sphi 0, %s96
    %s97 = sphi 0, %s94
    %s98 = sphi 0, %s97
    %s114 = sphi 0, %s98
    %s122 = sphi 0, %s124
    %s125 = sphi 0, %s122
    %s126 = sphi 0, %s125
    %s142 = sphi 0, %s126
  $region4: #{densenet_forward.11} parent=0 // loop_header_branch
    %12 = sbr.rel (%p10) target = $region8
  $region5: #{densenet_forward.11} parent=0 // loop_body
    %s14 = ssub.s32 %s9, 1
    %s15 = ssub.s32 %s9, 2
    %s25 = sadd.s32 1, %s18
    %p26 = scmp.ge.s32.totalorder %s25, 1
    %s27 = scalar_select %p26, 0, %s25
    %s28 = sadd.s32 1, %s17
    %s29 = scalar_select %p26, %s28, %s17
    %p30 = scmp.ge.s32.totalorder %s29, 1
    %s31 = scalar_select %p30, 0, %s29
    %s32 = sadd.s32 1, %s16
    %s33 = scalar_select %p30, %s32, %s16
    %p34 = scmp.ge.s32.totalorder %s33, 4
    %s35 = scalar_select %p34, 0, %s33
    %s36 = ssub.s32 %s16, %s35
    %s37 = ssub.s32 %s18, %s27
    %s38 = sor.u32 %s36, %s37
    %p39 = scmp.eq.s32.totalorder %s38, 0
    %s41 = sadd.s32 %s40, 1
    %s42 = scalar_select %p39, %s40, %s41
    %p45 = pneg %p39
    %p46 = scmp.eq.s32.totalorder %s9, 3
    %p47 = por %p45, %p46
    %p48 = scmp.ne.s32.totalorder %s40, %s43
    %p49 = scmp.eq.s32.totalorder %s9, 0
    %p50 = por %p48, %p49
    %p51 = scmp.ne.s32.totalorder %s40, %s43
    %p52 = scmp.eq.s32.totalorder %s14, 3
    %p53 = por %p51, %p52
    %p54 = scmp.ne.s32.totalorder %s43, %s44
    %p55 = scmp.eq.s32.totalorder %s14, 0
    %p56 = por %p54, %p55
    %p57 = scmp.ne.s32.totalorder %s43, %s44
    %p58 = scmp.eq.s32.totalorder %s15, 3
    %p59 = por %p57, %p58
    %p61 = scmp.ne.s32.totalorder %s44, %s60
    %p62 = scmp.eq.s32.totalorder %s15, 0
    %p63 = por %p61, %p62
    %s64 = ssub.s32 %s18, %s27
    %s65 = ssub.s32 %s17, %s31
    %s66 = sor.u32 %s64, %s65
    %p67 = scmp.eq.s32.totalorder %s66, 0
    %s69 = sadd.s32 %s68, 1
    %s70 = scalar_select %p67, %s68, %s69
    %p73 = pneg %p67
    %p74 = scmp.eq.s32.totalorder %s9, 3
    %p75 = por %p73, %p74
    %p76 = scmp.ne.s32.totalorder %s68, %s71
    %p77 = scmp.eq.s32.totalorder %s9, 0
    %p78 = por %p76, %p77
    %p79 = scmp.ne.s32.totalorder %s68, %s71
    %p80 = scmp.eq.s32.totalorder %s14, 3
    %p81 = por %p79, %p80
    %p82 = scmp.ne.s32.totalorder %s71, %s72
    %p83 = scmp.eq.s32.totalorder %s14, 0
    %p84 = por %p82, %p83
    %p85 = scmp.ne.s32.totalorder %s71, %s72
    %p86 = scmp.eq.s32.totalorder %s15, 3
    %p87 = por %p85, %p86
    %p89 = scmp.ne.s32.totalorder %s72, %s88
    %p90 = scmp.eq.s32.totalorder %s15, 0
    %p91 = por %p89, %p90
    %s92 = ssub.s32 %s18, %s27
    %p93 = scmp.eq.s32.totalorder %s92, 0
    %s95 = sadd.s32 %s94, 1
    %s96 = scalar_select %p93, %s94, %s95
    %p99 = pneg %p93
    %p100 = scmp.eq.s32.totalorder %s9, 3
    %p101 = por %p99, %p100
    %p102 = scmp.ne.s32.totalorder %s94, %s97
    %p103 = scmp.eq.s32.totalorder %s9, 0
    %p104 = por %p102, %p103
    %p105 = scmp.ne.s32.totalorder %s94, %s97
    %p106 = scmp.eq.s32.totalorder %s14, 3
    %p107 = por %p105, %p106
    %p108 = scmp.ne.s32.totalorder %s97, %s98
    %p109 = scmp.eq.s32.totalorder %s14, 0
    %p110 = por %p108, %p109
    %p111 = scmp.ne.s32.totalorder %s97, %s98
    %p112 = scmp.eq.s32.totalorder %s15, 3
    %p113 = por %p111, %p112
    %p115 = scmp.ne.s32.totalorder %s98, %s114
    %p116 = scmp.eq.s32.totalorder %s15, 0
    %p117 = por %p115, %p116
    %s118 = ssub.s32 %s16, %s35
    %s119 = ssub.s32 %s17, %s31
    %s120 = sor.u32 %s118, %s119
    %p121 = scmp.eq.s32.totalorder %s120, 0
    %s123 = sadd.s32 %s122, 1
    %s124 = scalar_select %p121, %s122, %s123
    %p127 = pneg %p121
    %p128 = scmp.eq.s32.totalorder %s9, 3
    %p129 = por %p127, %p128
    %p130 = scmp.ne.s32.totalorder %s122, %s125
    %p131 = scmp.eq.s32.totalorder %s9, 0
    %p132 = por %p130, %p131
    %p133 = scmp.ne.s32.totalorder %s122, %s125
    %p134 = scmp.eq.s32.totalorder %s14, 3
    %p135 = por %p133, %p134
    %p136 = scmp.ne.s32.totalorder %s125, %s126
    %p137 = scmp.eq.s32.totalorder %s14, 0
    %p138 = por %p136, %p137
    %p139 = scmp.ne.s32.totalorder %s125, %s126
    %p140 = scmp.eq.s32.totalorder %s15, 3
    %p141 = por %p139, %p140
    %p143 = scmp.ne.s32.totalorder %s126, %s142
    %p144 = scmp.eq.s32.totalorder %s15, 0
    %p145 = por %p143, %p144
    %p146 = scmp.le.s32.totalorder 1, %s9
    %p147 = scmp.lt.s32.totalorder %s9, 5
    %p148 = pnand %p146, %p147
    %p149 = pneg %p148
    // Predicated region
    $region9: #{densenet_forward.11} parent=5 // pred_check
      _
    $region10: #{densenet_forward.11} parent=5 // pred_check_branch
      %151 = sbr.rel (%p148) target = $region12
    $region11: #{densenet_forward.11} parent=5 // pred_region
      %s152 = ssub.s32 %s9, 1
      // Predicated region
      $region13: #{densenet_forward.11} parent=11 // pred_check
        %p153 = pneg %p84
      $region14: #{densenet_forward.11} parent=11 // pred_check_branch
        %155 = sbr.rel (%p153) target = $region16
      $region15: #{densenet_forward.11} parent=11 // pred_region
        %s156 = smul.u32 32, %s21
        %p157 = scmp.lt.s32.totalorder %s156, 31
        %s158 = scalar_select %p157, %s156, 31
        %p159 = scmp.lt.s32.totalorder %s20, 0
        %s160 = scalar_select %p159, %s20, 0
        %s161 = sadd.s32 %s160, %s158
        %s162 = smul.addr %s161, 4
        %s163 = scalar_lea.vmem %s1, %s162
        %s164 = smul.u32 32, %s21
      $region16: #{densenet_forward.11} parent=11 // pred_fallthru
        _
      // Predicated region
      $region17: #{densenet_forward.11} parent=11 // pred_check
        %p165 = pneg %p110
      $region18: #{densenet_forward.11} parent=11 // pred_check_branch
        %167 = sbr.rel (%p165) target = $region20
      $region19: #{densenet_forward.11} parent=11 // pred_region
        %s168 = smul.u32 2, %s21
        %p169 = scmp.lt.s32.totalorder %s168, 1
        %s170 = scalar_select %p169, %s168, 1
        %s171 = smul.addr %s170, 2
        %s172 = scalar_lea.vmem %s2, %s171
        %s173 = smul.u32 2, %s21
      $region20: #{densenet_forward.11} parent=11 // pred_fallthru
        _
    $region12: #{densenet_forward.11} parent=5 // pred_fallthru
      _
    %p174 = scmp.lt.s32.totalorder %s9, 4
    // Predicated region
    $region21: #{densenet_forward.11} parent=5 // pred_check
      %p175 = pneg %p174
    $region22: #{densenet_forward.11} parent=5 // pred_check_branch
      %177 = sbr.rel (%p175) target = $region24
    $region23: #{densenet_forward.11} parent=5 // pred_region
      // Predicated region
      $region25: #{densenet_forward.11} parent=23 // pred_check
        %p178 = pneg %p50
      $region26: #{densenet_forward.11} parent=23 // pred_check_branch
        %180 = sbr.rel (%p178) target = $region28
      $region27: #{densenet_forward.11} parent=23 // pred_region
        %s181 = smul.u32 16, %s16
        %s182 = smul.u32 2, %s18
        %p183 = scmp.lt.s32.totalorder %s181, 63
        %s184 = scalar_select %p183, %s181, 63
        %p185 = scmp.lt.s32.totalorder %s182, 1
        %s186 = scalar_select %p185, %s182, 1
        %s187 = smul.addr %s184, 2
        %s188 = sadd.s32 %s186, %s187
        %s189 = smul.addr %s188, 4
        %s190 = scalar_lea.vmem %s0, %s189
        %s191 = smul.u32 16, %s16
        %s192 = smul.u32 2, %s18
      $region28: #{densenet_forward.11} parent=23 // pred_fallthru
        _
    $region24: #{densenet_forward.11} parent=5 // pred_fallthru
      _
    %p193 = scmp.le.s32.totalorder 1, %s9
    %p194 = scmp.lt.s32.totalorder %s9, 5
    %p195 = pnand %p193, %p194
    %p196 = pneg %p195
    // Predicated region
    $region29: #{densenet_forward.11} parent=5 // pred_check
      _
    $region30: #{densenet_forward.11} parent=5 // pred_check_branch
      %198 = sbr.rel (%p195) target = $region32
    $region31: #{densenet_forward.11} parent=5 // pred_region
      %s199 = ssub.s32 %s9, 1
      %s200 = smul.u32 16, %s19
      %s201 = smul.u32 2, %s21
      %p202 = scmp.lt.s32.totalorder %s200, 63
      %s203 = scalar_select %p202, %s200, 63
      %p204 = scmp.lt.s32.totalorder %s201, 1
      %s205 = scalar_select %p204, %s201, 1
      %s206 = smul.addr %s203, 2
      %s207 = sadd.s32 %s205, %s206
      %s208 = smul.addr %s207, 4
      %s209 = scalar_lea.vmem %s0, %s208
      %p210 = pneg %p56
      %p211 = pneg %p53
      %s212 = smul.u32 32, %s21
      %p213 = scmp.lt.s32.totalorder %s212, 31
      %s214 = scalar_select %p213, %s212, 31
      %p215 = scmp.lt.s32.totalorder %s20, 0
      %s216 = scalar_select %p215, %s20, 0
      %s217 = sadd.s32 %s216, %s214
      %s218 = smul.addr %s217, 4
      %s219 = scalar_lea.vmem %s1, %s218
      %p220 = pneg %p84
      %p221 = pneg %p81
      %s222 = smul.u32 2, %s21
      %p223 = scmp.lt.s32.totalorder %s222, 1
      %s224 = scalar_select %p223, %s222, 1
      %s225 = smul.addr %s224, 2
      %s226 = scalar_lea.vmem %s2, %s225
      %p227 = pneg %p110
      %p228 = pneg %p107
      %p229 = pneg %p138
      %p230 = pneg %p135
      %s231 = smul.u32 16, %s19
      %p232 = scmp.lt.s32.totalorder %s231, 63
      %s233 = scalar_select %p232, %s231, 63
      %p234 = scmp.lt.s32.totalorder %s20, 0
      %s235 = scalar_select %p234, %s20, 0
      %s236 = sadd.s32 %s235, %s233
      %s237 = smul.addr %s236, 8
      %s238 = scalar_lea.vmem %s3, %s237
      %s239 = smul.u32 16, %s19
      %s240 = smul.u32 2, %s21
      %p241 = scmp.lt.s32.totalorder %s239, 63
      %s242 = scalar_select %p241, %s239, 63
      %p243 = scmp.lt.s32.totalorder %s240, 1
      %s244 = scalar_select %p243, %s240, 1
      %s245 = smul.addr %s242, 2
      %s246 = sadd.s32 %s244, %s245
      %s247 = smul.addr %s246, 4
      %s248 = scalar_lea.vmem %s0, %s247
      %s249 = smul.u32 16, %s19
      %s250 = smul.u32 2, %s21
      %s251 = smul.u32 32, %s21
      %p252 = scmp.lt.s32.totalorder %s251, 31
      %s253 = scalar_select %p252, %s251, 31
      %p254 = scmp.lt.s32.totalorder %s20, 0
      %s255 = scalar_select %p254, %s20, 0
      %s256 = sadd.s32 %s255, %s253
      %s257 = smul.addr %s256, 4
      %s258 = scalar_lea.vmem %s1, %s257
      %s259 = smul.u32 32, %s21
      %s260 = smul.u32 2, %s21
      %p261 = scmp.lt.s32.totalorder %s260, 1
      %s262 = scalar_select %p261, %s260, 1
      %s263 = smul.addr %s262, 2
      %s264 = scalar_lea.vmem %s2, %s263
      %s265 = smul.u32 2, %s21
      %s266 = smul.u32 16, %s19
      %p267 = scmp.lt.s32.totalorder %s266, 63
      %s268 = scalar_select %p267, %s266, 63
      %p269 = scmp.lt.s32.totalorder %s20, 0
      %s270 = scalar_select %p269, %s20, 0
      %s271 = sadd.s32 %s270, %s268
      %s272 = smul.addr %s271, 8
      %s273 = scalar_lea.vmem %s3, %s272
      %s274 = smul.u32 16, %s19
      %p275 = scmp.eq.s32.totalorder %s21, 0
      // Predicated region
      $region33: #{densenet_forward.11} parent=31 // pred_check
        %p276 = pneg %p275
      $region34: #{densenet_forward.11} parent=31 // pred_check_branch
        %278 = sbr.rel (%p276) target = $region36
      $region35: #{densenet_forward.11} parent=31 // pred_region
        %279 = vst [vmem:[#allocation2] sm:$0xff] 0.0
        %280 = vst [vmem:[#allocation2 + $0x8] sm:$0xff] 0.0
        %281 = vst [vmem:[#allocation2 + $0x10] sm:$0xff] 0.0
        %282 = vst [vmem:[#allocation2 + $0x18] sm:$0xff] 0.0
        %283 = vst [vmem:[#allocation2 + $0x20] sm:$0xff] 0.0
        %284 = vst [vmem:[#allocation2 + $0x28] sm:$0xff] 0.0
        %285 = vst [vmem:[#allocation2 + $0x30] sm:$0xff] 0.0
        %286 = vst [vmem:[#allocation2 + $0x38] sm:$0xff] 0.0
        %287 = vst [vmem:[#allocation2 + $0x40] sm:$0xff] 0.0
        %288 = vst [vmem:[#allocation2 + $0x48] sm:$0xff] 0.0
        %289 = vst [vmem:[#allocation2 + $0x50] sm:$0xff] 0.0
        %290 = vst [vmem:[#allocation2 + $0x58] sm:$0xff] 0.0
        %291 = vst [vmem:[#allocation2 + $0x60] sm:$0xff] 0.0
        %292 = vst [vmem:[#allocation2 + $0x68] sm:$0xff] 0.0
        %293 = vst [vmem:[#allocation2 + $0x70] sm:$0xff] 0.0
        %294 = vst [vmem:[#allocation2 + $0x78] sm:$0xff] 0.0
      $region36: #{densenet_forward.11} parent=31 // pred_fallthru
        _
      %v295 = vld [vmem:[%s264] sm:$0xf]
      %v296 = vld [vmem:[%s248] sm:$0xff]
      %v297 = vld [vmem:[%s248 + $0x8] sm:$0xff]
      %v298 = vld [vmem:[%s248 + $0x10] sm:$0xff]
      %v299 = vld [vmem:[%s248 + $0x18] sm:$0xff]
      %v300 = vld [vmem:[%s248 + $0x20] sm:$0xff]
      %v301 = vld [vmem:[%s248 + $0x28] sm:$0xff]
      %v302 = vld [vmem:[%s248 + $0x30] sm:$0xff]
      %v303 = vld [vmem:[%s248 + $0x38] sm:$0xff]
      %v304 = vld [vmem:[%s248 + $0x40] sm:$0xff]
      %v305 = vld [vmem:[%s248 + $0x48] sm:$0xff]
      %v306 = vld [vmem:[%s248 + $0x50] sm:$0xff]
      %v307 = vld [vmem:[%s248 + $0x58] sm:$0xff]
      %v308 = vld [vmem:[%s248 + $0x60] sm:$0xff]
      %v309 = vld [vmem:[%s248 + $0x68] sm:$0xff]
      %v310 = vld [vmem:[%s248 + $0x70] sm:$0xff]
      %v311 = vld [vmem:[%s248 + $0x78] sm:$0xff]
      %v312 = vunpack.c.l.bf16 %v296
      %v313 = vunpack.c.h.bf16 %v296
      %v314 = vunpack.c.l.bf16 %v297
      %v315 = vunpack.c.h.bf16 %v297
      %v316 = vunpack.c.l.bf16 %v298
      %v317 = vunpack.c.h.bf16 %v298
      %v318 = vunpack.c.l.bf16 %v299
      %v319 = vunpack.c.h.bf16 %v299
      %v320 = vunpack.c.l.bf16 %v300
      %v321 = vunpack.c.h.bf16 %v300
      %v322 = vunpack.c.l.bf16 %v301
      %v323 = vunpack.c.h.bf16 %v301
      %v324 = vunpack.c.l.bf16 %v302
      %v325 = vunpack.c.h.bf16 %v302
      %v326 = vunpack.c.l.bf16 %v303
      %v327 = vunpack.c.h.bf16 %v303
      %v328 = vunpack.c.l.bf16 %v304
      %v329 = vunpack.c.h.bf16 %v304
      %v330 = vunpack.c.l.bf16 %v305
      %v331 = vunpack.c.h.bf16 %v305
      %v332 = vunpack.c.l.bf16 %v306
      %v333 = vunpack.c.h.bf16 %v306
      %v334 = vunpack.c.l.bf16 %v307
      %v335 = vunpack.c.h.bf16 %v307
      %v336 = vunpack.c.l.bf16 %v308
      %v337 = vunpack.c.h.bf16 %v308
      %v338 = vunpack.c.l.bf16 %v309
      %v339 = vunpack.c.h.bf16 %v309
      %v340 = vunpack.c.l.bf16 %v310
      %v341 = vunpack.c.h.bf16 %v310
      %v342 = vunpack.c.l.bf16 %v311
      %v343 = vunpack.c.h.bf16 %v311
      %v345 = vperm.slane %v295, 0
      %v346 = vperm.slane %v295, 2
      %v349 = vperm.slane %v345, 0
      %v350 = vperm.slane %v346, 0
      %v351 = vmul.f32 %v312, %v349
      %v352 = vmul.f32 %v313, %v350
      %v353 = vmul.f32 %v314, %v349
      %v354 = vmul.f32 %v315, %v350
      %v355 = vmul.f32 %v316, %v349
      %v356 = vmul.f32 %v317, %v350
      %v357 = vmul.f32 %v318, %v349
      %v358 = vmul.f32 %v319, %v350
      %v359 = vmul.f32 %v320, %v349
      %v360 = vmul.f32 %v321, %v350
      %v361 = vmul.f32 %v322, %v349
      %v362 = vmul.f32 %v323, %v350
      %v363 = vmul.f32 %v324, %v349
      %v364 = vmul.f32 %v325, %v350
      %v365 = vmul.f32 %v326, %v349
      %v366 = vmul.f32 %v327, %v350
      %v367 = vmul.f32 %v328, %v349
      %v368 = vmul.f32 %v329, %v350
      %v369 = vmul.f32 %v330, %v349
      %v370 = vmul.f32 %v331, %v350
      %v371 = vmul.f32 %v332, %v349
      %v372 = vmul.f32 %v333, %v350
      %v373 = vmul.f32 %v334, %v349
      %v374 = vmul.f32 %v335, %v350
      %v375 = vmul.f32 %v336, %v349
      %v376 = vmul.f32 %v337, %v350
      %v377 = vmul.f32 %v338, %v349
      %v378 = vmul.f32 %v339, %v350
      %v379 = vmul.f32 %v340, %v349
      %v380 = vmul.f32 %v341, %v350
      %v381 = vmul.f32 %v342, %v349
      %v382 = vmul.f32 %v343, %v350
      %v383 = vperm.slane %v295, 1
      %v384 = vperm.slane %v295, 3
      %v387 = vperm.slane %v383, 1
      %v388 = vperm.slane %v384, 1
      %v389 = vadd.f32 %v351, %v387
      %v390 = vadd.f32 %v352, %v388
      %v391 = vadd.f32 %v353, %v387
      %v392 = vadd.f32 %v354, %v388
      %v393 = vadd.f32 %v355, %v387
      %v394 = vadd.f32 %v356, %v388
      %v395 = vadd.f32 %v357, %v387
      %v396 = vadd.f32 %v358, %v388
      %v397 = vadd.f32 %v359, %v387
      %v398 = vadd.f32 %v360, %v388
      %v399 = vadd.f32 %v361, %v387
      %v400 = vadd.f32 %v362, %v388
      %v401 = vadd.f32 %v363, %v387
      %v402 = vadd.f32 %v364, %v388
      %v403 = vadd.f32 %v365, %v387
      %v404 = vadd.f32 %v366, %v388
      %v405 = vadd.f32 %v367, %v387
      %v406 = vadd.f32 %v368, %v388
      %v407 = vadd.f32 %v369, %v387
      %v408 = vadd.f32 %v370, %v388
      %v409 = vadd.f32 %v371, %v387
      %v410 = vadd.f32 %v372, %v388
      %v411 = vadd.f32 %v373, %v387
      %v412 = vadd.f32 %v374, %v388
      %v413 = vadd.f32 %v375, %v387
      %v414 = vadd.f32 %v376, %v388
      %v415 = vadd.f32 %v377, %v387
      %v416 = vadd.f32 %v378, %v388
      %v417 = vadd.f32 %v379, %v387
      %v418 = vadd.f32 %v380, %v388
      %v419 = vadd.f32 %v381, %v387
      %v420 = vadd.f32 %v382, %v388
      %v421 = vld [vmem:[#allocation2] sm:$0xff]
      %v422 = vld [vmem:[#allocation2 + $0x8] sm:$0xff]
      %v423 = vld [vmem:[#allocation2 + $0x10] sm:$0xff]
      %v424 = vld [vmem:[#allocation2 + $0x18] sm:$0xff]
      %v425 = vld [vmem:[#allocation2 + $0x20] sm:$0xff]
      %v426 = vld [vmem:[#allocation2 + $0x28] sm:$0xff]
      %v427 = vld [vmem:[#allocation2 + $0x30] sm:$0xff]
      %v428 = vld [vmem:[#allocation2 + $0x38] sm:$0xff]
      %v429 = vld [vmem:[#allocation2 + $0x40] sm:$0xff]
      %v430 = vld [vmem:[#allocation2 + $0x48] sm:$0xff]
      %v431 = vld [vmem:[#allocation2 + $0x50] sm:$0xff]
      %v432 = vld [vmem:[#allocation2 + $0x58] sm:$0xff]
      %v433 = vld [vmem:[#allocation2 + $0x60] sm:$0xff]
      %v434 = vld [vmem:[#allocation2 + $0x68] sm:$0xff]
      %v435 = vld [vmem:[#allocation2 + $0x70] sm:$0xff]
      %v436 = vld [vmem:[#allocation2 + $0x78] sm:$0xff]
      %v437 = vpack.c.bf16 %v391, %v389
      %v438 = vpack.c.bf16 %v392, %v390
      %v439 = vpack.c.bf16 %v395, %v393
      %v440 = vpack.c.bf16 %v396, %v394
      %v441 = vpack.c.bf16 %v399, %v397
      %v442 = vpack.c.bf16 %v400, %v398
      %v443 = vpack.c.bf16 %v403, %v401
      %v444 = vpack.c.bf16 %v404, %v402
      %v445 = vpack.c.bf16 %v407, %v405
      %v446 = vpack.c.bf16 %v408, %v406
      %v447 = vpack.c.bf16 %v411, %v409
      %v448 = vpack.c.bf16 %v412, %v410
      %v449 = vpack.c.bf16 %v415, %v413
      %v450 = vpack.c.bf16 %v416, %v414
      %v451 = vpack.c.bf16 %v419, %v417
      %v452 = vpack.c.bf16 %v420, %v418
      %v453 = vld [vmem:[%s258] sm:$0xf]
      %v454 = vld [vmem:[%s258 + $0x4] sm:$0xf]
      %v455 = vld [vmem:[%s258 + $0x8] sm:$0xf]
      %v456 = vld [vmem:[%s258 + $0xc] sm:$0xf]
      %v457 = vld [vmem:[%s258 + $0x10] sm:$0xf]
      %v458 = vld [vmem:[%s258 + $0x14] sm:$0xf]
      %v459 = vld [vmem:[%s258 + $0x18] sm:$0xf]
      %v460 = vld [vmem:[%s258 + $0x1c] sm:$0xf]
      %v461 = vld [vmem:[%s258 + $0x20] sm:$0xf]
      %v462 = vld [vmem:[%s258 + $0x24] sm:$0xf]
      %v463 = vld [vmem:[%s258 + $0x28] sm:$0xf]
      %v464 = vld [vmem:[%s258 + $0x2c] sm:$0xf]
      %v465 = vld [vmem:[%s258 + $0x30] sm:$0xf]
      %v466 = vld [vmem:[%s258 + $0x34] sm:$0xf]
      %v467 = vld [vmem:[%s258 + $0x38] sm:$0xf]
      %v468 = vld [vmem:[%s258 + $0x3c] sm:$0xf]
      %v469 = vld [vmem:[%s258 + $0x40] sm:$0xf]
      %v470 = vld [vmem:[%s258 + $0x44] sm:$0xf]
      %v471 = vld [vmem:[%s258 + $0x48] sm:$0xf]
      %v472 = vld [vmem:[%s258 + $0x4c] sm:$0xf]
      %v473 = vld [vmem:[%s258 + $0x50] sm:$0xf]
      %v474 = vld [vmem:[%s258 + $0x54] sm:$0xf]
      %v475 = vld [vmem:[%s258 + $0x58] sm:$0xf]
      %v476 = vld [vmem:[%s258 + $0x5c] sm:$0xf]
      %v477 = vld [vmem:[%s258 + $0x60] sm:$0xf]
      %v478 = vld [vmem:[%s258 + $0x64] sm:$0xf]
      %v479 = vld [vmem:[%s258 + $0x68] sm:$0xf]
      %v480 = vld [vmem:[%s258 + $0x6c] sm:$0xf]
      %v481 = vld [vmem:[%s258 + $0x70] sm:$0xf]
      %v482 = vld [vmem:[%s258 + $0x74] sm:$0xf]
      %v483 = vld [vmem:[%s258 + $0x78] sm:$0xf]
      %v484 = vld [vmem:[%s258 + $0x7c] sm:$0xf]
      %v517 = vunpack.c.l.b16 %v453
      %v518 = vunpack.c.l.b16 %v454
      %v519 = vunpack.c.l.b16 %v455
      %v520 = vunpack.c.l.b16 %v456
      %v521 = vunpack.c.l.b16 %v457
      %v522 = vunpack.c.l.b16 %v458
      %v523 = vunpack.c.l.b16 %v459
      %v524 = vunpack.c.l.b16 %v460
      %v525 = vunpack.c.l.b16 %v461
      %v526 = vunpack.c.l.b16 %v462
      %v527 = vunpack.c.l.b16 %v463
      %v528 = vunpack.c.l.b16 %v464
      %v529 = vunpack.c.l.b16 %v465
      %v530 = vunpack.c.l.b16 %v466
      %v531 = vunpack.c.l.b16 %v467
      %v532 = vunpack.c.l.b16 %v468
      %v533 = vunpack.c.l.b16 %v469
      %v534 = vunpack.c.l.b16 %v470
      %v535 = vunpack.c.l.b16 %v471
      %v536 = vunpack.c.l.b16 %v472
      %v537 = vunpack.c.l.b16 %v473
      %v538 = vunpack.c.l.b16 %v474
      %v539 = vunpack.c.l.b16 %v475
      %v540 = vunpack.c.l.b16 %v476
      %v541 = vunpack.c.l.b16 %v477
      %v542 = vunpack.c.l.b16 %v478
      %v543 = vunpack.c.l.b16 %v479
      %v544 = vunpack.c.l.b16 %v480
      %v545 = vunpack.c.l.b16 %v481
      %v546 = vunpack.c.l.b16 %v482
      %v547 = vunpack.c.l.b16 %v483
      %v548 = vunpack.c.l.b16 %v484
      %v549 = vpack.c.b16 %v518, %v517
      %v550 = vpack.c.b16 %v520, %v519
      %v551 = vpack.c.b16 %v522, %v521
      %v552 = vpack.c.b16 %v524, %v523
      %v553 = vpack.c.b16 %v526, %v525
      %v554 = vpack.c.b16 %v528, %v527
      %v555 = vpack.c.b16 %v530, %v529
      %v556 = vpack.c.b16 %v532, %v531
      %v557 = vpack.c.b16 %v534, %v533
      %v558 = vpack.c.b16 %v536, %v535
      %v559 = vpack.c.b16 %v538, %v537
      %v560 = vpack.c.b16 %v540, %v539
      %v561 = vpack.c.b16 %v542, %v541
      %v562 = vpack.c.b16 %v544, %v543
      %v563 = vpack.c.b16 %v546, %v545
      %v564 = vpack.c.b16 %v548, %v547
      %581 = vmatpush.bf16.msra.mxu0 %v556
      %582 = vmatpush.bf16.msra.mxu0 %v555
      %583 = vmatpush.bf16.msra.mxu0 %v554
      %584 = vmatpush.bf16.msra.mxu0 %v553
      %585 = vmatpush.bf16.msra.mxu0 %v552
      %586 = vmatpush.bf16.msra.mxu0 %v551
      %587 = vmatpush.bf16.msra.mxu0 %v550
      %588 = vmatpush.bf16.msra.mxu0 %v549
      %589 = vmatmul.bf16.gmra.mxu0 %v437
      %v590 = vpop.f32.mrf.mxu0
      %v591 = vadd.f32 0.0, %v590
      %v592 = vpop.f32.mrf.mxu0
      %v593 = vadd.f32 0.0, %v592
      %594 = vmatmul.bf16.gmra.mxu0 %v439
      %v595 = vpop.f32.mrf.mxu0
      %v596 = vadd.f32 0.0, %v595
      %v597 = vpop.f32.mrf.mxu0
      %v598 = vadd.f32 0.0, %v597
      %599 = vmatmul.bf16.gmra.mxu0 %v441
      %v600 = vpop.f32.mrf.mxu0
      %v601 = vadd.f32 0.0, %v600
      %v602 = vpop.f32.mrf.mxu0
      %v603 = vadd.f32 0.0, %v602
      %604 = vmatmul.bf16.gmra.mxu0 %v443
      %v605 = vpop.f32.mrf.mxu0
      %v606 = vadd.f32 0.0, %v605
      %v607 = vpop.f32.mrf.mxu0
      %v608 = vadd.f32 0.0, %v607
      %609 = vmatmul.bf16.gmra.mxu0 %v445
      %v610 = vpop.f32.mrf.mxu0
      %v611 = vadd.f32 0.0, %v610
      %v612 = vpop.f32.mrf.mxu0
      %v613 = vadd.f32 0.0, %v612
      %614 = vmatmul.bf16.gmra.mxu0 %v447
      %v615 = vpop.f32.mrf.mxu0
      %v616 = vadd.f32 0.0, %v615
      %v617 = vpop.f32.mrf.mxu0
      %v618 = vadd.f32 0.0, %v617
      %619 = vmatmul.bf16.gmra.mxu0 %v449
      %v620 = vpop.f32.mrf.mxu0
      %v621 = vadd.f32 0.0, %v620
      %v622 = vpop.f32.mrf.mxu0
      %v623 = vadd.f32 0.0, %v622
      %624 = vmatmul.bf16.gmra.mxu0 %v451
      %v625 = vpop.f32.mrf.mxu0
      %v626 = vadd.f32 0.0, %v625
      %v627 = vpop.f32.mrf.mxu0
      %v628 = vadd.f32 0.0, %v627
      %629 = vdwg.mxu0
      %630 = vmatpush.bf16.msra.mxu0 %v564
      %631 = vmatpush.bf16.msra.mxu0 %v563
      %632 = vmatpush.bf16.msra.mxu0 %v562
      %633 = vmatpush.bf16.msra.mxu0 %v561
      %634 = vmatpush.bf16.msra.mxu0 %v560
      %635 = vmatpush.bf16.msra.mxu0 %v559
      %636 = vmatpush.bf16.msra.mxu0 %v558
      %637 = vmatpush.bf16.msra.mxu0 %v557
      %638 = vmatmul.bf16.gmra.mxu0 %v438
      %v639 = vpop.f32.mrf.mxu0
      %v640 = vadd.f32 %v591, %v639
      %v641 = vpop.f32.mrf.mxu0
      %v642 = vadd.f32 %v593, %v641
      %643 = vmatmul.bf16.gmra.mxu0 %v440
      %v644 = vpop.f32.mrf.mxu0
      %v645 = vadd.f32 %v596, %v644
      %v646 = vpop.f32.mrf.mxu0
      %v647 = vadd.f32 %v598, %v646
      %648 = vmatmul.bf16.gmra.mxu0 %v442
      %v649 = vpop.f32.mrf.mxu0
      %v650 = vadd.f32 %v601, %v649
      %v651 = vpop.f32.mrf.mxu0
      %v652 = vadd.f32 %v603, %v651
      %653 = vmatmul.bf16.gmra.mxu0 %v444
      %v654 = vpop.f32.mrf.mxu0
      %v655 = vadd.f32 %v606, %v654
      %v656 = vpop.f32.mrf.mxu0
      %v657 = vadd.f32 %v608, %v656
      %658 = vmatmul.bf16.gmra.mxu0 %v446
      %v659 = vpop.f32.mrf.mxu0
      %v660 = vadd.f32 %v611, %v659
      %v661 = vpop.f32.mrf.mxu0
      %v662 = vadd.f32 %v613, %v661
      %663 = vmatmul.bf16.gmra.mxu0 %v448
      %v664 = vpop.f32.mrf.mxu0
      %v665 = vadd.f32 %v616, %v664
      %v666 = vpop.f32.mrf.mxu0
      %v667 = vadd.f32 %v618, %v666
      %668 = vmatmul.bf16.gmra.mxu0 %v450
      %v669 = vpop.f32.mrf.mxu0
      %v670 = vadd.f32 %v621, %v669
      %v671 = vpop.f32.mrf.mxu0
      %v672 = vadd.f32 %v623, %v671
      %673 = vmatmul.bf16.gmra.mxu0 %v452
      %v674 = vpop.f32.mrf.mxu0
      %v675 = vadd.f32 %v626, %v674
      %v676 = vpop.f32.mrf.mxu0
      %v677 = vadd.f32 %v628, %v676
      %678 = vdwg.mxu0
      %v679 = vadd.f32 %v421, %v640
      %v680 = vadd.f32 %v422, %v642
      %v681 = vadd.f32 %v423, %v645
      %v682 = vadd.f32 %v424, %v647
      %v683 = vadd.f32 %v425, %v650
      %v684 = vadd.f32 %v426, %v652
      %v685 = vadd.f32 %v427, %v655
      %v686 = vadd.f32 %v428, %v657
      %v687 = vadd.f32 %v429, %v660
      %v688 = vadd.f32 %v430, %v662
      %v689 = vadd.f32 %v431, %v665
      %v690 = vadd.f32 %v432, %v667
      %v691 = vadd.f32 %v433, %v670
      %v692 = vadd.f32 %v434, %v672
      %v693 = vadd.f32 %v435, %v675
      %v694 = vadd.f32 %v436, %v677
      %695 = vst [vmem:[#allocation2] sm:$0xff] %v679
      %696 = vst [vmem:[#allocation2 + $0x8] sm:$0xff] %v680
      %697 = vst [vmem:[#allocation2 + $0x10] sm:$0xff] %v681
      %698 = vst [vmem:[#allocation2 + $0x18] sm:$0xff] %v682
      %699 = vst [vmem:[#allocation2 + $0x20] sm:$0xff] %v683
      %700 = vst [vmem:[#allocation2 + $0x28] sm:$0xff] %v684
      %701 = vst [vmem:[#allocation2 + $0x30] sm:$0xff] %v685
      %702 = vst [vmem:[#allocation2 + $0x38] sm:$0xff] %v686
      %703 = vst [vmem:[#allocation2 + $0x40] sm:$0xff] %v687
      %704 = vst [vmem:[#allocation2 + $0x48] sm:$0xff] %v688
      %705 = vst [vmem:[#allocation2 + $0x50] sm:$0xff] %v689
      %706 = vst [vmem:[#allocation2 + $0x58] sm:$0xff] %v690
      %707 = vst [vmem:[#allocation2 + $0x60] sm:$0xff] %v691
      %708 = vst [vmem:[#allocation2 + $0x68] sm:$0xff] %v692
      %709 = vst [vmem:[#allocation2 + $0x70] sm:$0xff] %v693
      %710 = vst [vmem:[#allocation2 + $0x78] sm:$0xff] %v694
      // Predicated region
      $region37: #{densenet_forward.11} parent=31 // pred_check
        %p711 = pneg %p275
      $region38: #{densenet_forward.11} parent=31 // pred_check_branch
        %713 = sbr.rel (%p711) target = $region40
      $region39: #{densenet_forward.11} parent=31 // pred_region
        %v714 = vld [vmem:[#allocation2] sm:$0xff]
        %v715 = vld [vmem:[#allocation2 + $0x8] sm:$0xff]
        %v716 = vld [vmem:[#allocation2 + $0x10] sm:$0xff]
        %v717 = vld [vmem:[#allocation2 + $0x18] sm:$0xff]
        %v718 = vld [vmem:[#allocation2 + $0x20] sm:$0xff]
        %v719 = vld [vmem:[#allocation2 + $0x28] sm:$0xff]
        %v720 = vld [vmem:[#allocation2 + $0x30] sm:$0xff]
        %v721 = vld [vmem:[#allocation2 + $0x38] sm:$0xff]
        %v722 = vld [vmem:[#allocation2 + $0x40] sm:$0xff]
        %v723 = vld [vmem:[#allocation2 + $0x48] sm:$0xff]
        %v724 = vld [vmem:[#allocation2 + $0x50] sm:$0xff]
        %v725 = vld [vmem:[#allocation2 + $0x58] sm:$0xff]
        %v726 = vld [vmem:[#allocation2 + $0x60] sm:$0xff]
        %v727 = vld [vmem:[#allocation2 + $0x68] sm:$0xff]
        %v728 = vld [vmem:[#allocation2 + $0x70] sm:$0xff]
        %v729 = vld [vmem:[#allocation2 + $0x78] sm:$0xff]
        %730 = vst [vmem:[%s273] sm:$0xff] %v714
        %731 = vst [vmem:[%s273 + $0x8] sm:$0xff] %v715
        %732 = vst [vmem:[%s273 + $0x10] sm:$0xff] %v716
        %733 = vst [vmem:[%s273 + $0x18] sm:$0xff] %v717
        %734 = vst [vmem:[%s273 + $0x20] sm:$0xff] %v718
        %735 = vst [vmem:[%s273 + $0x28] sm:$0xff] %v719
        %736 = vst [vmem:[%s273 + $0x30] sm:$0xff] %v720
        %737 = vst [vmem:[%s273 + $0x38] sm:$0xff] %v721
        %738 = vst [vmem:[%s273 + $0x40] sm:$0xff] %v722
        %739 = vst [vmem:[%s273 + $0x48] sm:$0xff] %v723
        %740 = vst [vmem:[%s273 + $0x50] sm:$0xff] %v724
        %741 = vst [vmem:[%s273 + $0x58] sm:$0xff] %v725
        %742 = vst [vmem:[%s273 + $0x60] sm:$0xff] %v726
        %743 = vst [vmem:[%s273 + $0x68] sm:$0xff] %v727
        %744 = vst [vmem:[%s273 + $0x70] sm:$0xff] %v728
        %745 = vst [vmem:[%s273 + $0x78] sm:$0xff] %v729
      $region40: #{densenet_forward.11} parent=31 // pred_fallthru
        _
      %s746 = smul.u32 16, %s19
      %p747 = scmp.lt.s32.totalorder %s746, 63
      %s748 = scalar_select %p747, %s746, 63
      %p749 = scmp.lt.s32.totalorder %s20, 0
      %s750 = scalar_select %p749, %s20, 0
      %s751 = sadd.s32 %s750, %s748
      %s752 = smul.addr %s751, 8
      %s753 = scalar_lea.vmem %s3, %s752
      // Predicated region
      $region41: #{densenet_forward.11} parent=31 // pred_check
        %p754 = pneg %p135
      $region42: #{densenet_forward.11} parent=31 // pred_check_branch
        %756 = sbr.rel (%p754) target = $region44
      $region43: #{densenet_forward.11} parent=31 // pred_region
        %s757 = smul.u32 16, %s19
      $region44: #{densenet_forward.11} parent=31 // pred_fallthru
        _
    $region32: #{densenet_forward.11} parent=5 // pred_fallthru
      _
    %p758 = scmp.le.s32.totalorder 2, %s9
    // Predicated region
    $region45: #{densenet_forward.11} parent=5 // pred_check
      %p759 = pneg %p758
    $region46: #{densenet_forward.11} parent=5 // pred_check_branch
      %761 = sbr.rel (%p759) target = $region48
    $region47: #{densenet_forward.11} parent=5 // pred_region
      %s762 = ssub.s32 %s9, 2
      // Predicated region
      $region49: #{densenet_forward.11} parent=47 // pred_check
        %p763 = pneg %p141
      $region50: #{densenet_forward.11} parent=47 // pred_check_branch
        %765 = sbr.rel (%p763) target = $region52
      $region51: #{densenet_forward.11} parent=47 // pred_region
        %s766 = smul.u32 16, %s22
        %p767 = scmp.lt.s32.totalorder %s766, 63
        %s768 = scalar_select %p767, %s766, 63
        %p769 = scmp.lt.s32.totalorder %s23, 0
        %s770 = scalar_select %p769, %s23, 0
        %s771 = sadd.s32 %s770, %s768
        %s772 = smul.addr %s771, 8
        %s773 = scalar_lea.vmem %s3, %s772
      $region52: #{densenet_forward.11} parent=47 // pred_fallthru
        _
    $region48: #{densenet_forward.11} parent=5 // pred_fallthru
      _
  $region6: #{densenet_forward.11} parent=0 // loop_footer
    %s13 = sadd.s32 1, %s9
  $region7: #{densenet_forward.11} parent=0 // loop_footer_branch
    %8 = sbr.rel target = $region3
  $region8: #{densenet_forward.11} parent=0 // loop_exit
    _

// kernel: densenet_forward.16
$region0: #{densenet_forward.16}
  #allocation0 [shape = 'u32[]', space=smem, size = 0x4, offset = 0x4, fixed_abs, tag = 'smem constant byte address 0x4 - core index']
  #allocation1 [shape = 'u32[72,128]{1,0:T(1,128)}', space=vmem, size = 0x9000, scoped, tag = 'internal scratch']
  #allocation2 [shape = 'f32[64,128]{1,0:T(8,128)}', space=vmem, size = 0x8000, scoped, tag = 'scratch operand']
  %s0 = inlined_call_operand.vmem [shape: bf16[128,256], index: 0, kind: input, shape index: {}]
  %s1 = inlined_call_operand.vmem [shape: bf16[256,128], index: 1, kind: input, shape index: {}]
  %s2 = inlined_call_operand.vmem [shape: f32[2,256], index: 2, kind: input, shape index: {}]
  %s3 = inlined_call_operand.vmem [shape: f32[128,128], index: 3, kind: output, shape index: {}]
  %s4 = sld [smem:[#allocation0]]
  $region53: #{densenet_forward.16} parent=0
    _
  %s6 = ssub.s32 1, %s4
  %s7 = scalar_select 0, %s6, %s4
  loop: start=0, step=1, limit=4
  $region2: #{densenet_forward.16} parent=0 // loop_pre_header
    _
  $region3: #{densenet_forward.16} parent=0 // loop_header
    %s9 = sphi 0, %s13
    %p10 = scmp.ge.s32.totalorder %s9, 4
    %s16 = sphi 0, %s35
    %s17 = sphi 0, %s31
    %s18 = sphi 0, %s27
    %s19 = sphi 0, %s16
    %s20 = sphi 0, %s17
    %s21 = sphi 0, %s18
    %s22 = sphi 0, %s19
    %s23 = sphi 0, %s20
    %s24 = sphi 0, %s21
    %s40 = sphi 0, %s42
    %s43 = sphi 0, %s40
    %s44 = sphi 0, %s43
    %s60 = sphi 0, %s44
    %s68 = sphi 0, %s70
    %s71 = sphi 0, %s68
    %s72 = sphi 0, %s71
    %s88 = sphi 0, %s72
    %s94 = sphi 0, %s96
    %s97 = sphi 0, %s94
    %s98 = sphi 0, %s97
    %s114 = sphi 0, %s98
    %s122 = sphi 0, %s124
    %s125 = sphi 0, %s122
    %s126 = sphi 0, %s125
    %s142 = sphi 0, %s126
  $region4: #{densenet_forward.16} parent=0 // loop_header_branch
    %12 = sbr.rel (%p10) target = $region8
  $region5: #{densenet_forward.16} parent=0 // loop_body
    %s14 = ssub.s32 %s9, 1
    %s15 = ssub.s32 %s9, 2
    %s25 = sadd.s32 1, %s18
    %p26 = scmp.ge.s32.totalorder %s25, 1
    %s27 = scalar_select %p26, 0, %s25
    %s28 = sadd.s32 1, %s17
    %s29 = scalar_select %p26, %s28, %s17
    %p30 = scmp.ge.s32.totalorder %s29, 1
    %s31 = scalar_select %p30, 0, %s29
    %s32 = sadd.s32 1, %s16
    %s33 = scalar_select %p30, %s32, %s16
    %p34 = scmp.ge.s32.totalorder %s33, 2
    %s35 = scalar_select %p34, 0, %s33
    %s36 = ssub.s32 %s16, %s35
    %s37 = ssub.s32 %s18, %s27
    %s38 = sor.u32 %s36, %s37
    %p39 = scmp.eq.s32.totalorder %s38, 0
    %s41 = sadd.s32 %s40, 1
    %s42 = scalar_select %p39, %s40, %s41
    %p45 = pneg %p39
    %p46 = scmp.eq.s32.totalorder %s9, 1
    %p47 = por %p45, %p46
    %p48 = scmp.ne.s32.totalorder %s40, %s43
    %p49 = scmp.eq.s32.totalorder %s9, 0
    %p50 = por %p48, %p49
    %p51 = scmp.ne.s32.totalorder %s40, %s43
    %p52 = scmp.eq.s32.totalorder %s14, 1
    %p53 = por %p51, %p52
    %p54 = scmp.ne.s32.totalorder %s43, %s44
    %p55 = scmp.eq.s32.totalorder %s14, 0
    %p56 = por %p54, %p55
    %p57 = scmp.ne.s32.totalorder %s43, %s44
    %p58 = scmp.eq.s32.totalorder %s15, 1
    %p59 = por %p57, %p58
    %p61 = scmp.ne.s32.totalorder %s44, %s60
    %p62 = scmp.eq.s32.totalorder %s15, 0
    %p63 = por %p61, %p62
    %s64 = ssub.s32 %s18, %s27
    %s65 = ssub.s32 %s17, %s31
    %s66 = sor.u32 %s64, %s65
    %p67 = scmp.eq.s32.totalorder %s66, 0
    %s69 = sadd.s32 %s68, 1
    %s70 = scalar_select %p67, %s68, %s69
    %p73 = pneg %p67
    %p74 = scmp.eq.s32.totalorder %s9, 1
    %p75 = por %p73, %p74
    %p76 = scmp.ne.s32.totalorder %s68, %s71
    %p77 = scmp.eq.s32.totalorder %s9, 0
    %p78 = por %p76, %p77
    %p79 = scmp.ne.s32.totalorder %s68, %s71
    %p80 = scmp.eq.s32.totalorder %s14, 1
    %p81 = por %p79, %p80
    %p82 = scmp.ne.s32.totalorder %s71, %s72
    %p83 = scmp.eq.s32.totalorder %s14, 0
    %p84 = por %p82, %p83
    %p85 = scmp.ne.s32.totalorder %s71, %s72
    %p86 = scmp.eq.s32.totalorder %s15, 1
    %p87 = por %p85, %p86
    %p89 = scmp.ne.s32.totalorder %s72, %s88
    %p90 = scmp.eq.s32.totalorder %s15, 0
    %p91 = por %p89, %p90
    %s92 = ssub.s32 %s18, %s27
    %p93 = scmp.eq.s32.totalorder %s92, 0
    %s95 = sadd.s32 %s94, 1
    %s96 = scalar_select %p93, %s94, %s95
    %p99 = pneg %p93
    %p100 = scmp.eq.s32.totalorder %s9, 1
    %p101 = por %p99, %p100
    %p102 = scmp.ne.s32.totalorder %s94, %s97
    %p103 = scmp.eq.s32.totalorder %s9, 0
    %p104 = por %p102, %p103
    %p105 = scmp.ne.s32.totalorder %s94, %s97
    %p106 = scmp.eq.s32.totalorder %s14, 1
    %p107 = por %p105, %p106
    %p108 = scmp.ne.s32.totalorder %s97, %s98
    %p109 = scmp.eq.s32.totalorder %s14, 0
    %p110 = por %p108, %p109
    %p111 = scmp.ne.s32.totalorder %s97, %s98
    %p112 = scmp.eq.s32.totalorder %s15, 1
    %p113 = por %p111, %p112
    %p115 = scmp.ne.s32.totalorder %s98, %s114
    %p116 = scmp.eq.s32.totalorder %s15, 0
    %p117 = por %p115, %p116
    %s118 = ssub.s32 %s16, %s35
    %s119 = ssub.s32 %s17, %s31
    %s120 = sor.u32 %s118, %s119
    %p121 = scmp.eq.s32.totalorder %s120, 0
    %s123 = sadd.s32 %s122, 1
    %s124 = scalar_select %p121, %s122, %s123
    %p127 = pneg %p121
    %p128 = scmp.eq.s32.totalorder %s9, 1
    %p129 = por %p127, %p128
    %p130 = scmp.ne.s32.totalorder %s122, %s125
    %p131 = scmp.eq.s32.totalorder %s9, 0
    %p132 = por %p130, %p131
    %p133 = scmp.ne.s32.totalorder %s122, %s125
    %p134 = scmp.eq.s32.totalorder %s14, 1
    %p135 = por %p133, %p134
    %p136 = scmp.ne.s32.totalorder %s125, %s126
    %p137 = scmp.eq.s32.totalorder %s14, 0
    %p138 = por %p136, %p137
    %p139 = scmp.ne.s32.totalorder %s125, %s126
    %p140 = scmp.eq.s32.totalorder %s15, 1
    %p141 = por %p139, %p140
    %p143 = scmp.ne.s32.totalorder %s126, %s142
    %p144 = scmp.eq.s32.totalorder %s15, 0
    %p145 = por %p143, %p144
    %p146 = scmp.le.s32.totalorder 1, %s9
    %p147 = scmp.lt.s32.totalorder %s9, 3
    %p148 = pnand %p146, %p147
    %p149 = pneg %p148
    // Predicated region
    $region9: #{densenet_forward.16} parent=5 // pred_check
      _
    $region10: #{densenet_forward.16} parent=5 // pred_check_branch
      %151 = sbr.rel (%p148) target = $region12
    $region11: #{densenet_forward.16} parent=5 // pred_region
      %s152 = ssub.s32 %s9, 1
      // Predicated region
      $region13: #{densenet_forward.16} parent=11 // pred_check
        %p153 = pneg %p84
      $region14: #{densenet_forward.16} parent=11 // pred_check_branch
        %155 = sbr.rel (%p153) target = $region16
      $region15: #{densenet_forward.16} parent=11 // pred_region
        %s156 = smul.u32 32, %s21
        %p157 = scmp.lt.s32.totalorder %s156, 31
        %s158 = scalar_select %p157, %s156, 31
        %p159 = scmp.lt.s32.totalorder %s20, 0
        %s160 = scalar_select %p159, %s20, 0
        %s161 = sadd.s32 %s160, %s158
        %s162 = smul.addr %s161, 4
        %s163 = scalar_lea.vmem %s1, %s162
        %s164 = smul.u32 32, %s21
      $region16: #{densenet_forward.16} parent=11 // pred_fallthru
        _
      // Predicated region
      $region17: #{densenet_forward.16} parent=11 // pred_check
        %p165 = pneg %p110
      $region18: #{densenet_forward.16} parent=11 // pred_check_branch
        %167 = sbr.rel (%p165) target = $region20
      $region19: #{densenet_forward.16} parent=11 // pred_region
        %s168 = smul.u32 2, %s21
        %p169 = scmp.lt.s32.totalorder %s168, 1
        %s170 = scalar_select %p169, %s168, 1
        %s171 = smul.addr %s170, 2
        %s172 = scalar_lea.vmem %s2, %s171
        %s173 = smul.u32 2, %s21
      $region20: #{densenet_forward.16} parent=11 // pred_fallthru
        _
    $region12: #{densenet_forward.16} parent=5 // pred_fallthru
      _
    %p174 = scmp.lt.s32.totalorder %s9, 2
    // Predicated region
    $region21: #{densenet_forward.16} parent=5 // pred_check
      %p175 = pneg %p174
    $region22: #{densenet_forward.16} parent=5 // pred_check_branch
      %177 = sbr.rel (%p175) target = $region24
    $region23: #{densenet_forward.16} parent=5 // pred_region
      // Predicated region
      $region25: #{densenet_forward.16} parent=23 // pred_check
        %p178 = pneg %p50
      $region26: #{densenet_forward.16} parent=23 // pred_check_branch
        %180 = sbr.rel (%p178) target = $region28
      $region27: #{densenet_forward.16} parent=23 // pred_region
        %s181 = smul.u32 8, %s16
        %s182 = smul.u32 2, %s18
        %p183 = scmp.lt.s32.totalorder %s181, 15
        %s184 = scalar_select %p183, %s181, 15
        %p185 = scmp.lt.s32.totalorder %s182, 1
        %s186 = scalar_select %p185, %s182, 1
        %s187 = smul.addr %s184, 2
        %s188 = sadd.s32 %s186, %s187
        %s189 = smul.addr %s188, 4
        %s190 = scalar_lea.vmem %s0, %s189
        %s191 = smul.u32 8, %s16
        %s192 = smul.u32 2, %s18
      $region28: #{densenet_forward.16} parent=23 // pred_fallthru
        _
    $region24: #{densenet_forward.16} parent=5 // pred_fallthru
      _
    %p193 = scmp.le.s32.totalorder 1, %s9
    %p194 = scmp.lt.s32.totalorder %s9, 3
    %p195 = pnand %p193, %p194
    %p196 = pneg %p195
    // Predicated region
    $region29: #{densenet_forward.16} parent=5 // pred_check
      _
    $region30: #{densenet_forward.16} parent=5 // pred_check_branch
      %198 = sbr.rel (%p195) target = $region32
    $region31: #{densenet_forward.16} parent=5 // pred_region
      %s199 = ssub.s32 %s9, 1
      %s200 = smul.u32 8, %s19
      %s201 = smul.u32 2, %s21
      %p202 = scmp.lt.s32.totalorder %s200, 15
      %s203 = scalar_select %p202, %s200, 15
      %p204 = scmp.lt.s32.totalorder %s201, 1
      %s205 = scalar_select %p204, %s201, 1
      %s206 = smul.addr %s203, 2
      %s207 = sadd.s32 %s205, %s206
      %s208 = smul.addr %s207, 4
      %s209 = scalar_lea.vmem %s0, %s208
      %p210 = pneg %p56
      %p211 = pneg %p53
      %s212 = smul.u32 32, %s21
      %p213 = scmp.lt.s32.totalorder %s212, 31
      %s214 = scalar_select %p213, %s212, 31
      %p215 = scmp.lt.s32.totalorder %s20, 0
      %s216 = scalar_select %p215, %s20, 0
      %s217 = sadd.s32 %s216, %s214
      %s218 = smul.addr %s217, 4
      %s219 = scalar_lea.vmem %s1, %s218
      %p220 = pneg %p84
      %p221 = pneg %p81
      %s222 = smul.u32 2, %s21
      %p223 = scmp.lt.s32.totalorder %s222, 1
      %s224 = scalar_select %p223, %s222, 1
      %s225 = smul.addr %s224, 2
      %s226 = scalar_lea.vmem %s2, %s225
      %p227 = pneg %p110
      %p228 = pneg %p107
      %p229 = pneg %p138
      %p230 = pneg %p135
      %s231 = smul.u32 8, %s19
      %p232 = scmp.lt.s32.totalorder %s231, 15
      %s233 = scalar_select %p232, %s231, 15
      %p234 = scmp.lt.s32.totalorder %s20, 0
      %s235 = scalar_select %p234, %s20, 0
      %s236 = sadd.s32 %s235, %s233
      %s237 = smul.addr %s236, 8
      %s238 = scalar_lea.vmem %s3, %s237
      %s239 = smul.u32 8, %s19
      %s240 = smul.u32 2, %s21
      %p241 = scmp.lt.s32.totalorder %s239, 15
      %s242 = scalar_select %p241, %s239, 15
      %p243 = scmp.lt.s32.totalorder %s240, 1
      %s244 = scalar_select %p243, %s240, 1
      %s245 = smul.addr %s242, 2
      %s246 = sadd.s32 %s244, %s245
      %s247 = smul.addr %s246, 4
      %s248 = scalar_lea.vmem %s0, %s247
      %s249 = smul.u32 8, %s19
      %s250 = smul.u32 2, %s21
      %s251 = smul.u32 32, %s21
      %p252 = scmp.lt.s32.totalorder %s251, 31
      %s253 = scalar_select %p252, %s251, 31
      %p254 = scmp.lt.s32.totalorder %s20, 0
      %s255 = scalar_select %p254, %s20, 0
      %s256 = sadd.s32 %s255, %s253
      %s257 = smul.addr %s256, 4
      %s258 = scalar_lea.vmem %s1, %s257
      %s259 = smul.u32 32, %s21
      %s260 = smul.u32 2, %s21
      %p261 = scmp.lt.s32.totalorder %s260, 1
      %s262 = scalar_select %p261, %s260, 1
      %s263 = smul.addr %s262, 2
      %s264 = scalar_lea.vmem %s2, %s263
      %s265 = smul.u32 2, %s21
      %s266 = smul.u32 8, %s19
      %p267 = scmp.lt.s32.totalorder %s266, 15
      %s268 = scalar_select %p267, %s266, 15
      %p269 = scmp.lt.s32.totalorder %s20, 0
      %s270 = scalar_select %p269, %s20, 0
      %s271 = sadd.s32 %s270, %s268
      %s272 = smul.addr %s271, 8
      %s273 = scalar_lea.vmem %s3, %s272
      %s274 = smul.u32 8, %s19
      %p275 = scmp.eq.s32.totalorder %s21, 0
      // Predicated region
      $region33: #{densenet_forward.16} parent=31 // pred_check
        %p276 = pneg %p275
      $region34: #{densenet_forward.16} parent=31 // pred_check_branch
        %278 = sbr.rel (%p276) target = $region36
      $region35: #{densenet_forward.16} parent=31 // pred_region
        %279 = vst [vmem:[#allocation2] sm:$0xff] 0.0
        %280 = vst [vmem:[#allocation2 + $0x8] sm:$0xff] 0.0
        %281 = vst [vmem:[#allocation2 + $0x10] sm:$0xff] 0.0
        %282 = vst [vmem:[#allocation2 + $0x18] sm:$0xff] 0.0
        %283 = vst [vmem:[#allocation2 + $0x20] sm:$0xff] 0.0
        %284 = vst [vmem:[#allocation2 + $0x28] sm:$0xff] 0.0
        %285 = vst [vmem:[#allocation2 + $0x30] sm:$0xff] 0.0
        %286 = vst [vmem:[#allocation2 + $0x38] sm:$0xff] 0.0
      $region36: #{densenet_forward.16} parent=31 // pred_fallthru
        _
      %v287 = vld [vmem:[%s264] sm:$0xf]
      %v288 = vld [vmem:[%s248] sm:$0xff]
      %v289 = vld [vmem:[%s248 + $0x8] sm:$0xff]
      %v290 = vld [vmem:[%s248 + $0x10] sm:$0xff]
      %v291 = vld [vmem:[%s248 + $0x18] sm:$0xff]
      %v292 = vld [vmem:[%s248 + $0x20] sm:$0xff]
      %v293 = vld [vmem:[%s248 + $0x28] sm:$0xff]
      %v294 = vld [vmem:[%s248 + $0x30] sm:$0xff]
      %v295 = vld [vmem:[%s248 + $0x38] sm:$0xff]
      %v296 = vunpack.c.l.bf16 %v288
      %v297 = vunpack.c.h.bf16 %v288
      %v298 = vunpack.c.l.bf16 %v289
      %v299 = vunpack.c.h.bf16 %v289
      %v300 = vunpack.c.l.bf16 %v290
      %v301 = vunpack.c.h.bf16 %v290
      %v302 = vunpack.c.l.bf16 %v291
      %v303 = vunpack.c.h.bf16 %v291
      %v304 = vunpack.c.l.bf16 %v292
      %v305 = vunpack.c.h.bf16 %v292
      %v306 = vunpack.c.l.bf16 %v293
      %v307 = vunpack.c.h.bf16 %v293
      %v308 = vunpack.c.l.bf16 %v294
      %v309 = vunpack.c.h.bf16 %v294
      %v310 = vunpack.c.l.bf16 %v295
      %v311 = vunpack.c.h.bf16 %v295
      %v313 = vperm.slane %v287, 0
      %v314 = vperm.slane %v287, 2
      %v317 = vperm.slane %v313, 0
      %v318 = vperm.slane %v314, 0
      %v319 = vmul.f32 %v296, %v317
      %v320 = vmul.f32 %v297, %v318
      %v321 = vmul.f32 %v298, %v317
      %v322 = vmul.f32 %v299, %v318
      %v323 = vmul.f32 %v300, %v317
      %v324 = vmul.f32 %v301, %v318
      %v325 = vmul.f32 %v302, %v317
      %v326 = vmul.f32 %v303, %v318
      %v327 = vmul.f32 %v304, %v317
      %v328 = vmul.f32 %v305, %v318
      %v329 = vmul.f32 %v306, %v317
      %v330 = vmul.f32 %v307, %v318
      %v331 = vmul.f32 %v308, %v317
      %v332 = vmul.f32 %v309, %v318
      %v333 = vmul.f32 %v310, %v317
      %v334 = vmul.f32 %v311, %v318
      %v335 = vperm.slane %v287, 1
      %v336 = vperm.slane %v287, 3
      %v339 = vperm.slane %v335, 1
      %v340 = vperm.slane %v336, 1
      %v341 = vadd.f32 %v319, %v339
      %v342 = vadd.f32 %v320, %v340
      %v343 = vadd.f32 %v321, %v339
      %v344 = vadd.f32 %v322, %v340
      %v345 = vadd.f32 %v323, %v339
      %v346 = vadd.f32 %v324, %v340
      %v347 = vadd.f32 %v325, %v339
      %v348 = vadd.f32 %v326, %v340
      %v349 = vadd.f32 %v327, %v339
      %v350 = vadd.f32 %v328, %v340
      %v351 = vadd.f32 %v329, %v339
      %v352 = vadd.f32 %v330, %v340
      %v353 = vadd.f32 %v331, %v339
      %v354 = vadd.f32 %v332, %v340
      %v355 = vadd.f32 %v333, %v339
      %v356 = vadd.f32 %v334, %v340
      %v357 = vmax.f32 %v341, 0.0
      %v358 = vmax.f32 %v342, 0.0
      %v359 = vmax.f32 %v343, 0.0
      %v360 = vmax.f32 %v344, 0.0
      %v361 = vmax.f32 %v345, 0.0
      %v362 = vmax.f32 %v346, 0.0
      %v363 = vmax.f32 %v347, 0.0
      %v364 = vmax.f32 %v348, 0.0
      %v365 = vmax.f32 %v349, 0.0
      %v366 = vmax.f32 %v350, 0.0
      %v367 = vmax.f32 %v351, 0.0
      %v368 = vmax.f32 %v352, 0.0
      %v369 = vmax.f32 %v353, 0.0
      %v370 = vmax.f32 %v354, 0.0
      %v371 = vmax.f32 %v355, 0.0
      %v372 = vmax.f32 %v356, 0.0
      %v373 = vld [vmem:[#allocation2] sm:$0xff]
      %v374 = vld [vmem:[#allocation2 + $0x8] sm:$0xff]
      %v375 = vld [vmem:[#allocation2 + $0x10] sm:$0xff]
      %v376 = vld [vmem:[#allocation2 + $0x18] sm:$0xff]
      %v377 = vld [vmem:[#allocation2 + $0x20] sm:$0xff]
      %v378 = vld [vmem:[#allocation2 + $0x28] sm:$0xff]
      %v379 = vld [vmem:[#allocation2 + $0x30] sm:$0xff]
      %v380 = vld [vmem:[#allocation2 + $0x38] sm:$0xff]
      %v381 = vpack.c.bf16 %v359, %v357
      %v382 = vpack.c.bf16 %v360, %v358
      %v383 = vpack.c.bf16 %v363, %v361
      %v384 = vpack.c.bf16 %v364, %v362
      %v385 = vpack.c.bf16 %v367, %v365
      %v386 = vpack.c.bf16 %v368, %v366
      %v387 = vpack.c.bf16 %v371, %v369
      %v388 = vpack.c.bf16 %v372, %v370
      %v389 = vld [vmem:[%s258] sm:$0xf]
      %v390 = vld [vmem:[%s258 + $0x4] sm:$0xf]
      %v391 = vld [vmem:[%s258 + $0x8] sm:$0xf]
      %v392 = vld [vmem:[%s258 + $0xc] sm:$0xf]
      %v393 = vld [vmem:[%s258 + $0x10] sm:$0xf]
      %v394 = vld [vmem:[%s258 + $0x14] sm:$0xf]
      %v395 = vld [vmem:[%s258 + $0x18] sm:$0xf]
      %v396 = vld [vmem:[%s258 + $0x1c] sm:$0xf]
      %v397 = vld [vmem:[%s258 + $0x20] sm:$0xf]
      %v398 = vld [vmem:[%s258 + $0x24] sm:$0xf]
      %v399 = vld [vmem:[%s258 + $0x28] sm:$0xf]
      %v400 = vld [vmem:[%s258 + $0x2c] sm:$0xf]
      %v401 = vld [vmem:[%s258 + $0x30] sm:$0xf]
      %v402 = vld [vmem:[%s258 + $0x34] sm:$0xf]
      %v403 = vld [vmem:[%s258 + $0x38] sm:$0xf]
      %v404 = vld [vmem:[%s258 + $0x3c] sm:$0xf]
      %v405 = vld [vmem:[%s258 + $0x40] sm:$0xf]
      %v406 = vld [vmem:[%s258 + $0x44] sm:$0xf]
      %v407 = vld [vmem:[%s258 + $0x48] sm:$0xf]
      %v408 = vld [vmem:[%s258 + $0x4c] sm:$0xf]
      %v409 = vld [vmem:[%s258 + $0x50] sm:$0xf]
      %v410 = vld [vmem:[%s258 + $0x54] sm:$0xf]
      %v411 = vld [vmem:[%s258 + $0x58] sm:$0xf]
      %v412 = vld [vmem:[%s258 + $0x5c] sm:$0xf]
      %v413 = vld [vmem:[%s258 + $0x60] sm:$0xf]
      %v414 = vld [vmem:[%s258 + $0x64] sm:$0xf]
      %v415 = vld [vmem:[%s258 + $0x68] sm:$0xf]
      %v416 = vld [vmem:[%s258 + $0x6c] sm:$0xf]
      %v417 = vld [vmem:[%s258 + $0x70] sm:$0xf]
      %v418 = vld [vmem:[%s258 + $0x74] sm:$0xf]
      %v419 = vld [vmem:[%s258 + $0x78] sm:$0xf]
      %v420 = vld [vmem:[%s258 + $0x7c] sm:$0xf]
      %v453 = vunpack.c.l.b16 %v389
      %v454 = vunpack.c.l.b16 %v390
      %v455 = vunpack.c.l.b16 %v391
      %v456 = vunpack.c.l.b16 %v392
      %v457 = vunpack.c.l.b16 %v393
      %v458 = vunpack.c.l.b16 %v394
      %v459 = vunpack.c.l.b16 %v395
      %v460 = vunpack.c.l.b16 %v396
      %v461 = vunpack.c.l.b16 %v397
      %v462 = vunpack.c.l.b16 %v398
      %v463 = vunpack.c.l.b16 %v399
      %v464 = vunpack.c.l.b16 %v400
      %v465 = vunpack.c.l.b16 %v401
      %v466 = vunpack.c.l.b16 %v402
      %v467 = vunpack.c.l.b16 %v403
      %v468 = vunpack.c.l.b16 %v404
      %v469 = vunpack.c.l.b16 %v405
      %v470 = vunpack.c.l.b16 %v406
      %v471 = vunpack.c.l.b16 %v407
      %v472 = vunpack.c.l.b16 %v408
      %v473 = vunpack.c.l.b16 %v409
      %v474 = vunpack.c.l.b16 %v410
      %v475 = vunpack.c.l.b16 %v411
      %v476 = vunpack.c.l.b16 %v412
      %v477 = vunpack.c.l.b16 %v413
      %v478 = vunpack.c.l.b16 %v414
      %v479 = vunpack.c.l.b16 %v415
      %v480 = vunpack.c.l.b16 %v416
      %v481 = vunpack.c.l.b16 %v417
      %v482 = vunpack.c.l.b16 %v418
      %v483 = vunpack.c.l.b16 %v419
      %v484 = vunpack.c.l.b16 %v420
      %v485 = vpack.c.b16 %v454, %v453
      %v486 = vpack.c.b16 %v456, %v455
      %v487 = vpack.c.b16 %v458, %v457
      %v488 = vpack.c.b16 %v460, %v459
      %v489 = vpack.c.b16 %v462, %v461
      %v490 = vpack.c.b16 %v464, %v463
      %v491 = vpack.c.b16 %v466, %v465
      %v492 = vpack.c.b16 %v468, %v467
      %v493 = vpack.c.b16 %v470, %v469
      %v494 = vpack.c.b16 %v472, %v471
      %v495 = vpack.c.b16 %v474, %v473
      %v496 = vpack.c.b16 %v476, %v475
      %v497 = vpack.c.b16 %v478, %v477
      %v498 = vpack.c.b16 %v480, %v479
      %v499 = vpack.c.b16 %v482, %v481
      %v500 = vpack.c.b16 %v484, %v483
      %517 = vmatpush.bf16.msra.mxu0 %v492
      %518 = vmatpush.bf16.msra.mxu0 %v491
      %519 = vmatpush.bf16.msra.mxu0 %v490
      %520 = vmatpush.bf16.msra.mxu0 %v489
      %521 = vmatpush.bf16.msra.mxu0 %v488
      %522 = vmatpush.bf16.msra.mxu0 %v487
      %523 = vmatpush.bf16.msra.mxu0 %v486
      %524 = vmatpush.bf16.msra.mxu0 %v485
      %525 = vmatmul.bf16.gmra.mxu0 %v381
      %v526 = vpop.f32.mrf.mxu0
      %v527 = vadd.f32 0.0, %v526
      %v528 = vpop.f32.mrf.mxu0
      %v529 = vadd.f32 0.0, %v528
      %530 = vmatmul.bf16.gmra.mxu0 %v383
      %v531 = vpop.f32.mrf.mxu0
      %v532 = vadd.f32 0.0, %v531
      %v533 = vpop.f32.mrf.mxu0
      %v534 = vadd.f32 0.0, %v533
      %535 = vmatmul.bf16.gmra.mxu0 %v385
      %v536 = vpop.f32.mrf.mxu0
      %v537 = vadd.f32 0.0, %v536
      %v538 = vpop.f32.mrf.mxu0
      %v539 = vadd.f32 0.0, %v538
      %540 = vmatmul.bf16.gmra.mxu0 %v387
      %v541 = vpop.f32.mrf.mxu0
      %v542 = vadd.f32 0.0, %v541
      %v543 = vpop.f32.mrf.mxu0
      %v544 = vadd.f32 0.0, %v543
      %545 = vdwg.mxu0
      %546 = vmatpush.bf16.msra.mxu0 %v500
      %547 = vmatpush.bf16.msra.mxu0 %v499
      %548 = vmatpush.bf16.msra.mxu0 %v498
      %549 = vmatpush.bf16.msra.mxu0 %v497
      %550 = vmatpush.bf16.msra.mxu0 %v496
      %551 = vmatpush.bf16.msra.mxu0 %v495
      %552 = vmatpush.bf16.msra.mxu0 %v494
      %553 = vmatpush.bf16.msra.mxu0 %v493
      %554 = vmatmul.bf16.gmra.mxu0 %v382
      %v555 = vpop.f32.mrf.mxu0
      %v556 = vadd.f32 %v527, %v555
      %v557 = vpop.f32.mrf.mxu0
      %v558 = vadd.f32 %v529, %v557
      %559 = vmatmul.bf16.gmra.mxu0 %v384
      %v560 = vpop.f32.mrf.mxu0
      %v561 = vadd.f32 %v532, %v560
      %v562 = vpop.f32.mrf.mxu0
      %v563 = vadd.f32 %v534, %v562
      %564 = vmatmul.bf16.gmra.mxu0 %v386
      %v565 = vpop.f32.mrf.mxu0
      %v566 = vadd.f32 %v537, %v565
      %v567 = vpop.f32.mrf.mxu0
      %v568 = vadd.f32 %v539, %v567
      %569 = vmatmul.bf16.gmra.mxu0 %v388
      %v570 = vpop.f32.mrf.mxu0
      %v571 = vadd.f32 %v542, %v570
      %v572 = vpop.f32.mrf.mxu0
      %v573 = vadd.f32 %v544, %v572
      %574 = vdwg.mxu0
      %v575 = vadd.f32 %v373, %v556
      %v576 = vadd.f32 %v374, %v558
      %v577 = vadd.f32 %v375, %v561
      %v578 = vadd.f32 %v376, %v563
      %v579 = vadd.f32 %v377, %v566
      %v580 = vadd.f32 %v378, %v568
      %v581 = vadd.f32 %v379, %v571
      %v582 = vadd.f32 %v380, %v573
      %583 = vst [vmem:[#allocation2] sm:$0xff] %v575
      %584 = vst [vmem:[#allocation2 + $0x8] sm:$0xff] %v576
      %585 = vst [vmem:[#allocation2 + $0x10] sm:$0xff] %v577
      %586 = vst [vmem:[#allocation2 + $0x18] sm:$0xff] %v578
      %587 = vst [vmem:[#allocation2 + $0x20] sm:$0xff] %v579
      %588 = vst [vmem:[#allocation2 + $0x28] sm:$0xff] %v580
      %589 = vst [vmem:[#allocation2 + $0x30] sm:$0xff] %v581
      %590 = vst [vmem:[#allocation2 + $0x38] sm:$0xff] %v582
      // Predicated region
      $region37: #{densenet_forward.16} parent=31 // pred_check
        %p591 = pneg %p275
      $region38: #{densenet_forward.16} parent=31 // pred_check_branch
        %593 = sbr.rel (%p591) target = $region40
      $region39: #{densenet_forward.16} parent=31 // pred_region
        %v594 = vld [vmem:[#allocation2] sm:$0xff]
        %v595 = vld [vmem:[#allocation2 + $0x8] sm:$0xff]
        %v596 = vld [vmem:[#allocation2 + $0x10] sm:$0xff]
        %v597 = vld [vmem:[#allocation2 + $0x18] sm:$0xff]
        %v598 = vld [vmem:[#allocation2 + $0x20] sm:$0xff]
        %v599 = vld [vmem:[#allocation2 + $0x28] sm:$0xff]
        %v600 = vld [vmem:[#allocation2 + $0x30] sm:$0xff]
        %v601 = vld [vmem:[#allocation2 + $0x38] sm:$0xff]
        %602 = vst [vmem:[%s273] sm:$0xff] %v594
        %603 = vst [vmem:[%s273 + $0x8] sm:$0xff] %v595
        %604 = vst [vmem:[%s273 + $0x10] sm:$0xff] %v596
        %605 = vst [vmem:[%s273 + $0x18] sm:$0xff] %v597
        %606 = vst [vmem:[%s273 + $0x20] sm:$0xff] %v598
        %607 = vst [vmem:[%s273 + $0x28] sm:$0xff] %v599
        %608 = vst [vmem:[%s273 + $0x30] sm:$0xff] %v600
        %609 = vst [vmem:[%s273 + $0x38] sm:$0xff] %v601
      $region40: #{densenet_forward.16} parent=31 // pred_fallthru
        _
      %s610 = smul.u32 8, %s19
      %p611 = scmp.lt.s32.totalorder %s610, 15
      %s612 = scalar_select %p611, %s610, 15
      %p613 = scmp.lt.s32.totalorder %s20, 0
      %s614 = scalar_select %p613, %s20, 0
      %s615 = sadd.s32 %s614, %s612
      %s616 = smul.addr %s615, 8
      %s617 = scalar_lea.vmem %s3, %s616
      // Predicated region
      $region41: #{densenet_forward.16} parent=31 // pred_check
        %p618 = pneg %p135
      $region42: #{densenet_forward.16} parent=31 // pred_check_branch
        %620 = sbr.rel (%p618) target = $region44
      $region43: #{densenet_forward.16} parent=31 // pred_region
        %s621 = smul.u32 8, %s19
      $region44: #{densenet_forward.16} parent=31 // pred_fallthru
        _
    $region32: #{densenet_forward.16} parent=5 // pred_fallthru
      _
    %p622 = scmp.le.s32.totalorder 2, %s9
    // Predicated region
    $region45: #{densenet_forward.16} parent=5 // pred_check
      %p623 = pneg %p622
    $region46: #{densenet_forward.16} parent=5 // pred_check_branch
      %625 = sbr.rel (%p623) target = $region48
    $region47: #{densenet_forward.16} parent=5 // pred_region
      %s626 = ssub.s32 %s9, 2
      // Predicated region
      $region49: #{densenet_forward.16} parent=47 // pred_check
        %p627 = pneg %p141
      $region50: #{densenet_forward.16} parent=47 // pred_check_branch
        %629 = sbr.rel (%p627) target = $region52
      $region51: #{densenet_forward.16} parent=47 // pred_region
        %s630 = smul.u32 8, %s22
        %p631 = scmp.lt.s32.totalorder %s630, 15
        %s632 = scalar_select %p631, %s630, 15
        %p633 = scmp.lt.s32.totalorder %s23, 0
        %s634 = scalar_select %p633, %s23, 0
        %s635 = sadd.s32 %s634, %s632
        %s636 = smul.addr %s635, 8
        %s637 = scalar_lea.vmem %s3, %s636
      $region52: #{densenet_forward.16} parent=47 // pred_fallthru
        _
    $region48: #{densenet_forward.16} parent=5 // pred_fallthru
      _
  $region6: #{densenet_forward.16} parent=0 // loop_footer
    %s13 = sadd.s32 1, %s9
  $region7: #{densenet_forward.16} parent=0 // loop_footer_branch
    %8 = sbr.rel target = $region3
  $region8: #{densenet_forward.16} parent=0 // loop_exit
    _

// kernel: densenet_forward.17
$region0: #{densenet_forward.17}
  #allocation0 [shape = 'u32[]', space=smem, size = 0x4, offset = 0x4, fixed_abs, tag = 'smem constant byte address 0x4 - core index']
  #allocation1 [shape = 'u32[72,128]{1,0:T(1,128)}', space=vmem, size = 0x9000, scoped, tag = 'internal scratch']
  #allocation2 [shape = 'f32[16,128]{1,0:T(8,128)}', space=vmem, size = 0x2000, scoped, tag = 'scratch operand']
  %s0 = inlined_call_operand.vmem [shape: bf16[32,256], index: 0, kind: input, shape index: {}]
  %s1 = inlined_call_operand.vmem [shape: bf16[256,384], index: 1, kind: input, shape index: {}]
  %s2 = inlined_call_operand.vmem [shape: f32[2,256], index: 2, kind: input, shape index: {}]
  %s3 = inlined_call_operand.vmem [shape: f32[32,384], index: 3, kind: output, shape index: {}]
  %s4 = sld [smem:[#allocation0]]
  $region128: #{densenet_forward.17} parent=0
    _
  %s6 = ssub.s32 1, %s4
  %s7 = scalar_select 0, %s6, %s4
  $region1: #{densenet_forward.17} parent=0
    #allocation3 [shape = 'u8[131072]{0}', space=vmem, size = 0x20000, scoped, tag = 'input window, operand 1']
    #allocation4 [shape = 'u8[16384]{0}', space=vmem, size = 0x4000, scoped, tag = 'output window, operand 0']
    loop: start=0, step=1, limit=8
    $region2: #{densenet_forward.17} parent=1 // loop_pre_header
      _
    $region3: #{densenet_forward.17} parent=1 // loop_header
      %s9 = sphi 0, %s13
      %p10 = scmp.ge.s32.totalorder %s9, 8
      %s16 = sphi 0, %s35
      %s17 = sphi 0, %s31
      %s18 = sphi 0, %s27
      %s19 = sphi 0, %s16
      %s20 = sphi 0, %s17
      %s21 = sphi 0, %s18
      %s22 = sphi 0, %s19
      %s23 = sphi 0, %s20
      %s24 = sphi 0, %s21
      %s40 = sphi 0, %s42
      %s43 = sphi 0, %s40
      %s44 = sphi 0, %s43
      %s60 = sphi 0, %s44
      %s68 = sphi 0, %s70
      %s71 = sphi 0, %s68
      %s72 = sphi 0, %s71
      %s88 = sphi 0, %s72
      %s94 = sphi 0, %s96
      %s97 = sphi 0, %s94
      %s98 = sphi 0, %s97
      %s114 = sphi 0, %s98
      %s122 = sphi 0, %s124
      %s125 = sphi 0, %s122
      %s126 = sphi 0, %s125
      %s142 = sphi 0, %s126
    $region4: #{densenet_forward.17} parent=1 // loop_header_branch
      %12 = sbr.rel (%p10) target = $region8
    $region5: #{densenet_forward.17} parent=1 // loop_body
      %s14 = ssub.s32 %s9, 1
      %s15 = ssub.s32 %s9, 2
      %s25 = sadd.s32 1, %s18
      %p26 = scmp.ge.s32.totalorder %s25, 1
      %s27 = scalar_select %p26, 0, %s25
      %s28 = sadd.s32 1, %s17
      %s29 = scalar_select %p26, %s28, %s17
      %p30 = scmp.ge.s32.totalorder %s29, 3
      %s31 = scalar_select %p30, 0, %s29
      %s32 = sadd.s32 1, %s16
      %s33 = scalar_select %p30, %s32, %s16
      %p34 = scmp.ge.s32.totalorder %s33, 2
      %s35 = scalar_select %p34, 0, %s33
      %s36 = ssub.s32 %s16, %s35
      %s37 = ssub.s32 %s18, %s27
      %s38 = sor.u32 %s36, %s37
      %p39 = scmp.eq.s32.totalorder %s38, 0
      %s41 = sadd.s32 %s40, 1
      %s42 = scalar_select %p39, %s40, %s41
      %p45 = pneg %p39
      %p46 = scmp.eq.s32.totalorder %s9, 5
      %p47 = por %p45, %p46
      %p48 = scmp.ne.s32.totalorder %s40, %s43
      %p49 = scmp.eq.s32.totalorder %s9, 0
      %p50 = por %p48, %p49
      %p51 = scmp.ne.s32.totalorder %s40, %s43
      %p52 = scmp.eq.s32.totalorder %s14, 5
      %p53 = por %p51, %p52
      %p54 = scmp.ne.s32.totalorder %s43, %s44
      %p55 = scmp.eq.s32.totalorder %s14, 0
      %p56 = por %p54, %p55
      %p57 = scmp.ne.s32.totalorder %s43, %s44
      %p58 = scmp.eq.s32.totalorder %s15, 5
      %p59 = por %p57, %p58
      %p61 = scmp.ne.s32.totalorder %s44, %s60
      %p62 = scmp.eq.s32.totalorder %s15, 0
      %p63 = por %p61, %p62
      %s64 = ssub.s32 %s18, %s27
      %s65 = ssub.s32 %s17, %s31
      %s66 = sor.u32 %s64, %s65
      %p67 = scmp.eq.s32.totalorder %s66, 0
      %s69 = sadd.s32 %s68, 1
      %s70 = scalar_select %p67, %s68, %s69
      %p73 = pneg %p67
      %p74 = scmp.eq.s32.totalorder %s9, 5
      %p75 = por %p73, %p74
      %p76 = scmp.ne.s32.totalorder %s68, %s71
      %p77 = scmp.eq.s32.totalorder %s9, 0
      %p78 = por %p76, %p77
      %p79 = scmp.ne.s32.totalorder %s68, %s71
      %p80 = scmp.eq.s32.totalorder %s14, 5
      %p81 = por %p79, %p80
      %p82 = scmp.ne.s32.totalorder %s71, %s72
      %p83 = scmp.eq.s32.totalorder %s14, 0
      %p84 = por %p82, %p83
      %p85 = scmp.ne.s32.totalorder %s71, %s72
      %p86 = scmp.eq.s32.totalorder %s15, 5
      %p87 = por %p85, %p86
      %p89 = scmp.ne.s32.totalorder %s72, %s88
      %p90 = scmp.eq.s32.totalorder %s15, 0
      %p91 = por %p89, %p90
      %s92 = ssub.s32 %s18, %s27
      %p93 = scmp.eq.s32.totalorder %s92, 0
      %s95 = sadd.s32 %s94, 1
      %s96 = scalar_select %p93, %s94, %s95
      %p99 = pneg %p93
      %p100 = scmp.eq.s32.totalorder %s9, 5
      %p101 = por %p99, %p100
      %p102 = scmp.ne.s32.totalorder %s94, %s97
      %p103 = scmp.eq.s32.totalorder %s9, 0
      %p104 = por %p102, %p103
      %p105 = scmp.ne.s32.totalorder %s94, %s97
      %p106 = scmp.eq.s32.totalorder %s14, 5
      %p107 = por %p105, %p106
      %p108 = scmp.ne.s32.totalorder %s97, %s98
      %p109 = scmp.eq.s32.totalorder %s14, 0
      %p110 = por %p108, %p109
      %p111 = scmp.ne.s32.totalorder %s97, %s98
      %p112 = scmp.eq.s32.totalorder %s15, 5
      %p113 = por %p111, %p112
      %p115 = scmp.ne.s32.totalorder %s98, %s114
      %p116 = scmp.eq.s32.totalorder %s15, 0
      %p117 = por %p115, %p116
      %s118 = ssub.s32 %s16, %s35
      %s119 = ssub.s32 %s17, %s31
      %s120 = sor.u32 %s118, %s119
      %p121 = scmp.eq.s32.totalorder %s120, 0
      %s123 = sadd.s32 %s122, 1
      %s124 = scalar_select %p121, %s122, %s123
      %p127 = pneg %p121
      %p128 = scmp.eq.s32.totalorder %s9, 5
      %p129 = por %p127, %p128
      %p130 = scmp.ne.s32.totalorder %s122, %s125
      %p131 = scmp.eq.s32.totalorder %s9, 0
      %p132 = por %p130, %p131
      %p133 = scmp.ne.s32.totalorder %s122, %s125
      %p134 = scmp.eq.s32.totalorder %s14, 5
      %p135 = por %p133, %p134
      %p136 = scmp.ne.s32.totalorder %s125, %s126
      %p137 = scmp.eq.s32.totalorder %s14, 0
      %p138 = por %p136, %p137
      %p139 = scmp.ne.s32.totalorder %s125, %s126
      %p140 = scmp.eq.s32.totalorder %s15, 5
      %p141 = por %p139, %p140
      %p143 = scmp.ne.s32.totalorder %s126, %s142
      %p144 = scmp.eq.s32.totalorder %s15, 0
      %p145 = por %p143, %p144
      %p146 = scmp.le.s32.totalorder 1, %s9
      %p147 = scmp.lt.s32.totalorder %s9, 7
      %p148 = pnand %p146, %p147
      %p149 = pneg %p148
      // Predicated region
      $region9: #{densenet_forward.17} parent=5 // pred_check
        _
      $region10: #{densenet_forward.17} parent=5 // pred_check_branch
        %151 = sbr.rel (%p148) target = $region12
      $region11: #{densenet_forward.17} parent=5 // pred_region
        %s152 = ssub.s32 %s9, 1
        // Predicated region
        $region13: #{densenet_forward.17} parent=11 // pred_check
          %p153 = pneg %p110
        $region14: #{densenet_forward.17} parent=11 // pred_check_branch
          %155 = sbr.rel (%p153) target = $region16
        $region15: #{densenet_forward.17} parent=11 // pred_region
          %s156 = smul.u32 2, %s21
          %p157 = scmp.lt.s32.totalorder %s156, 1
          %s158 = scalar_select %p157, %s156, 1
          %s159 = smul.addr %s158, 2
          %s160 = scalar_lea.vmem %s2, %s159
          %s161 = smul.u32 2, %s21
        $region16: #{densenet_forward.17} parent=11 // pred_fallthru
          _
      $region12: #{densenet_forward.17} parent=5 // pred_fallthru
        _
      %p162 = scmp.lt.s32.totalorder %s9, 6
      // Predicated region
      $region17: #{densenet_forward.17} parent=5 // pred_check
        %p163 = pneg %p162
      $region18: #{densenet_forward.17} parent=5 // pred_check_branch
        %165 = sbr.rel (%p163) target = $region20
      $region19: #{densenet_forward.17} parent=5 // pred_region
        // Predicated region
        $region21: #{densenet_forward.17} parent=19 // pred_check
          %p166 = pneg %p50
        $region22: #{densenet_forward.17} parent=19 // pred_check_branch
          %168 = sbr.rel (%p166) target = $region24
        $region23: #{densenet_forward.17} parent=19 // pred_region
          %s169 = smul.u32 2, %s16
          %s170 = smul.u32 2, %s18
          %p171 = scmp.lt.s32.totalorder %s169, 3
          %s172 = scalar_select %p171, %s169, 3
          %p173 = scmp.lt.s32.totalorder %s170, 1
          %s174 = scalar_select %p173, %s170, 1
          %s175 = smul.addr %s172, 2
          %s176 = sadd.s32 %s174, %s175
          %s177 = smul.addr %s176, 4
          %s178 = scalar_lea.vmem %s0, %s177
          %s179 = smul.u32 2, %s16
          %s180 = smul.u32 2, %s18
        $region24: #{densenet_forward.17} parent=19 // pred_fallthru
          _
        // Predicated region
        $region25: #{densenet_forward.17} parent=19 // pred_check
          %p181 = pneg %p78
        $region26: #{densenet_forward.17} parent=19 // pred_check_branch
          %183 = sbr.rel (%p181) target = $region28
        $region27: #{densenet_forward.17} parent=19 // pred_region
          %s184 = sand.u32 %s68, 1
          %s185 = sand.u32 %s68, 1
          %s186 = smul.addr %s185, 128
          %s187 = scalar_lea.vmem [#allocation3], %s186
          %s188 = smul.u32 32, %s18
          %s189 = smul.addr %s188, 3
          %s190 = sadd.s32 %s17, %s189
          %s191 = smul.addr %s190, 4
          %s192 = scalar_lea.vmem %s1, %s191
          // Predicated region
          $region29: #{densenet_forward.17} parent=27 // pred_check
            _
          $region30: #{densenet_forward.17} parent=27 // pred_check_branch
            %194 = sbr.rel (0) target = $region32
          $region31: #{densenet_forward.17} parent=27 // pred_region
            // Predicated region
            $region33: #{densenet_forward.17} parent=31 // pred_check
              _
            $region34: #{densenet_forward.17} parent=31 // pred_check_branch
              %196 = sbr.rel target = $region36
            $region35: #{densenet_forward.17} parent=31 // pred_region
              // Predicated region
              $region48: #{densenet_forward.17} parent=35 // pred_check
                _
              $region49: #{densenet_forward.17} parent=35 // pred_check_branch
                %274 = sbr.rel (0) target = $region51
              $region50: #{densenet_forward.17} parent=35 // pred_region
                loop: start=0, step=1, limit=1
                $region52: #{densenet_forward.17} parent=50 // loop_pre_header
                  _
                $region53: #{densenet_forward.17} parent=50 // loop_header
                  %s276 = sphi 0, %s280
                  %p277 = scmp.ge.s32.totalorder %s276, 1
                  %s281 = sphi %s192, %s192
                  %s282 = sphi %s187, %s187
                $region54: #{densenet_forward.17} parent=50 // loop_header_branch
                  %279 = sbr.rel (%p277) target = $region58
                $region55: #{densenet_forward.17} parent=50 // loop_body
                  _
                $region56: #{densenet_forward.17} parent=50 // loop_footer
                  %s280 = sadd.s32 1, %s276
                $region57: #{densenet_forward.17} parent=50 // loop_footer_branch
                  %275 = sbr.rel target = $region53
                $region58: #{densenet_forward.17} parent=50 // loop_exit
                  _
                %s284 = ssub.s32 16, 1
                loop: start=0, step=1, limit=1
                $region59: #{densenet_forward.17} parent=50 // loop_pre_header
                  _
                $region60: #{densenet_forward.17} parent=50 // loop_header
                  %s286 = sphi 0, %s290
                  %p287 = scmp.ge.s32.totalorder %s286, 1
                  %s291 = sphi %s192, %s192
                  %s292 = sphi %s187, %s187
                $region61: #{densenet_forward.17} parent=50 // loop_header_branch
                  %289 = sbr.rel (%p287) target = $region65
                $region62: #{densenet_forward.17} parent=50 // loop_body
                  %v293 = vld [vmem:[%s291] sm:%s284]
                  %294 = vst [vmem:[%s292] sm:%s284] %v293
                  %v295 = vld [vmem:[%s291 + $0xc] sm:%s284]
                  %296 = vst [vmem:[%s292 + $0x4] sm:%s284] %v295
                  %v297 = vld [vmem:[%s291 + $0x18] sm:%s284]
                  %298 = vst [vmem:[%s292 + $0x8] sm:%s284] %v297
                  %v299 = vld [vmem:[%s291 + $0x24] sm:%s284]
                  %300 = vst [vmem:[%s292 + $0xc] sm:%s284] %v299
                  %v301 = vld [vmem:[%s291 + $0x30] sm:%s284]
                  %302 = vst [vmem:[%s292 + $0x10] sm:%s284] %v301
                  %v303 = vld [vmem:[%s291 + $0x3c] sm:%s284]
                  %304 = vst [vmem:[%s292 + $0x14] sm:%s284] %v303
                  %v305 = vld [vmem:[%s291 + $0x48] sm:%s284]
                  %306 = vst [vmem:[%s292 + $0x18] sm:%s284] %v305
                  %v307 = vld [vmem:[%s291 + $0x54] sm:%s284]
                  %308 = vst [vmem:[%s292 + $0x1c] sm:%s284] %v307
                  %v309 = vld [vmem:[%s291 + $0x60] sm:%s284]
                  %310 = vst [vmem:[%s292 + $0x20] sm:%s284] %v309
                  %v311 = vld [vmem:[%s291 + $0x6c] sm:%s284]
                  %312 = vst [vmem:[%s292 + $0x24] sm:%s284] %v311
                  %v313 = vld [vmem:[%s291 + $0x78] sm:%s284]
                  %314 = vst [vmem:[%s292 + $0x28] sm:%s284] %v313
                  %v315 = vld [vmem:[%s291 + $0x84] sm:%s284]
                  %316 = vst [vmem:[%s292 + $0x2c] sm:%s284] %v315
                  %v317 = vld [vmem:[%s291 + $0x90] sm:%s284]
                  %318 = vst [vmem:[%s292 + $0x30] sm:%s284] %v317
                  %v319 = vld [vmem:[%s291 + $0x9c] sm:%s284]
                  %320 = vst [vmem:[%s292 + $0x34] sm:%s284] %v319
                  %v321 = vld [vmem:[%s291 + $0xa8] sm:%s284]
                  %322 = vst [vmem:[%s292 + $0x38] sm:%s284] %v321
                  %v323 = vld [vmem:[%s291 + $0xb4] sm:%s284]
                  %324 = vst [vmem:[%s292 + $0x3c] sm:%s284] %v323
                  %v325 = vld [vmem:[%s291 + $0xc0] sm:%s284]
                  %326 = vst [vmem:[%s292 + $0x40] sm:%s284] %v325
                  %v327 = vld [vmem:[%s291 + $0xcc] sm:%s284]
                  %328 = vst [vmem:[%s292 + $0x44] sm:%s284] %v327
                  %v329 = vld [vmem:[%s291 + $0xd8] sm:%s284]
                  %330 = vst [vmem:[%s292 + $0x48] sm:%s284] %v329
                  %v331 = vld [vmem:[%s291 + $0xe4] sm:%s284]
                  %332 = vst [vmem:[%s292 + $0x4c] sm:%s284] %v331
                  %v333 = vld [vmem:[%s291 + $0xf0] sm:%s284]
                  %334 = vst [vmem:[%s292 + $0x50] sm:%s284] %v333
                  %v335 = vld [vmem:[%s291 + $0xfc] sm:%s284]
                  %336 = vst [vmem:[%s292 + $0x54] sm:%s284] %v335
                  %v337 = vld [vmem:[%s291 + $0x108] sm:%s284]
                  %338 = vst [vmem:[%s292 + $0x58] sm:%s284] %v337
                  %v339 = vld [vmem:[%s291 + $0x114] sm:%s284]
                  %340 = vst [vmem:[%s292 + $0x5c] sm:%s284] %v339
                  %v341 = vld [vmem:[%s291 + $0x120] sm:%s284]
                  %342 = vst [vmem:[%s292 + $0x60] sm:%s284] %v341
                  %v343 = vld [vmem:[%s291 + $0x12c] sm:%s284]
                  %344 = vst [vmem:[%s292 + $0x64] sm:%s284] %v343
                  %v345 = vld [vmem:[%s291 + $0x138] sm:%s284]
                  %346 = vst [vmem:[%s292 + $0x68] sm:%s284] %v345
                  %v347 = vld [vmem:[%s291 + $0x144] sm:%s284]
                  %348 = vst [vmem:[%s292 + $0x6c] sm:%s284] %v347
                  %v349 = vld [vmem:[%s291 + $0x150] sm:%s284]
                  %350 = vst [vmem:[%s292 + $0x70] sm:%s284] %v349
                  %v351 = vld [vmem:[%s291 + $0x15c] sm:%s284]
                  %352 = vst [vmem:[%s292 + $0x74] sm:%s284] %v351
                  %v353 = vld [vmem:[%s291 + $0x168] sm:%s284]
                  %354 = vst [vmem:[%s292 + $0x78] sm:%s284] %v353
                  %v355 = vld [vmem:[%s291 + $0x174] sm:%s284]
                  %356 = vst [vmem:[%s292 + $0x7c] sm:%s284] %v355
                $region63: #{densenet_forward.17} parent=50 // loop_footer
                  %s290 = sadd.s32 1, %s286
                $region64: #{densenet_forward.17} parent=50 // loop_footer_branch
                  %285 = sbr.rel target = $region60
                $region65: #{densenet_forward.17} parent=50 // loop_exit
                  _
              $region51: #{densenet_forward.17} parent=35 // pred_fallthru
                _
            $region36: #{densenet_forward.17} parent=31 // pred_fallthru
              _
            // Predicated region
            $region37: #{densenet_forward.17} parent=31 // pred_check
              _
            $region38: #{densenet_forward.17} parent=31 // pred_check_branch
              %198 = sbr.rel (0) target = $region40
            $region39: #{densenet_forward.17} parent=31 // pred_region
              %s200 = ssub.s32 16, 1
              loop: start=0, step=1, limit=1
              $region41: #{densenet_forward.17} parent=39 // loop_pre_header
                _
              $region42: #{densenet_forward.17} parent=39 // loop_header
                %s202 = sphi 0, %s206
                %p203 = scmp.ge.s32.totalorder %s202, 1
                %s207 = sphi %s192, %s192
                %s208 = sphi %s187, %s187
              $region43: #{densenet_forward.17} parent=39 // loop_header_branch
                %205 = sbr.rel (%p203) target = $region47
              $region44: #{densenet_forward.17} parent=39 // loop_body
                %v209 = vld [vmem:[%s207] sm:%s200]
                %210 = vst [vmem:[%s208] sm:%s200] %v209
                %v211 = vld [vmem:[%s207 + $0xc] sm:%s200]
                %212 = vst [vmem:[%s208 + $0x4] sm:%s200] %v211
                %v213 = vld [vmem:[%s207 + $0x18] sm:%s200]
                %214 = vst [vmem:[%s208 + $0x8] sm:%s200] %v213
                %v215 = vld [vmem:[%s207 + $0x24] sm:%s200]
                %216 = vst [vmem:[%s208 + $0xc] sm:%s200] %v215
                %v217 = vld [vmem:[%s207 + $0x30] sm:%s200]
                %218 = vst [vmem:[%s208 + $0x10] sm:%s200] %v217
                %v219 = vld [vmem:[%s207 + $0x3c] sm:%s200]
                %220 = vst [vmem:[%s208 + $0x14] sm:%s200] %v219
                %v221 = vld [vmem:[%s207 + $0x48] sm:%s200]
                %222 = vst [vmem:[%s208 + $0x18] sm:%s200] %v221
                %v223 = vld [vmem:[%s207 + $0x54] sm:%s200]
                %224 = vst [vmem:[%s208 + $0x1c] sm:%s200] %v223
                %v225 = vld [vmem:[%s207 + $0x60] sm:%s200]
                %226 = vst [vmem:[%s208 + $0x20] sm:%s200] %v225
                %v227 = vld [vmem:[%s207 + $0x6c] sm:%s200]
                %228 = vst [vmem:[%s208 + $0x24] sm:%s200] %v227
                %v229 = vld [vmem:[%s207 + $0x78] sm:%s200]
                %230 = vst [vmem:[%s208 + $0x28] sm:%s200] %v229
                %v231 = vld [vmem:[%s207 + $0x84] sm:%s200]
                %232 = vst [vmem:[%s208 + $0x2c] sm:%s200] %v231
                %v233 = vld [vmem:[%s207 + $0x90] sm:%s200]
                %234 = vst [vmem:[%s208 + $0x30] sm:%s200] %v233
                %v235 = vld [vmem:[%s207 + $0x9c] sm:%s200]
                %236 = vst [vmem:[%s208 + $0x34] sm:%s200] %v235
                %v237 = vld [vmem:[%s207 + $0xa8] sm:%s200]
                %238 = vst [vmem:[%s208 + $0x38] sm:%s200] %v237
                %v239 = vld [vmem:[%s207 + $0xb4] sm:%s200]
                %240 = vst [vmem:[%s208 + $0x3c] sm:%s200] %v239
                %v241 = vld [vmem:[%s207 + $0xc0] sm:%s200]
                %242 = vst [vmem:[%s208 + $0x40] sm:%s200] %v241
                %v243 = vld [vmem:[%s207 + $0xcc] sm:%s200]
                %244 = vst [vmem:[%s208 + $0x44] sm:%s200] %v243
                %v245 = vld [vmem:[%s207 + $0xd8] sm:%s200]
                %246 = vst [vmem:[%s208 + $0x48] sm:%s200] %v245
                %v247 = vld [vmem:[%s207 + $0xe4] sm:%s200]
                %248 = vst [vmem:[%s208 + $0x4c] sm:%s200] %v247
                %v249 = vld [vmem:[%s207 + $0xf0] sm:%s200]
                %250 = vst [vmem:[%s208 + $0x50] sm:%s200] %v249
                %v251 = vld [vmem:[%s207 + $0xfc] sm:%s200]
                %252 = vst [vmem:[%s208 + $0x54] sm:%s200] %v251
                %v253 = vld [vmem:[%s207 + $0x108] sm:%s200]
                %254 = vst [vmem:[%s208 + $0x58] sm:%s200] %v253
                %v255 = vld [vmem:[%s207 + $0x114] sm:%s200]
                %256 = vst [vmem:[%s208 + $0x5c] sm:%s200] %v255
                %v257 = vld [vmem:[%s207 + $0x120] sm:%s200]
                %258 = vst [vmem:[%s208 + $0x60] sm:%s200] %v257
                %v259 = vld [vmem:[%s207 + $0x12c] sm:%s200]
                %260 = vst [vmem:[%s208 + $0x64] sm:%s200] %v259
                %v261 = vld [vmem:[%s207 + $0x138] sm:%s200]
                %262 = vst [vmem:[%s208 + $0x68] sm:%s200] %v261
                %v263 = vld [vmem:[%s207 + $0x144] sm:%s200]
                %264 = vst [vmem:[%s208 + $0x6c] sm:%s200] %v263
                %v265 = vld [vmem:[%s207 + $0x150] sm:%s200]
                %266 = vst [vmem:[%s208 + $0x70] sm:%s200] %v265
                %v267 = vld [vmem:[%s207 + $0x15c] sm:%s200]
                %268 = vst [vmem:[%s208 + $0x74] sm:%s200] %v267
                %v269 = vld [vmem:[%s207 + $0x168] sm:%s200]
                %270 = vst [vmem:[%s208 + $0x78] sm:%s200] %v269
                %v271 = vld [vmem:[%s207 + $0x174] sm:%s200]
                %272 = vst [vmem:[%s208 + $0x7c] sm:%s200] %v271
              $region45: #{densenet_forward.17} parent=39 // loop_footer
                %s206 = sadd.s32 1, %s202
              $region46: #{densenet_forward.17} parent=39 // loop_footer_branch
                %201 = sbr.rel target = $region42
              $region47: #{densenet_forward.17} parent=39 // loop_exit
                _
            $region40: #{densenet_forward.17} parent=31 // pred_fallthru
              _
          $region32: #{densenet_forward.17} parent=27 // pred_fallthru
            _
          %357 = vnop
        $region28: #{densenet_forward.17} parent=19 // pred_fallthru
          _
      $region20: #{densenet_forward.17} parent=5 // pred_fallthru
        _
      %p358 = scmp.le.s32.totalorder 1, %s9
      %p359 = scmp.lt.s32.totalorder %s9, 7
      %p360 = pnand %p358, %p359
      %p361 = pneg %p360
      // Predicated region
      $region66: #{densenet_forward.17} parent=5 // pred_check
        _
      $region67: #{densenet_forward.17} parent=5 // pred_check_branch
        %363 = sbr.rel (%p360) target = $region69
      $region68: #{densenet_forward.17} parent=5 // pred_region
        %s364 = ssub.s32 %s9, 1
        %s365 = sand.u32 %s71, 1
        %s366 = sand.u32 %s71, 1
        %s367 = smul.addr %s366, 128
        %s368 = scalar_lea.vmem [#allocation3], %s367
        // Predicated region
        $region70: #{densenet_forward.17} parent=68 // pred_check
          %p369 = pneg %p84
        $region71: #{densenet_forward.17} parent=68 // pred_check_branch
          %371 = sbr.rel (%p369) target = $region73
        $region72: #{densenet_forward.17} parent=68 // pred_region
          _
        $region73: #{densenet_forward.17} parent=68 // pred_fallthru
          _
        %s372 = smul.u32 2, %s19
        %s373 = smul.u32 2, %s21
        %p374 = scmp.lt.s32.totalorder %s372, 3
        %s375 = scalar_select %p374, %s372, 3
        %p376 = scmp.lt.s32.totalorder %s373, 1
        %s377 = scalar_select %p376, %s373, 1
        %s378 = smul.addr %s375, 2
        %s379 = sadd.s32 %s377, %s378
        %s380 = smul.addr %s379, 4
        %s381 = scalar_lea.vmem %s0, %s380
        %p382 = pneg %p56
        %p383 = pneg %p53
        %s384 = sand.u32 %s71, 1
        %s385 = sand.u32 %s71, 1
        %s386 = smul.addr %s385, 128
        %s387 = scalar_lea.vmem [#allocation3], %s386
        %p388 = pneg %p84
        %p389 = pneg %p81
        %s390 = smul.u32 2, %s21
        %p391 = scmp.lt.s32.totalorder %s390, 1
        %s392 = scalar_select %p391, %s390, 1
        %s393 = smul.addr %s392, 2
        %s394 = scalar_lea.vmem %s2, %s393
        %p395 = pneg %p110
        %p396 = pneg %p107
        %p397 = pneg %p138
        %p398 = pneg %p135
        %s399 = sand.u32 %s125, 1
        %s400 = sand.u32 %s125, 1
        %s401 = smul.addr %s400, 16
        %s402 = scalar_lea.vmem [#allocation4], %s401
        %s403 = smul.u32 2, %s19
        %s404 = smul.u32 2, %s21
        %p405 = scmp.lt.s32.totalorder %s403, 3
        %s406 = scalar_select %p405, %s403, 3
        %p407 = scmp.lt.s32.totalorder %s404, 1
        %s408 = scalar_select %p407, %s404, 1
        %s409 = smul.addr %s406, 2
        %s410 = sadd.s32 %s408, %s409
        %s411 = smul.addr %s410, 4
        %s412 = scalar_lea.vmem %s0, %s411
        %s413 = smul.u32 2, %s19
        %s414 = smul.u32 2, %s21
        %s415 = smul.u32 32, %s21
        %s416 = smul.u32 2, %s21
        %p417 = scmp.lt.s32.totalorder %s416, 1
        %s418 = scalar_select %p417, %s416, 1
        %s419 = smul.addr %s418, 2
        %s420 = scalar_lea.vmem %s2, %s419
        %s421 = smul.u32 2, %s21
        %s422 = smul.u32 2, %s19
        %p423 = scmp.eq.s32.totalorder %s21, 0
        // Predicated region
        $region74: #{densenet_forward.17} parent=68 // pred_check
          %p424 = pneg %p423
        $region75: #{densenet_forward.17} parent=68 // pred_check_branch
          %426 = sbr.rel (%p424) target = $region77
        $region76: #{densenet_forward.17} parent=68 // pred_region
          %427 = vst [vmem:[#allocation2] sm:$0xff] 0.0
          %428 = vst [vmem:[#allocation2 + $0x8] sm:$0xff] 0.0
        $region77: #{densenet_forward.17} parent=68 // pred_fallthru
          _
        %v429 = vld [vmem:[%s420] sm:$0xf]
        %v430 = vld [vmem:[%s412] sm:$0xff]
        %v431 = vld [vmem:[%s412 + $0x8] sm:$0xff]
        %v432 = vunpack.c.l.bf16 %v430
        %v433 = vunpack.c.h.bf16 %v430
        %v434 = vunpack.c.l.bf16 %v431
        %v435 = vunpack.c.h.bf16 %v431
        %v437 = vperm.slane %v429, 0
        %v438 = vperm.slane %v429, 2
        %v441 = vperm.slane %v437, 0
        %v442 = vperm.slane %v438, 0
        %v443 = vmul.f32 %v432, %v441
        %v444 = vmul.f32 %v433, %v442
        %v445 = vmul.f32 %v434, %v441
        %v446 = vmul.f32 %v435, %v442
        %v447 = vperm.slane %v429, 1
        %v448 = vperm.slane %v429, 3
        %v451 = vperm.slane %v447, 1
        %v452 = vperm.slane %v448, 1
        %v453 = vadd.f32 %v443, %v451
        %v454 = vadd.f32 %v444, %v452
        %v455 = vadd.f32 %v445, %v451
        %v456 = vadd.f32 %v446, %v452
        %v457 = vmax.f32 %v453, 0.0
        %v458 = vmax.f32 %v454, 0.0
        %v459 = vmax.f32 %v455, 0.0
        %v460 = vmax.f32 %v456, 0.0
        %v461 = vld [vmem:[#allocation2] sm:$0xff]
        %v462 = vld [vmem:[#allocation2 + $0x8] sm:$0xff]
        %v463 = vpack.c.bf16 %v459, %v457
        %v464 = vpack.c.bf16 %v460, %v458
        %v465 = vld [vmem:[%s368] sm:$0xf]
        %v466 = vld [vmem:[%s368 + $0x4] sm:$0xf]
        %v467 = vld [vmem:[%s368 + $0x8] sm:$0xf]
        %v468 = vld [vmem:[%s368 + $0xc] sm:$0xf]
        %v469 = vld [vmem:[%s368 + $0x10] sm:$0xf]
        %v470 = vld [vmem:[%s368 + $0x14] sm:$0xf]
        %v471 = vld [vmem:[%s368 + $0x18] sm:$0xf]
        %v472 = vld [vmem:[%s368 + $0x1c] sm:$0xf]
        %v473 = vld [vmem:[%s368 + $0x20] sm:$0xf]
        %v474 = vld [vmem:[%s368 + $0x24] sm:$0xf]
        %v475 = vld [vmem:[%s368 + $0x28] sm:$0xf]
        %v476 = vld [vmem:[%s368 + $0x2c] sm:$0xf]
        %v477 = vld [vmem:[%s368 + $0x30] sm:$0xf]
        %v478 = vld [vmem:[%s368 + $0x34] sm:$0xf]
        %v479 = vld [vmem:[%s368 + $0x38] sm:$0xf]
        %v480 = vld [vmem:[%s368 + $0x3c] sm:$0xf]
        %v481 = vld [vmem:[%s368 + $0x40] sm:$0xf]
        %v482 = vld [vmem:[%s368 + $0x44] sm:$0xf]
        %v483 = vld [vmem:[%s368 + $0x48] sm:$0xf]
        %v484 = vld [vmem:[%s368 + $0x4c] sm:$0xf]
        %v485 = vld [vmem:[%s368 + $0x50] sm:$0xf]
        %v486 = vld [vmem:[%s368 + $0x54] sm:$0xf]
        %v487 = vld [vmem:[%s368 + $0x58] sm:$0xf]
        %v488 = vld [vmem:[%s368 + $0x5c] sm:$0xf]
        %v489 = vld [vmem:[%s368 + $0x60] sm:$0xf]
        %v490 = vld [vmem:[%s368 + $0x64] sm:$0xf]
        %v491 = vld [vmem:[%s368 + $0x68] sm:$0xf]
        %v492 = vld [vmem:[%s368 + $0x6c] sm:$0xf]
        %v493 = vld [vmem:[%s368 + $0x70] sm:$0xf]
        %v494 = vld [vmem:[%s368 + $0x74] sm:$0xf]
        %v495 = vld [vmem:[%s368 + $0x78] sm:$0xf]
        %v496 = vld [vmem:[%s368 + $0x7c] sm:$0xf]
        %v529 = vunpack.c.l.b16 %v465
        %v530 = vunpack.c.l.b16 %v466
        %v531 = vunpack.c.l.b16 %v467
        %v532 = vunpack.c.l.b16 %v468
        %v533 = vunpack.c.l.b16 %v469
        %v534 = vunpack.c.l.b16 %v470
        %v535 = vunpack.c.l.b16 %v471
        %v536 = vunpack.c.l.b16 %v472
        %v537 = vunpack.c.l.b16 %v473
        %v538 = vunpack.c.l.b16 %v474
        %v539 = vunpack.c.l.b16 %v475
        %v540 = vunpack.c.l.b16 %v476
        %v541 = vunpack.c.l.b16 %v477
        %v542 = vunpack.c.l.b16 %v478
        %v543 = vunpack.c.l.b16 %v479
        %v544 = vunpack.c.l.b16 %v480
        %v545 = vunpack.c.l.b16 %v481
        %v546 = vunpack.c.l.b16 %v482
        %v547 = vunpack.c.l.b16 %v483
        %v548 = vunpack.c.l.b16 %v484
        %v549 = vunpack.c.l.b16 %v485
        %v550 = vunpack.c.l.b16 %v486
        %v551 = vunpack.c.l.b16 %v487
        %v552 = vunpack.c.l.b16 %v488
        %v553 = vunpack.c.l.b16 %v489
        %v554 = vunpack.c.l.b16 %v490
        %v555 = vunpack.c.l.b16 %v491
        %v556 = vunpack.c.l.b16 %v492
        %v557 = vunpack.c.l.b16 %v493
        %v558 = vunpack.c.l.b16 %v494
        %v559 = vunpack.c.l.b16 %v495
        %v560 = vunpack.c.l.b16 %v496
        %v561 = vpack.c.b16 %v530, %v529
        %v562 = vpack.c.b16 %v532, %v531
        %v563 = vpack.c.b16 %v534, %v533
        %v564 = vpack.c.b16 %v536, %v535
        %v565 = vpack.c.b16 %v538, %v537
        %v566 = vpack.c.b16 %v540, %v539
        %v567 = vpack.c.b16 %v542, %v541
        %v568 = vpack.c.b16 %v544, %v543
        %v569 = vpack.c.b16 %v546, %v545
        %v570 = vpack.c.b16 %v548, %v547
        %v571 = vpack.c.b16 %v550, %v549
        %v572 = vpack.c.b16 %v552, %v551
        %v573 = vpack.c.b16 %v554, %v553
        %v574 = vpack.c.b16 %v556, %v555
        %v575 = vpack.c.b16 %v558, %v557
        %v576 = vpack.c.b16 %v560, %v559
        %593 = vmatpush.bf16.msra.mxu0 %v568
        %594 = vmatpush.bf16.msra.mxu0 %v567
        %595 = vmatpush.bf16.msra.mxu0 %v566
        %596 = vmatpush.bf16.msra.mxu0 %v565
        %597 = vmatpush.bf16.msra.mxu0 %v564
        %598 = vmatpush.bf16.msra.mxu0 %v563
        %599 = vmatpush.bf16.msra.mxu0 %v562
        %600 = vmatpush.bf16.msra.mxu0 %v561
        %601 = vmatmul.bf16.gmra.mxu0 %v463
        %v602 = vpop.f32.mrf.mxu0
        %v603 = vadd.f32 0.0, %v602
        %v604 = vpop.f32.mrf.mxu0
        %v605 = vadd.f32 0.0, %v604
        %606 = vdwg.mxu0
        %607 = vmatpush.bf16.msra.mxu0 %v576
        %608 = vmatpush.bf16.msra.mxu0 %v575
        %609 = vmatpush.bf16.msra.mxu0 %v574
        %610 = vmatpush.bf16.msra.mxu0 %v573
        %611 = vmatpush.bf16.msra.mxu0 %v572
        %612 = vmatpush.bf16.msra.mxu0 %v571
        %613 = vmatpush.bf16.msra.mxu0 %v570
        %614 = vmatpush.bf16.msra.mxu0 %v569
        %615 = vmatmul.bf16.gmra.mxu0 %v464
        %v616 = vpop.f32.mrf.mxu0
        %v617 = vadd.f32 %v603, %v616
        %v618 = vpop.f32.mrf.mxu0
        %v619 = vadd.f32 %v605, %v618
        %620 = vdwg.mxu0
        %v621 = vadd.f32 %v461, %v617
        %v622 = vadd.f32 %v462, %v619
        %623 = vst [vmem:[#allocation2] sm:$0xff] %v621
        %624 = vst [vmem:[#allocation2 + $0x8] sm:$0xff] %v622
        // Predicated region
        $region78: #{densenet_forward.17} parent=68 // pred_check
          %p625 = pneg %p423
        $region79: #{densenet_forward.17} parent=68 // pred_check_branch
          %627 = sbr.rel (%p625) target = $region81
        $region80: #{densenet_forward.17} parent=68 // pred_region
          %v628 = vld [vmem:[#allocation2] sm:$0xff]
          %v629 = vld [vmem:[#allocation2 + $0x8] sm:$0xff]
          %630 = vst [vmem:[%s402] sm:$0xff] %v628
          %631 = vst [vmem:[%s402 + $0x8] sm:$0xff] %v629
        $region81: #{densenet_forward.17} parent=68 // pred_fallthru
          _
        %s632 = sand.u32 %s125, 1
        %s633 = sand.u32 %s125, 1
        %s634 = smul.addr %s633, 16
        %s635 = scalar_lea.vmem [#allocation4], %s634
        // Predicated region
        $region82: #{densenet_forward.17} parent=68 // pred_check
          %p636 = pneg %p135
        $region83: #{densenet_forward.17} parent=68 // pred_check_branch
          %638 = sbr.rel (%p636) target = $region85
        $region84: #{densenet_forward.17} parent=68 // pred_region
          %s639 = smul.u32 2, %s19
          %s640 = smul.addr %s639, 3
          %s641 = sadd.s32 %s20, %s640
          %s642 = smul.addr %s641, 8
          %s643 = scalar_lea.vmem %s3, %s642
          // Predicated region
          $region86: #{densenet_forward.17} parent=84 // pred_check
            _
          $region87: #{densenet_forward.17} parent=84 // pred_check_branch
            %645 = sbr.rel (0) target = $region89
          $region88: #{densenet_forward.17} parent=84 // pred_region
            // Predicated region
            $region90: #{densenet_forward.17} parent=88 // pred_check
              _
            $region91: #{densenet_forward.17} parent=88 // pred_check_branch
              %647 = sbr.rel (0) target = $region93
            $region92: #{densenet_forward.17} parent=88 // pred_region
              // Predicated region
              $region105: #{densenet_forward.17} parent=92 // pred_check
                _
              $region106: #{densenet_forward.17} parent=92 // pred_check_branch
                %665 = sbr.rel (0) target = $region108
              $region107: #{densenet_forward.17} parent=92 // pred_region
                loop: start=0, step=1, limit=1
                $region109: #{densenet_forward.17} parent=107 // loop_pre_header
                  _
                $region110: #{densenet_forward.17} parent=107 // loop_header
                  %s667 = sphi 0, %s671
                  %p668 = scmp.ge.s32.totalorder %s667, 1
                  %s672 = sphi %s635, %s635
                  %s673 = sphi %s643, %s643
                $region111: #{densenet_forward.17} parent=107 // loop_header_branch
                  %670 = sbr.rel (%p668) target = $region115
                $region112: #{densenet_forward.17} parent=107 // loop_body
                  %v674 = vld [vmem:[%s672] sm:$0xff]
                  %675 = vst [vmem:[%s673] sm:$0xff] %v674
                  %v676 = vld [vmem:[%s672 + $0x8] sm:$0xff]
                  %677 = vst [vmem:[%s673 + $0x18] sm:$0xff] %v676
                $region113: #{densenet_forward.17} parent=107 // loop_footer
                  %s671 = sadd.s32 1, %s667
                $region114: #{densenet_forward.17} parent=107 // loop_footer_branch
                  %666 = sbr.rel target = $region110
                $region115: #{densenet_forward.17} parent=107 // loop_exit
                  _
              $region108: #{densenet_forward.17} parent=92 // pred_fallthru
                _
              // Predicated region
              $region116: #{densenet_forward.17} parent=92 // pred_check
                _
              $region117: #{densenet_forward.17} parent=92 // pred_check_branch
                %679 = sbr.rel target = $region119
              $region118: #{densenet_forward.17} parent=92 // pred_region
                _
              $region119: #{densenet_forward.17} parent=92 // pred_fallthru
                _
            $region93: #{densenet_forward.17} parent=88 // pred_fallthru
              _
            // Predicated region
            $region94: #{densenet_forward.17} parent=88 // pred_check
              _
            $region95: #{densenet_forward.17} parent=88 // pred_check_branch
              %649 = sbr.rel target = $region97
            $region96: #{densenet_forward.17} parent=88 // pred_region
              %s651 = ssub.s32 256, 1
              loop: start=0, step=1, limit=1
              $region98: #{densenet_forward.17} parent=96 // loop_pre_header
                _
              $region99: #{densenet_forward.17} parent=96 // loop_header
                %s653 = sphi 0, %s657
                %p654 = scmp.ge.s32.totalorder %s653, 1
                %s658 = sphi %s635, %s635
                %s659 = sphi %s643, %s643
              $region100: #{densenet_forward.17} parent=96 // loop_header_branch
                %656 = sbr.rel (%p654) target = $region104
              $region101: #{densenet_forward.17} parent=96 // loop_body
                %v660 = vld [vmem:[%s658] sm:%s651]
                %661 = vst [vmem:[%s659] sm:%s651] %v660
                %v662 = vld [vmem:[%s658 + $0x8] sm:%s651]
                %663 = vst [vmem:[%s659 + $0x18] sm:%s651] %v662
              $region102: #{densenet_forward.17} parent=96 // loop_footer
                %s657 = sadd.s32 1, %s653
              $region103: #{densenet_forward.17} parent=96 // loop_footer_branch
                %652 = sbr.rel target = $region99
              $region104: #{densenet_forward.17} parent=96 // loop_exit
                _
            $region97: #{densenet_forward.17} parent=88 // pred_fallthru
              _
          $region89: #{densenet_forward.17} parent=84 // pred_fallthru
            _
          %680 = vnop
        $region85: #{densenet_forward.17} parent=68 // pred_fallthru
          _
      $region69: #{densenet_forward.17} parent=5 // pred_fallthru
        _
      %p681 = scmp.le.s32.totalorder 2, %s9
      // Predicated region
      $region120: #{densenet_forward.17} parent=5 // pred_check
        %p682 = pneg %p681
      $region121: #{densenet_forward.17} parent=5 // pred_check_branch
        %684 = sbr.rel (%p682) target = $region123
      $region122: #{densenet_forward.17} parent=5 // pred_region
        %s685 = ssub.s32 %s9, 2
        // Predicated region
        $region124: #{densenet_forward.17} parent=122 // pred_check
          %p686 = pneg %p141
        $region125: #{densenet_forward.17} parent=122 // pred_check_branch
          %688 = sbr.rel (%p686) target = $region127
        $region126: #{densenet_forward.17} parent=122 // pred_region
          %s689 = sand.u32 %s126, 1
          %s690 = sand.u32 %s126, 1
          %s691 = smul.addr %s690, 16
          %s692 = scalar_lea.vmem [#allocation4], %s691
        $region127: #{densenet_forward.17} parent=122 // pred_fallthru
          _
      $region123: #{densenet_forward.17} parent=5 // pred_fallthru
        _
    $region6: #{densenet_forward.17} parent=1 // loop_footer
      %s13 = sadd.s32 1, %s9
    $region7: #{densenet_forward.17} parent=1 // loop_footer_branch
      %8 = sbr.rel target = $region3
    $region8: #{densenet_forward.17} parent=1 // loop_exit
      _

// kernel: densenet_forward.21
$region0: #{densenet_forward.21}
  #allocation0 [shape = 'u32[]', space=smem, size = 0x4, offset = 0x4, fixed_abs, tag = 'smem constant byte address 0x4 - core index']
  #allocation1 [shape = 'u32[72,128]{1,0:T(1,128)}', space=vmem, size = 0x9000, scoped, tag = 'internal scratch']
  #allocation2 [shape = 'f32[16,128]{1,0:T(8,128)}', space=vmem, size = 0x2000, scoped, tag = 'scratch operand']
  %s0 = inlined_call_operand.vmem [shape: bf16[32,256], index: 0, kind: input, shape index: {}]
  %s1 = inlined_call_operand.vmem [shape: bf16[256,128], index: 1, kind: input, shape index: {}]
  %s2 = inlined_call_operand.vmem [shape: f32[2,256], index: 2, kind: input, shape index: {}]
  %s3 = inlined_call_operand.vmem [shape: f32[32,128], index: 3, kind: output, shape index: {}]
  %s4 = sld [smem:[#allocation0]]
  $region53: #{densenet_forward.21} parent=0
    _
  %s6 = ssub.s32 1, %s4
  %s7 = scalar_select 0, %s6, %s4
  loop: start=0, step=1, limit=4
  $region2: #{densenet_forward.21} parent=0 // loop_pre_header
    _
  $region3: #{densenet_forward.21} parent=0 // loop_header
    %s9 = sphi 0, %s13
    %p10 = scmp.ge.s32.totalorder %s9, 4
    %s16 = sphi 0, %s35
    %s17 = sphi 0, %s31
    %s18 = sphi 0, %s27
    %s19 = sphi 0, %s16
    %s20 = sphi 0, %s17
    %s21 = sphi 0, %s18
    %s22 = sphi 0, %s19
    %s23 = sphi 0, %s20
    %s24 = sphi 0, %s21
    %s40 = sphi 0, %s42
    %s43 = sphi 0, %s40
    %s44 = sphi 0, %s43
    %s60 = sphi 0, %s44
    %s68 = sphi 0, %s70
    %s71 = sphi 0, %s68
    %s72 = sphi 0, %s71
    %s88 = sphi 0, %s72
    %s94 = sphi 0, %s96
    %s97 = sphi 0, %s94
    %s98 = sphi 0, %s97
    %s114 = sphi 0, %s98
    %s122 = sphi 0, %s124
    %s125 = sphi 0, %s122
    %s126 = sphi 0, %s125
    %s142 = sphi 0, %s126
  $region4: #{densenet_forward.21} parent=0 // loop_header_branch
    %12 = sbr.rel (%p10) target = $region8
  $region5: #{densenet_forward.21} parent=0 // loop_body
    %s14 = ssub.s32 %s9, 1
    %s15 = ssub.s32 %s9, 2
    %s25 = sadd.s32 1, %s18
    %p26 = scmp.ge.s32.totalorder %s25, 1
    %s27 = scalar_select %p26, 0, %s25
    %s28 = sadd.s32 1, %s17
    %s29 = scalar_select %p26, %s28, %s17
    %p30 = scmp.ge.s32.totalorder %s29, 1
    %s31 = scalar_select %p30, 0, %s29
    %s32 = sadd.s32 1, %s16
    %s33 = scalar_select %p30, %s32, %s16
    %p34 = scmp.ge.s32.totalorder %s33, 2
    %s35 = scalar_select %p34, 0, %s33
    %s36 = ssub.s32 %s16, %s35
    %s37 = ssub.s32 %s18, %s27
    %s38 = sor.u32 %s36, %s37
    %p39 = scmp.eq.s32.totalorder %s38, 0
    %s41 = sadd.s32 %s40, 1
    %s42 = scalar_select %p39, %s40, %s41
    %p45 = pneg %p39
    %p46 = scmp.eq.s32.totalorder %s9, 1
    %p47 = por %p45, %p46
    %p48 = scmp.ne.s32.totalorder %s40, %s43
    %p49 = scmp.eq.s32.totalorder %s9, 0
    %p50 = por %p48, %p49
    %p51 = scmp.ne.s32.totalorder %s40, %s43
    %p52 = scmp.eq.s32.totalorder %s14, 1
    %p53 = por %p51, %p52
    %p54 = scmp.ne.s32.totalorder %s43, %s44
    %p55 = scmp.eq.s32.totalorder %s14, 0
    %p56 = por %p54, %p55
    %p57 = scmp.ne.s32.totalorder %s43, %s44
    %p58 = scmp.eq.s32.totalorder %s15, 1
    %p59 = por %p57, %p58
    %p61 = scmp.ne.s32.totalorder %s44, %s60
    %p62 = scmp.eq.s32.totalorder %s15, 0
    %p63 = por %p61, %p62
    %s64 = ssub.s32 %s18, %s27
    %s65 = ssub.s32 %s17, %s31
    %s66 = sor.u32 %s64, %s65
    %p67 = scmp.eq.s32.totalorder %s66, 0
    %s69 = sadd.s32 %s68, 1
    %s70 = scalar_select %p67, %s68, %s69
    %p73 = pneg %p67
    %p74 = scmp.eq.s32.totalorder %s9, 1
    %p75 = por %p73, %p74
    %p76 = scmp.ne.s32.totalorder %s68, %s71
    %p77 = scmp.eq.s32.totalorder %s9, 0
    %p78 = por %p76, %p77
    %p79 = scmp.ne.s32.totalorder %s68, %s71
    %p80 = scmp.eq.s32.totalorder %s14, 1
    %p81 = por %p79, %p80
    %p82 = scmp.ne.s32.totalorder %s71, %s72
    %p83 = scmp.eq.s32.totalorder %s14, 0
    %p84 = por %p82, %p83
    %p85 = scmp.ne.s32.totalorder %s71, %s72
    %p86 = scmp.eq.s32.totalorder %s15, 1
    %p87 = por %p85, %p86
    %p89 = scmp.ne.s32.totalorder %s72, %s88
    %p90 = scmp.eq.s32.totalorder %s15, 0
    %p91 = por %p89, %p90
    %s92 = ssub.s32 %s18, %s27
    %p93 = scmp.eq.s32.totalorder %s92, 0
    %s95 = sadd.s32 %s94, 1
    %s96 = scalar_select %p93, %s94, %s95
    %p99 = pneg %p93
    %p100 = scmp.eq.s32.totalorder %s9, 1
    %p101 = por %p99, %p100
    %p102 = scmp.ne.s32.totalorder %s94, %s97
    %p103 = scmp.eq.s32.totalorder %s9, 0
    %p104 = por %p102, %p103
    %p105 = scmp.ne.s32.totalorder %s94, %s97
    %p106 = scmp.eq.s32.totalorder %s14, 1
    %p107 = por %p105, %p106
    %p108 = scmp.ne.s32.totalorder %s97, %s98
    %p109 = scmp.eq.s32.totalorder %s14, 0
    %p110 = por %p108, %p109
    %p111 = scmp.ne.s32.totalorder %s97, %s98
    %p112 = scmp.eq.s32.totalorder %s15, 1
    %p113 = por %p111, %p112
    %p115 = scmp.ne.s32.totalorder %s98, %s114
    %p116 = scmp.eq.s32.totalorder %s15, 0
    %p117 = por %p115, %p116
    %s118 = ssub.s32 %s16, %s35
    %s119 = ssub.s32 %s17, %s31
    %s120 = sor.u32 %s118, %s119
    %p121 = scmp.eq.s32.totalorder %s120, 0
    %s123 = sadd.s32 %s122, 1
    %s124 = scalar_select %p121, %s122, %s123
    %p127 = pneg %p121
    %p128 = scmp.eq.s32.totalorder %s9, 1
    %p129 = por %p127, %p128
    %p130 = scmp.ne.s32.totalorder %s122, %s125
    %p131 = scmp.eq.s32.totalorder %s9, 0
    %p132 = por %p130, %p131
    %p133 = scmp.ne.s32.totalorder %s122, %s125
    %p134 = scmp.eq.s32.totalorder %s14, 1
    %p135 = por %p133, %p134
    %p136 = scmp.ne.s32.totalorder %s125, %s126
    %p137 = scmp.eq.s32.totalorder %s14, 0
    %p138 = por %p136, %p137
    %p139 = scmp.ne.s32.totalorder %s125, %s126
    %p140 = scmp.eq.s32.totalorder %s15, 1
    %p141 = por %p139, %p140
    %p143 = scmp.ne.s32.totalorder %s126, %s142
    %p144 = scmp.eq.s32.totalorder %s15, 0
    %p145 = por %p143, %p144
    %p146 = scmp.le.s32.totalorder 1, %s9
    %p147 = scmp.lt.s32.totalorder %s9, 3
    %p148 = pnand %p146, %p147
    %p149 = pneg %p148
    // Predicated region
    $region9: #{densenet_forward.21} parent=5 // pred_check
      _
    $region10: #{densenet_forward.21} parent=5 // pred_check_branch
      %151 = sbr.rel (%p148) target = $region12
    $region11: #{densenet_forward.21} parent=5 // pred_region
      %s152 = ssub.s32 %s9, 1
      // Predicated region
      $region13: #{densenet_forward.21} parent=11 // pred_check
        %p153 = pneg %p84
      $region14: #{densenet_forward.21} parent=11 // pred_check_branch
        %155 = sbr.rel (%p153) target = $region16
      $region15: #{densenet_forward.21} parent=11 // pred_region
        %s156 = smul.u32 32, %s21
        %p157 = scmp.lt.s32.totalorder %s156, 31
        %s158 = scalar_select %p157, %s156, 31
        %p159 = scmp.lt.s32.totalorder %s20, 0
        %s160 = scalar_select %p159, %s20, 0
        %s161 = sadd.s32 %s160, %s158
        %s162 = smul.addr %s161, 4
        %s163 = scalar_lea.vmem %s1, %s162
        %s164 = smul.u32 32, %s21
      $region16: #{densenet_forward.21} parent=11 // pred_fallthru
        _
      // Predicated region
      $region17: #{densenet_forward.21} parent=11 // pred_check
        %p165 = pneg %p110
      $region18: #{densenet_forward.21} parent=11 // pred_check_branch
        %167 = sbr.rel (%p165) target = $region20
      $region19: #{densenet_forward.21} parent=11 // pred_region
        %s168 = smul.u32 2, %s21
        %p169 = scmp.lt.s32.totalorder %s168, 1
        %s170 = scalar_select %p169, %s168, 1
        %s171 = smul.addr %s170, 2
        %s172 = scalar_lea.vmem %s2, %s171
        %s173 = smul.u32 2, %s21
      $region20: #{densenet_forward.21} parent=11 // pred_fallthru
        _
    $region12: #{densenet_forward.21} parent=5 // pred_fallthru
      _
    %p174 = scmp.lt.s32.totalorder %s9, 2
    // Predicated region
    $region21: #{densenet_forward.21} parent=5 // pred_check
      %p175 = pneg %p174
    $region22: #{densenet_forward.21} parent=5 // pred_check_branch
      %177 = sbr.rel (%p175) target = $region24
    $region23: #{densenet_forward.21} parent=5 // pred_region
      // Predicated region
      $region25: #{densenet_forward.21} parent=23 // pred_check
        %p178 = pneg %p50
      $region26: #{densenet_forward.21} parent=23 // pred_check_branch
        %180 = sbr.rel (%p178) target = $region28
      $region27: #{densenet_forward.21} parent=23 // pred_region
        %s181 = smul.u32 2, %s16
        %s182 = smul.u32 2, %s18
        %p183 = scmp.lt.s32.totalorder %s181, 3
        %s184 = scalar_select %p183, %s181, 3
        %p185 = scmp.lt.s32.totalorder %s182, 1
        %s186 = scalar_select %p185, %s182, 1
        %s187 = smul.addr %s184, 2
        %s188 = sadd.s32 %s186, %s187
        %s189 = smul.addr %s188, 4
        %s190 = scalar_lea.vmem %s0, %s189
        %s191 = smul.u32 2, %s16
        %s192 = smul.u32 2, %s18
      $region28: #{densenet_forward.21} parent=23 // pred_fallthru
        _
    $region24: #{densenet_forward.21} parent=5 // pred_fallthru
      _
    %p193 = scmp.le.s32.totalorder 1, %s9
    %p194 = scmp.lt.s32.totalorder %s9, 3
    %p195 = pnand %p193, %p194
    %p196 = pneg %p195
    // Predicated region
    $region29: #{densenet_forward.21} parent=5 // pred_check
      _
    $region30: #{densenet_forward.21} parent=5 // pred_check_branch
      %198 = sbr.rel (%p195) target = $region32
    $region31: #{densenet_forward.21} parent=5 // pred_region
      %s199 = ssub.s32 %s9, 1
      %s200 = smul.u32 2, %s19
      %s201 = smul.u32 2, %s21
      %p202 = scmp.lt.s32.totalorder %s200, 3
      %s203 = scalar_select %p202, %s200, 3
      %p204 = scmp.lt.s32.totalorder %s201, 1
      %s205 = scalar_select %p204, %s201, 1
      %s206 = smul.addr %s203, 2
      %s207 = sadd.s32 %s205, %s206
      %s208 = smul.addr %s207, 4
      %s209 = scalar_lea.vmem %s0, %s208
      %p210 = pneg %p56
      %p211 = pneg %p53
      %s212 = smul.u32 32, %s21
      %p213 = scmp.lt.s32.totalorder %s212, 31
      %s214 = scalar_select %p213, %s212, 31
      %p215 = scmp.lt.s32.totalorder %s20, 0
      %s216 = scalar_select %p215, %s20, 0
      %s217 = sadd.s32 %s216, %s214
      %s218 = smul.addr %s217, 4
      %s219 = scalar_lea.vmem %s1, %s218
      %p220 = pneg %p84
      %p221 = pneg %p81
      %s222 = smul.u32 2, %s21
      %p223 = scmp.lt.s32.totalorder %s222, 1
      %s224 = scalar_select %p223, %s222, 1
      %s225 = smul.addr %s224, 2
      %s226 = scalar_lea.vmem %s2, %s225
      %p227 = pneg %p110
      %p228 = pneg %p107
      %p229 = pneg %p138
      %p230 = pneg %p135
      %s231 = smul.u32 2, %s19
      %p232 = scmp.lt.s32.totalorder %s231, 3
      %s233 = scalar_select %p232, %s231, 3
      %p234 = scmp.lt.s32.totalorder %s20, 0
      %s235 = scalar_select %p234, %s20, 0
      %s236 = sadd.s32 %s235, %s233
      %s237 = smul.addr %s236, 8
      %s238 = scalar_lea.vmem %s3, %s237
      %s239 = smul.u32 2, %s19
      %s240 = smul.u32 2, %s21
      %p241 = scmp.lt.s32.totalorder %s239, 3
      %s242 = scalar_select %p241, %s239, 3
      %p243 = scmp.lt.s32.totalorder %s240, 1
      %s244 = scalar_select %p243, %s240, 1
      %s245 = smul.addr %s242, 2
      %s246 = sadd.s32 %s244, %s245
      %s247 = smul.addr %s246, 4
      %s248 = scalar_lea.vmem %s0, %s247
      %s249 = smul.u32 2, %s19
      %s250 = smul.u32 2, %s21
      %s251 = smul.u32 32, %s21
      %p252 = scmp.lt.s32.totalorder %s251, 31
      %s253 = scalar_select %p252, %s251, 31
      %p254 = scmp.lt.s32.totalorder %s20, 0
      %s255 = scalar_select %p254, %s20, 0
      %s256 = sadd.s32 %s255, %s253
      %s257 = smul.addr %s256, 4
      %s258 = scalar_lea.vmem %s1, %s257
      %s259 = smul.u32 32, %s21
      %s260 = smul.u32 2, %s21
      %p261 = scmp.lt.s32.totalorder %s260, 1
      %s262 = scalar_select %p261, %s260, 1
      %s263 = smul.addr %s262, 2
      %s264 = scalar_lea.vmem %s2, %s263
      %s265 = smul.u32 2, %s21
      %s266 = smul.u32 2, %s19
      %p267 = scmp.lt.s32.totalorder %s266, 3
      %s268 = scalar_select %p267, %s266, 3
      %p269 = scmp.lt.s32.totalorder %s20, 0
      %s270 = scalar_select %p269, %s20, 0
      %s271 = sadd.s32 %s270, %s268
      %s272 = smul.addr %s271, 8
      %s273 = scalar_lea.vmem %s3, %s272
      %s274 = smul.u32 2, %s19
      %p275 = scmp.eq.s32.totalorder %s21, 0
      // Predicated region
      $region33: #{densenet_forward.21} parent=31 // pred_check
        %p276 = pneg %p275
      $region34: #{densenet_forward.21} parent=31 // pred_check_branch
        %278 = sbr.rel (%p276) target = $region36
      $region35: #{densenet_forward.21} parent=31 // pred_region
        %279 = vst [vmem:[#allocation2] sm:$0xff] 0.0
        %280 = vst [vmem:[#allocation2 + $0x8] sm:$0xff] 0.0
      $region36: #{densenet_forward.21} parent=31 // pred_fallthru
        _
      %v281 = vld [vmem:[%s264] sm:$0xf]
      %v282 = vld [vmem:[%s248] sm:$0xff]
      %v283 = vld [vmem:[%s248 + $0x8] sm:$0xff]
      %v284 = vunpack.c.l.bf16 %v282
      %v285 = vunpack.c.h.bf16 %v282
      %v286 = vunpack.c.l.bf16 %v283
      %v287 = vunpack.c.h.bf16 %v283
      %v289 = vperm.slane %v281, 0
      %v290 = vperm.slane %v281, 2
      %v293 = vperm.slane %v289, 0
      %v294 = vperm.slane %v290, 0
      %v295 = vmul.f32 %v284, %v293
      %v296 = vmul.f32 %v285, %v294
      %v297 = vmul.f32 %v286, %v293
      %v298 = vmul.f32 %v287, %v294
      %v299 = vperm.slane %v281, 1
      %v300 = vperm.slane %v281, 3
      %v303 = vperm.slane %v299, 1
      %v304 = vperm.slane %v300, 1
      %v305 = vadd.f32 %v295, %v303
      %v306 = vadd.f32 %v296, %v304
      %v307 = vadd.f32 %v297, %v303
      %v308 = vadd.f32 %v298, %v304
      %v309 = vmax.f32 %v305, 0.0
      %v310 = vmax.f32 %v306, 0.0
      %v311 = vmax.f32 %v307, 0.0
      %v312 = vmax.f32 %v308, 0.0
      %v313 = vld [vmem:[#allocation2] sm:$0xff]
      %v314 = vld [vmem:[#allocation2 + $0x8] sm:$0xff]
      %v315 = vpack.c.bf16 %v311, %v309
      %v316 = vpack.c.bf16 %v312, %v310
      %v317 = vld [vmem:[%s258] sm:$0xf]
      %v318 = vld [vmem:[%s258 + $0x4] sm:$0xf]
      %v319 = vld [vmem:[%s258 + $0x8] sm:$0xf]
      %v320 = vld [vmem:[%s258 + $0xc] sm:$0xf]
      %v321 = vld [vmem:[%s258 + $0x10] sm:$0xf]
      %v322 = vld [vmem:[%s258 + $0x14] sm:$0xf]
      %v323 = vld [vmem:[%s258 + $0x18] sm:$0xf]
      %v324 = vld [vmem:[%s258 + $0x1c] sm:$0xf]
      %v325 = vld [vmem:[%s258 + $0x20] sm:$0xf]
      %v326 = vld [vmem:[%s258 + $0x24] sm:$0xf]
      %v327 = vld [vmem:[%s258 + $0x28] sm:$0xf]
      %v328 = vld [vmem:[%s258 + $0x2c] sm:$0xf]
      %v329 = vld [vmem:[%s258 + $0x30] sm:$0xf]
      %v330 = vld [vmem:[%s258 + $0x34] sm:$0xf]
      %v331 = vld [vmem:[%s258 + $0x38] sm:$0xf]
      %v332 = vld [vmem:[%s258 + $0x3c] sm:$0xf]
      %v333 = vld [vmem:[%s258 + $0x40] sm:$0xf]
      %v334 = vld [vmem:[%s258 + $0x44] sm:$0xf]
      %v335 = vld [vmem:[%s258 + $0x48] sm:$0xf]
      %v336 = vld [vmem:[%s258 + $0x4c] sm:$0xf]
      %v337 = vld [vmem:[%s258 + $0x50] sm:$0xf]
      %v338 = vld [vmem:[%s258 + $0x54] sm:$0xf]
      %v339 = vld [vmem:[%s258 + $0x58] sm:$0xf]
      %v340 = vld [vmem:[%s258 + $0x5c] sm:$0xf]
      %v341 = vld [vmem:[%s258 + $0x60] sm:$0xf]
      %v342 = vld [vmem:[%s258 + $0x64] sm:$0xf]
      %v343 = vld [vmem:[%s258 + $0x68] sm:$0xf]
      %v344 = vld [vmem:[%s258 + $0x6c] sm:$0xf]
      %v345 = vld [vmem:[%s258 + $0x70] sm:$0xf]
      %v346 = vld [vmem:[%s258 + $0x74] sm:$0xf]
      %v347 = vld [vmem:[%s258 + $0x78] sm:$0xf]
      %v348 = vld [vmem:[%s258 + $0x7c] sm:$0xf]
      %v381 = vunpack.c.l.b16 %v317
      %v382 = vunpack.c.l.b16 %v318
      %v383 = vunpack.c.l.b16 %v319
      %v384 = vunpack.c.l.b16 %v320
      %v385 = vunpack.c.l.b16 %v321
      %v386 = vunpack.c.l.b16 %v322
      %v387 = vunpack.c.l.b16 %v323
      %v388 = vunpack.c.l.b16 %v324
      %v389 = vunpack.c.l.b16 %v325
      %v390 = vunpack.c.l.b16 %v326
      %v391 = vunpack.c.l.b16 %v327
      %v392 = vunpack.c.l.b16 %v328
      %v393 = vunpack.c.l.b16 %v329
      %v394 = vunpack.c.l.b16 %v330
      %v395 = vunpack.c.l.b16 %v331
      %v396 = vunpack.c.l.b16 %v332
      %v397 = vunpack.c.l.b16 %v333
      %v398 = vunpack.c.l.b16 %v334
      %v399 = vunpack.c.l.b16 %v335
      %v400 = vunpack.c.l.b16 %v336
      %v401 = vunpack.c.l.b16 %v337
      %v402 = vunpack.c.l.b16 %v338
      %v403 = vunpack.c.l.b16 %v339
      %v404 = vunpack.c.l.b16 %v340
      %v405 = vunpack.c.l.b16 %v341
      %v406 = vunpack.c.l.b16 %v342
      %v407 = vunpack.c.l.b16 %v343
      %v408 = vunpack.c.l.b16 %v344
      %v409 = vunpack.c.l.b16 %v345
      %v410 = vunpack.c.l.b16 %v346
      %v411 = vunpack.c.l.b16 %v347
      %v412 = vunpack.c.l.b16 %v348
      %v413 = vpack.c.b16 %v382, %v381
      %v414 = vpack.c.b16 %v384, %v383
      %v415 = vpack.c.b16 %v386, %v385
      %v416 = vpack.c.b16 %v388, %v387
      %v417 = vpack.c.b16 %v390, %v389
      %v418 = vpack.c.b16 %v392, %v391
      %v419 = vpack.c.b16 %v394, %v393
      %v420 = vpack.c.b16 %v396, %v395
      %v421 = vpack.c.b16 %v398, %v397
      %v422 = vpack.c.b16 %v400, %v399
      %v423 = vpack.c.b16 %v402, %v401
      %v424 = vpack.c.b16 %v404, %v403
      %v425 = vpack.c.b16 %v406, %v405
      %v426 = vpack.c.b16 %v408, %v407
      %v427 = vpack.c.b16 %v410, %v409
      %v428 = vpack.c.b16 %v412, %v411
      %445 = vmatpush.bf16.msra.mxu0 %v420
      %446 = vmatpush.bf16.msra.mxu0 %v419
      %447 = vmatpush.bf16.msra.mxu0 %v418
      %448 = vmatpush.bf16.msra.mxu0 %v417
      %449 = vmatpush.bf16.msra.mxu0 %v416
      %450 = vmatpush.bf16.msra.mxu0 %v415
      %451 = vmatpush.bf16.msra.mxu0 %v414
      %452 = vmatpush.bf16.msra.mxu0 %v413
      %453 = vmatmul.bf16.gmra.mxu0 %v315
      %v454 = vpop.f32.mrf.mxu0
      %v455 = vadd.f32 0.0, %v454
      %v456 = vpop.f32.mrf.mxu0
      %v457 = vadd.f32 0.0, %v456
      %458 = vdwg.mxu0
      %459 = vmatpush.bf16.msra.mxu0 %v428
      %460 = vmatpush.bf16.msra.mxu0 %v427
      %461 = vmatpush.bf16.msra.mxu0 %v426
      %462 = vmatpush.bf16.msra.mxu0 %v425
      %463 = vmatpush.bf16.msra.mxu0 %v424
      %464 = vmatpush.bf16.msra.mxu0 %v423
      %465 = vmatpush.bf16.msra.mxu0 %v422
      %466 = vmatpush.bf16.msra.mxu0 %v421
      %467 = vmatmul.bf16.gmra.mxu0 %v316
      %v468 = vpop.f32.mrf.mxu0
      %v469 = vadd.f32 %v455, %v468
      %v470 = vpop.f32.mrf.mxu0
      %v471 = vadd.f32 %v457, %v470
      %472 = vdwg.mxu0
      %v473 = vadd.f32 %v313, %v469
      %v474 = vadd.f32 %v314, %v471
      %475 = vst [vmem:[#allocation2] sm:$0xff] %v473
      %476 = vst [vmem:[#allocation2 + $0x8] sm:$0xff] %v474
      // Predicated region
      $region37: #{densenet_forward.21} parent=31 // pred_check
        %p477 = pneg %p275
      $region38: #{densenet_forward.21} parent=31 // pred_check_branch
        %479 = sbr.rel (%p477) target = $region40
      $region39: #{densenet_forward.21} parent=31 // pred_region
        %v480 = vld [vmem:[#allocation2] sm:$0xff]
        %v481 = vld [vmem:[#allocation2 + $0x8] sm:$0xff]
        %482 = vst [vmem:[%s273] sm:$0xff] %v480
        %483 = vst [vmem:[%s273 + $0x8] sm:$0xff] %v481
      $region40: #{densenet_forward.21} parent=31 // pred_fallthru
        _
      %s484 = smul.u32 2, %s19
      %p485 = scmp.lt.s32.totalorder %s484, 3
      %s486 = scalar_select %p485, %s484, 3
      %p487 = scmp.lt.s32.totalorder %s20, 0
      %s488 = scalar_select %p487, %s20, 0
      %s489 = sadd.s32 %s488, %s486
      %s490 = smul.addr %s489, 8
      %s491 = scalar_lea.vmem %s3, %s490
      // Predicated region
      $region41: #{densenet_forward.21} parent=31 // pred_check
        %p492 = pneg %p135
      $region42: #{densenet_forward.21} parent=31 // pred_check_branch
        %494 = sbr.rel (%p492) target = $region44
      $region43: #{densenet_forward.21} parent=31 // pred_region
        %s495 = smul.u32 2, %s19
      $region44: #{densenet_forward.21} parent=31 // pred_fallthru
        _
    $region32: #{densenet_forward.21} parent=5 // pred_fallthru
      _
    %p496 = scmp.le.s32.totalorder 2, %s9
    // Predicated region
    $region45: #{densenet_forward.21} parent=5 // pred_check
      %p497 = pneg %p496
    $region46: #{densenet_forward.21} parent=5 // pred_check_branch
      %499 = sbr.rel (%p497) target = $region48
    $region47: #{densenet_forward.21} parent=5 // pred_region
      %s500 = ssub.s32 %s9, 2
      // Predicated region
      $region49: #{densenet_forward.21} parent=47 // pred_check
        %p501 = pneg %p141
      $region50: #{densenet_forward.21} parent=47 // pred_check_branch
        %503 = sbr.rel (%p501) target = $region52
      $region51: #{densenet_forward.21} parent=47 // pred_region
        %s504 = smul.u32 2, %s22
        %p505 = scmp.lt.s32.totalorder %s504, 3
        %s506 = scalar_select %p505, %s504, 3
        %p507 = scmp.lt.s32.totalorder %s23, 0
        %s508 = scalar_select %p507, %s23, 0
        %s509 = sadd.s32 %s508, %s506
        %s510 = smul.addr %s509, 8
        %s511 = scalar_lea.vmem %s3, %s510
      $region52: #{densenet_forward.21} parent=47 // pred_fallthru
        _
    $region48: #{densenet_forward.21} parent=5 // pred_fallthru
      _
  $region6: #{densenet_forward.21} parent=0 // loop_footer
    %s13 = sadd.s32 1, %s9
  $region7: #{densenet_forward.21} parent=0 // loop_footer_branch
    %8 = sbr.rel target = $region3
  $region8: #{densenet_forward.21} parent=0 // loop_exit
    _

</llo_original>
